<compile_context>
chip_gen: v6e
topology: v6e:2x2x1
jax: 0.10.0
libtpu: 0.0.40
codegen_flags: <defaults>
</compile_context>

<pallas_src>
import math
from functools import partial

import jax
import jax.numpy as jnp
from jax.experimental import pallas as pl
from jax.experimental.pallas import tpu as pltpu


def _leaky_relu(x, slope=0.01):
    return jnp.where(x > 0, x, slope * x)


def phase_mlp_kernel(x_ref, bff_ref, w_in_s_ref, w_in_c_ref, b_in_ref,
                     w_hid_ref, b_hid_ref, w_out_ref, b_out_ref,
                     o_ref, *, num_layers, c_in, mxu_dtype):
    # x_ref: (C_in, tm) tile -- channels on sublanes, pixels on lanes (lane-dense).
    x = x_ref[...]

    # Gaussian Fourier projection: proj[f, p] = sum_c B^T[f, c] * x[c, p].
    # K = C_in is tiny (2), so use VPU broadcast FMAs instead of the MXU.
    proj = bff_ref[:, 0:1] * x[0:1, :]                      # (F/2, tm)
    for c in range(1, c_in):
        proj = proj + bff_ref[:, c:c + 1] * x[c:c + 1, :]
    proj = (2.0 * math.pi) * proj
    sinp = jnp.sin(proj)
    cosp = jnp.cos(proj)

    def mm(w, a):
        return jnp.dot(w.astype(mxu_dtype), a.astype(mxu_dtype),
                       preferred_element_type=jnp.float32)

    # Input 1x1 conv, sin/cos halves of the weight -> no concat materialized.
    h = mm(w_in_s_ref[...], sinp) + mm(w_in_c_ref[...], cosp) + b_in_ref[...]
    h = _leaky_relu(h)

    # Hidden 1x1 convs (num_layers is small; static unroll, per-layer loads).
    for l in range(num_layers):
        h = _leaky_relu(mm(w_hid_ref[l], h) + b_hid_ref[l])

    # Output 1x1 conv (no activation); (F, tm) -> lane-dense store.
    out = mm(w_out_ref[...], h) + b_out_ref[...]
    o_ref[...] = out.astype(o_ref.dtype)


def phase_mlp_forward(coords, params, *, tile_pixels=512, mxu_dtype=jnp.float32):
    """coords: (B, C_in, H, W) float32, NCHW like PyTorch. Returns (B, F, H, W)."""
    bff, w_in, b_in, w_hid, b_hid, w_out, b_out = params
    B, C_in, H, W = coords.shape
    Fh = bff.shape[1]                 # num_freqs // 2
    F = w_out.shape[1]                # num_freqs
    D2 = w_in.shape[1]                # 2 * internal_dim
    num_layers = w_hid.shape[0]

    # Pre-transpose the (tiny) weights once so the kernel computes W @ h.
    bff_t = bff.T                                   # (F/2, C_in)
    w_in_t = w_in.T                                 # (D2, F)
    w_in_s = w_in_t[:, :Fh]                         # (D2, F/2)  acts on sin
    w_in_c = w_in_t[:, Fh:]                         # (D2, F/2)  acts on cos
    b_in_t = b_in.T                                 # (D2, 1)
    w_hid_t = jnp.transpose(w_hid, (0, 2, 1))       # (L, D2, D2)
    b_hid_t = jnp.transpose(b_hid, (0, 2, 1))       # (L, D2, 1)
    w_out_t = w_out.T                               # (F, D2)
    b_out_t = b_out.T                               # (F, 1)

    # NCHW is already channels-first: no transpose, just flatten the pixel axis.
    HW = H * W
    x = coords.reshape(B, C_in, HW)

    # Pixel tile: multiple of 128, at most tile_pixels, and pad HW to a multiple.
    tile_pixels = max(128, (tile_pixels // 128) * 128)
    tm = min(tile_pixels, pl.cdiv(HW, 128) * 128)
    HWp = pl.cdiv(HW, tm) * tm
    if HWp != HW:
        x = jnp.pad(x, ((0, 0), (0, 0), (0, HWp - HW)))

    grid = (B, HWp // tm)
    kernel = partial(phase_mlp_kernel, num_layers=num_layers, c_in=C_in,
                     mxu_dtype=mxu_dtype)

    # Advisory cost estimate so XLA schedules surrounding ops sensibly.
    n_pix = B * HWp
    mm_flops = 2 * n_pix * (C_in * Fh + 2 * Fh * D2 + num_layers * D2 * D2 + D2 * F)
    n_params = (bff.size + w_in.size + b_in.size + w_hid.size + b_hid.size
                + w_out.size + b_out.size)
    cost = pl.CostEstimate(
        flops=int(mm_flops),
        transcendentals=int(n_pix * F),                      # sin + cos
        bytes_accessed=int(4 * (n_pix * C_in + n_pix * F + n_params)),
    )

    out_flat = pl.pallas_call(
        kernel,
        out_shape=jax.ShapeDtypeStruct((B, F, HWp), jnp.float32),
        grid_spec=pltpu.PrefetchScalarGridSpec(
            num_scalar_prefetch=0,
            grid=grid,
            in_specs=[
                # pixel tile: (C_in, tm), batch dim squeezed away
                pl.BlockSpec((pl.Squeezed(), C_in, tm), lambda b, p: (b, 0, p)),
                # parameters: full arrays, resident every step
                pl.BlockSpec(bff_t.shape, lambda b, p: (0, 0)),
                pl.BlockSpec(w_in_s.shape, lambda b, p: (0, 0)),
                pl.BlockSpec(w_in_c.shape, lambda b, p: (0, 0)),
                pl.BlockSpec(b_in_t.shape, lambda b, p: (0, 0)),
                pl.BlockSpec(w_hid_t.shape, lambda b, p: (0, 0, 0)),
                pl.BlockSpec(b_hid_t.shape, lambda b, p: (0, 0, 0)),
                pl.BlockSpec(w_out_t.shape, lambda b, p: (0, 0)),
                pl.BlockSpec(b_out_t.shape, lambda b, p: (0, 0)),
            ],
            out_specs=pl.BlockSpec((pl.Squeezed(), F, tm), lambda b, p: (b, 0, p)),
        ),
        compiler_params=pltpu.CompilerParams(
            dimension_semantics=("parallel", "parallel")),
        cost_estimate=cost,
    )(x, bff_t, w_in_s, w_in_c, b_in_t, w_hid_t, b_hid_t, w_out_t, b_out_t)

    # (B, F, HWp) -> drop pixel padding -> (B, F, H, W). No transpose needed.
    return out_flat[:, :, :HW].reshape(B, F, H, W)


def init_phase_mlp_params(key, num_input_channels, internal_dim, num_layers,
                          num_freqs, ff_scale=10.0):
    """Deterministic synthetic init matching the PyTorch module's shapes.
    GaussianFourierFeatureTransform: B ~ N(0,1) * scale, shape (C_in, num_freqs//2).
    ConLinear (is_first=False): weight ~ U(-sqrt(3/ch_in), sqrt(3/ch_in))."""
    D2 = internal_dim * 2
    ks = jax.random.split(key, 3 + num_layers)

    bff = jax.random.normal(ks[0], (num_input_channels, num_freqs // 2),
                            jnp.float32) * ff_scale

    def conlinear(k, ch_in, ch_out):
        kw, kb = jax.random.split(k)
        bound = math.sqrt(3.0 / ch_in)
        # store weight as (ch_in, ch_out) so the reference does x @ W
        w = jax.random.uniform(kw, (ch_in, ch_out), jnp.float32, -bound, bound)
        b = jax.random.uniform(kb, (1, ch_out), jnp.float32, -bound, bound)
        return w, b

    w_in, b_in = conlinear(ks[1], num_freqs, D2)
    w_hid_list, b_hid_list = [], []
    for l in range(num_layers):
        w, b = conlinear(ks[2 + l], D2, D2)
        w_hid_list.append(w)
        b_hid_list.append(b)
    w_hid = jnp.stack(w_hid_list)          # (num_layers, 2D, 2D)
    b_hid = jnp.stack(b_hid_list)          # (num_layers, 1, 2D)
    w_out, b_out = conlinear(ks[2 + num_layers], D2, num_freqs)

    return (bff, w_in, b_in, w_hid, b_hid, w_out, b_out)


def phase_mlp_reference(coords, params):
    """Pure-JAX reference of the same forward (for sanity check)."""
    bff, w_in, b_in, w_hid, b_hid, w_out, b_out = params
    B, C_in, H, W = coords.shape
    x = jnp.transpose(coords, (0, 2, 3, 1)).reshape(-1, C_in)
    proj = 2.0 * math.pi * (x @ bff)
    feat = jnp.concatenate([jnp.sin(proj), jnp.cos(proj)], axis=-1)
    h = _leaky_relu(feat @ w_in + b_in)
    for l in range(w_hid.shape[0]):
        h = _leaky_relu(h @ w_hid[l] + b_hid[l])
    out = h @ w_out + b_out
    F = w_out.shape[1]
    return jnp.transpose(out.reshape(B, H, W, F), (0, 3, 1, 2))


if __name__ == "__main__":
    # Small, module-consistent shapes.
    batch = 2
    num_input_channels = 2     # (x, y) coords
    internal_dim = 16
    num_layers = 2
    num_freqs = 32             # must be even (mult=2 for Gaussian FF)
    H = W = 32                 # 1024 pixels -> 2 pixel tiles of 512, grid (2, 2)

    key = jax.random.PRNGKey(0)
    k_params, k_coords = jax.random.split(key)

    params = init_phase_mlp_params(k_params, num_input_channels, internal_dim,
                                   num_layers, num_freqs)
    coords = jax.random.uniform(k_coords, (batch, num_input_channels, H, W),
                                jnp.float32, -1.0, 1.0)

    fwd = jax.jit(phase_mlp_forward)
    out = jax.block_until_ready(fwd(coords, params))

    ref = phase_mlp_reference(coords, params)
    assert out.shape == (batch, num_freqs, H, W), out.shape
    assert jnp.allclose(out, ref, atol=5e-4, rtol=5e-4), \
        float(jnp.max(jnp.abs(out - ref)))

    print("KERNEL_OK")
</pallas_src>

<mosaic_0001>
module attributes {stable_mosaic.version = 11 : i64} {
  func.func @phase_mlp_kernel(%arg0: i32, %arg1: i32, %arg2: memref<1x2x512xf32, #tpu.memory_space<vmem>>, %arg3: memref<16x2xf32, #tpu.memory_space<vmem>>, %arg4: memref<32x16xf32, #tpu.memory_space<vmem>>, %arg5: memref<32x16xf32, #tpu.memory_space<vmem>>, %arg6: memref<32x1xf32, #tpu.memory_space<vmem>>, %arg7: memref<2x32x32xf32, #tpu.memory_space<vmem>>, %arg8: memref<2x32x1xf32, #tpu.memory_space<vmem>>, %arg9: memref<32x32xf32, #tpu.memory_space<vmem>>, %arg10: memref<32x1xf32, #tpu.memory_space<vmem>>, %arg11: memref<1x32x512xf32, #tpu.memory_space<vmem>>) attributes {dimension_semantics = [#tpu.dimension_semantics<parallel>, #tpu.dimension_semantics<parallel>], iteration_bounds = array<i64: 2, 2>, scalar_prefetch = 0 : i64, scratch_operands = 0 : i64, tpu.core_type = #tpu.core_type<tc>, window_params = [{transform_indices = @transform_0, window_bounds = array<i64: 1, 2, 512>}, {pipeline_mode = #tpu.pipeline_mode<synchronous>, transform_indices = @transform_1, window_bounds = array<i64: 16, 2>}, {pipeline_mode = #tpu.pipeline_mode<synchronous>, transform_indices = @transform_2, window_bounds = array<i64: 32, 16>}, {pipeline_mode = #tpu.pipeline_mode<synchronous>, transform_indices = @transform_3, window_bounds = array<i64: 32, 16>}, {pipeline_mode = #tpu.pipeline_mode<synchronous>, transform_indices = @transform_4, window_bounds = array<i64: 32, 1>}, {pipeline_mode = #tpu.pipeline_mode<synchronous>, transform_indices = @transform_5, window_bounds = array<i64: 2, 32, 32>}, {pipeline_mode = #tpu.pipeline_mode<synchronous>, transform_indices = @transform_6, window_bounds = array<i64: 2, 32, 1>}, {pipeline_mode = #tpu.pipeline_mode<synchronous>, transform_indices = @transform_7, window_bounds = array<i64: 32, 32>}, {pipeline_mode = #tpu.pipeline_mode<synchronous>, transform_indices = @transform_8, window_bounds = array<i64: 32, 1>}, {transform_indices = @transform_9, window_bounds = array<i64: 1, 32, 512>}]} {
    %c0 = arith.constant 0 : index
    %c0_0 = arith.constant 0 : index
    %c0_1 = arith.constant 0 : index
    %0 = vector.load %arg2[%c0, %c0_0, %c0_1] : memref<1x2x512xf32, #tpu.memory_space<vmem>>, vector<1x2x512xf32>
    %1 = vector.shape_cast %0 : vector<1x2x512xf32> to vector<2x512xf32>
    %c0_2 = arith.constant 0 : index
    %c0_3 = arith.constant 0 : index
    %2 = vector.load %arg3[%c0_2, %c0_3] : memref<16x2xf32, #tpu.memory_space<vmem>>, vector<16x1xf32>
    %3 = vector.extract_strided_slice %1 {offsets = [0, 0], sizes = [1, 512], strides = [1, 1]} : vector<2x512xf32> to vector<1x512xf32>
    %4 = vector.broadcast %2 : vector<16x1xf32> to vector<16x512xf32>
    %5 = vector.broadcast %3 : vector<1x512xf32> to vector<16x512xf32>
    %6 = arith.mulf %4, %5 : vector<16x512xf32>
    %c0_4 = arith.constant 0 : index
    %c1 = arith.constant 1 : index
    %7 = vector.load %arg3[%c0_4, %c1] : memref<16x2xf32, #tpu.memory_space<vmem>>, vector<16x1xf32>
    %8 = vector.extract_strided_slice %1 {offsets = [1, 0], sizes = [1, 512], strides = [1, 1]} : vector<2x512xf32> to vector<1x512xf32>
    %9 = vector.broadcast %7 : vector<16x1xf32> to vector<16x512xf32>
    %10 = vector.broadcast %8 : vector<1x512xf32> to vector<16x512xf32>
    %11 = arith.mulf %9, %10 : vector<16x512xf32>
    %12 = arith.addf %6, %11 : vector<16x512xf32>
    %cst = arith.constant 6.28318548 : f32
    %13 = vector.broadcast %cst : f32 to vector<16x512xf32>
    %14 = arith.mulf %13, %12 : vector<16x512xf32>
    %15 = math.sin %14 : vector<16x512xf32>
    %16 = math.cos %14 : vector<16x512xf32>
    %c0_5 = arith.constant 0 : index
    %c0_6 = arith.constant 0 : index
    %17 = vector.load %arg4[%c0_5, %c0_6] : memref<32x16xf32, #tpu.memory_space<vmem>>, vector<32x16xf32>
    %cst_7 = arith.constant dense<0.000000e+00> : vector<32x512xf32>
    %18 = tpu.matmul %17, %15, %cst_7 {dimension_numbers = #tpu.dot_dimension_numbers<[1], [0], [0], [1], [0, 0, 1, 1], [], []>} : vector<32x16xf32>, vector<16x512xf32>, vector<32x512xf32> -> vector<32x512xf32>
    %c0_8 = arith.constant 0 : index
    %c0_9 = arith.constant 0 : index
    %19 = vector.load %arg5[%c0_8, %c0_9] : memref<32x16xf32, #tpu.memory_space<vmem>>, vector<32x16xf32>
    %cst_10 = arith.constant dense<0.000000e+00> : vector<32x512xf32>
    %20 = tpu.matmul %19, %16, %cst_10 {dimension_numbers = #tpu.dot_dimension_numbers<[1], [0], [0], [1], [0, 0, 1, 1], [], []>} : vector<32x16xf32>, vector<16x512xf32>, vector<32x512xf32> -> vector<32x512xf32>
    %21 = arith.addf %18, %20 : vector<32x512xf32>
    %c0_11 = arith.constant 0 : index
    %c0_12 = arith.constant 0 : index
    %22 = vector.load %arg6[%c0_11, %c0_12] : memref<32x1xf32, #tpu.memory_space<vmem>>, vector<32x1xf32>
    %23 = vector.broadcast %22 : vector<32x1xf32> to vector<32x512xf32>
    %24 = arith.addf %21, %23 : vector<32x512xf32>
    %cst_13 = arith.constant 0.000000e+00 : f32
    %25 = vector.broadcast %cst_13 : f32 to vector<32x512xf32>
    %26 = arith.cmpf ogt, %24, %25 : vector<32x512xf32>
    %cst_14 = arith.constant 0.00999999977 : f32
    %27 = vector.broadcast %cst_14 : f32 to vector<32x512xf32>
    %28 = arith.mulf %27, %24 : vector<32x512xf32>
    %29 = arith.select %26, %24, %28 : vector<32x512xi1>, vector<32x512xf32>
    %c0_15 = arith.constant 0 : index
    %c0_16 = arith.constant 0 : index
    %c0_17 = arith.constant 0 : index
    %30 = vector.load %arg7[%c0_15, %c0_16, %c0_17] : memref<2x32x32xf32, #tpu.memory_space<vmem>>, vector<1x32x32xf32>
    %31 = vector.shape_cast %30 : vector<1x32x32xf32> to vector<32x32xf32>
    %cst_18 = arith.constant dense<0.000000e+00> : vector<32x512xf32>
    %32 = tpu.matmul %31, %29, %cst_18 {dimension_numbers = #tpu.dot_dimension_numbers<[1], [0], [0], [1], [0, 0, 1, 1], [], []>} : vector<32x32xf32>, vector<32x512xf32>, vector<32x512xf32> -> vector<32x512xf32>
    %c0_19 = arith.constant 0 : index
    %c0_20 = arith.constant 0 : index
    %c0_21 = arith.constant 0 : index
    %33 = vector.load %arg8[%c0_19, %c0_20, %c0_21] : memref<2x32x1xf32, #tpu.memory_space<vmem>>, vector<1x32x1xf32>
    %34 = vector.shape_cast %33 : vector<1x32x1xf32> to vector<32x1xf32>
    %35 = vector.broadcast %34 : vector<32x1xf32> to vector<32x512xf32>
    %36 = arith.addf %32, %35 : vector<32x512xf32>
    %cst_22 = arith.constant 0.000000e+00 : f32
    %37 = vector.broadcast %cst_22 : f32 to vector<32x512xf32>
    %38 = arith.cmpf ogt, %36, %37 : vector<32x512xf32>
    %cst_23 = arith.constant 0.00999999977 : f32
    %39 = vector.broadcast %cst_23 : f32 to vector<32x512xf32>
    %40 = arith.mulf %39, %36 : vector<32x512xf32>
    %41 = arith.select %38, %36, %40 : vector<32x512xi1>, vector<32x512xf32>
    %c1_24 = arith.constant 1 : index
    %c0_25 = arith.constant 0 : index
    %c0_26 = arith.constant 0 : index
    %42 = vector.load %arg7[%c1_24, %c0_25, %c0_26] : memref<2x32x32xf32, #tpu.memory_space<vmem>>, vector<1x32x32xf32>
    %43 = vector.shape_cast %42 : vector<1x32x32xf32> to vector<32x32xf32>
    %cst_27 = arith.constant dense<0.000000e+00> : vector<32x512xf32>
    %44 = tpu.matmul %43, %41, %cst_27 {dimension_numbers = #tpu.dot_dimension_numbers<[1], [0], [0], [1], [0, 0, 1, 1], [], []>} : vector<32x32xf32>, vector<32x512xf32>, vector<32x512xf32> -> vector<32x512xf32>
    %c1_28 = arith.constant 1 : index
    %c0_29 = arith.constant 0 : index
    %c0_30 = arith.constant 0 : index
    %45 = vector.load %arg8[%c1_28, %c0_29, %c0_30] : memref<2x32x1xf32, #tpu.memory_space<vmem>>, vector<1x32x1xf32>
    %46 = vector.shape_cast %45 : vector<1x32x1xf32> to vector<32x1xf32>
    %47 = vector.broadcast %46 : vector<32x1xf32> to vector<32x512xf32>
    %48 = arith.addf %44, %47 : vector<32x512xf32>
    %cst_31 = arith.constant 0.000000e+00 : f32
    %49 = vector.broadcast %cst_31 : f32 to vector<32x512xf32>
    %50 = arith.cmpf ogt, %48, %49 : vector<32x512xf32>
    %cst_32 = arith.constant 0.00999999977 : f32
    %51 = vector.broadcast %cst_32 : f32 to vector<32x512xf32>
    %52 = arith.mulf %51, %48 : vector<32x512xf32>
    %53 = arith.select %50, %48, %52 : vector<32x512xi1>, vector<32x512xf32>
    %c0_33 = arith.constant 0 : index
    %c0_34 = arith.constant 0 : index
    %54 = vector.load %arg9[%c0_33, %c0_34] : memref<32x32xf32, #tpu.memory_space<vmem>>, vector<32x32xf32>
    %cst_35 = arith.constant dense<0.000000e+00> : vector<32x512xf32>
    %55 = tpu.matmul %54, %53, %cst_35 {dimension_numbers = #tpu.dot_dimension_numbers<[1], [0], [0], [1], [0, 0, 1, 1], [], []>} : vector<32x32xf32>, vector<32x512xf32>, vector<32x512xf32> -> vector<32x512xf32>
    %c0_36 = arith.constant 0 : index
    %c0_37 = arith.constant 0 : index
    %56 = vector.load %arg10[%c0_36, %c0_37] : memref<32x1xf32, #tpu.memory_space<vmem>>, vector<32x1xf32>
    %57 = vector.broadcast %56 : vector<32x1xf32> to vector<32x512xf32>
    %58 = arith.addf %55, %57 : vector<32x512xf32>
    %c0_38 = arith.constant 0 : index
    %c0_39 = arith.constant 0 : index
    %c0_40 = arith.constant 0 : index
    %59 = vector.load %arg11[%c0_38, %c0_39, %c0_40] : memref<1x32x512xf32, #tpu.memory_space<vmem>>, vector<1x32x512xf32>
    %60 = vector.shape_cast %59 : vector<1x32x512xf32> to vector<32x512xf32>
    %61 = vector.shape_cast %58 : vector<32x512xf32> to vector<1x32x512xf32>
    tpu.vector_store %arg11[%c0_38, %c0_39, %c0_40], %61 {strides = array<i32>} : memref<1x32x512xf32, #tpu.memory_space<vmem>>, vector<1x32x512xf32>,
    return
  }
  func.func @transform_0(%arg0: i32, %arg1: i32) -> (i32, i32, i32) {
    %c0_i32 = arith.constant 0 : i32
    %c0_i32_0 = arith.constant 0 : i32
    return %arg0, %c0_i32, %arg1 : i32, i32, i32
  }
  func.func @transform_1(%arg0: i32, %arg1: i32) -> (i32, i32) {
    %c0_i32 = arith.constant 0 : i32
    %c0_i32_0 = arith.constant 0 : i32
    %c0_i32_1 = arith.constant 0 : i32
    return %c0_i32, %c0_i32_0 : i32, i32
  }
  func.func @transform_2(%arg0: i32, %arg1: i32) -> (i32, i32) {
    %c0_i32 = arith.constant 0 : i32
    %c0_i32_0 = arith.constant 0 : i32
    %c0_i32_1 = arith.constant 0 : i32
    return %c0_i32, %c0_i32_0 : i32, i32
  }
  func.func @transform_3(%arg0: i32, %arg1: i32) -> (i32, i32) {
    %c0_i32 = arith.constant 0 : i32
    %c0_i32_0 = arith.constant 0 : i32
    %c0_i32_1 = arith.constant 0 : i32
    return %c0_i32, %c0_i32_0 : i32, i32
  }
  func.func @transform_4(%arg0: i32, %arg1: i32) -> (i32, i32) {
    %c0_i32 = arith.constant 0 : i32
    %c0_i32_0 = arith.constant 0 : i32
    %c0_i32_1 = arith.constant 0 : i32
    return %c0_i32, %c0_i32_0 : i32, i32
  }
  func.func @transform_5(%arg0: i32, %arg1: i32) -> (i32, i32, i32) {
    %c0_i32 = arith.constant 0 : i32
    %c0_i32_0 = arith.constant 0 : i32
    %c0_i32_1 = arith.constant 0 : i32
    %c0_i32_2 = arith.constant 0 : i32
    return %c0_i32, %c0_i32_0, %c0_i32_1 : i32, i32, i32
  }
  func.func @transform_6(%arg0: i32, %arg1: i32) -> (i32, i32, i32) {
    %c0_i32 = arith.constant 0 : i32
    %c0_i32_0 = arith.constant 0 : i32
    %c0_i32_1 = arith.constant 0 : i32
    %c0_i32_2 = arith.constant 0 : i32
    return %c0_i32, %c0_i32_0, %c0_i32_1 : i32, i32, i32
  }
  func.func @transform_7(%arg0: i32, %arg1: i32) -> (i32, i32) {
    %c0_i32 = arith.constant 0 : i32
    %c0_i32_0 = arith.constant 0 : i32
    %c0_i32_1 = arith.constant 0 : i32
    return %c0_i32, %c0_i32_0 : i32, i32
  }
  func.func @transform_8(%arg0: i32, %arg1: i32) -> (i32, i32) {
    %c0_i32 = arith.constant 0 : i32
    %c0_i32_0 = arith.constant 0 : i32
    %c0_i32_1 = arith.constant 0 : i32
    return %c0_i32, %c0_i32_0 : i32, i32
  }
  func.func @transform_9(%arg0: i32, %arg1: i32) -> (i32, i32, i32) {
    %c0_i32 = arith.constant 0 : i32
    %c0_i32_0 = arith.constant 0 : i32
    return %arg0, %c0_i32, %arg1 : i32, i32, i32
  }
}

</mosaic_0001>

<llo_original>
// kernel: phase_mlp_forward.1
$region0: #{phase_mlp_forward.1}
  #allocation0 [shape = 'u32[]', space=smem, size = 0x4, offset = 0x4, fixed_abs, tag = 'smem constant byte address 0x4 - core index']
  #allocation1 [shape = 'u32[144,128]{1,0:T(1,128)}', space=vmem, size = 0x12000, scoped, tag = 'internal scratch']
  %s0 = inlined_call_operand.vmem [shape: f32[2,2,1024], index: 0, kind: input, shape index: {}]
  %s1 = inlined_call_operand.vmem [shape: f32[16,2], index: 1, kind: input, shape index: {}]
  %s2 = inlined_call_operand.vmem [shape: f32[32,16], index: 2, kind: input, shape index: {}]
  %s3 = inlined_call_operand.vmem [shape: f32[32,16], index: 3, kind: input, shape index: {}]
  %s4 = inlined_call_operand.vmem [shape: f32[32,1], index: 4, kind: input, shape index: {}]
  %s5 = inlined_call_operand.vmem [shape: f32[2,32,32], index: 5, kind: input, shape index: {}]
  %s6 = inlined_call_operand.vmem [shape: f32[2,32,1], index: 6, kind: input, shape index: {}]
  %s7 = inlined_call_operand.vmem [shape: f32[32,32], index: 7, kind: input, shape index: {}]
  %s8 = inlined_call_operand.vmem [shape: f32[32,1], index: 8, kind: input, shape index: {}]
  %s9 = inlined_call_operand.vmem [shape: f32[2,32,1024], index: 9, kind: output, shape index: {}]
  %s10 = sld [smem:[#allocation0]]
  $region88: #{phase_mlp_forward.1} parent=0
    _
  %s12 = ssub.s32 1, %s10
  %s13 = scalar_select 0, %s12, %s10
  $region1: #{phase_mlp_forward.1} parent=0
    #allocation2 [shape = 'u8[131072]{0}', space=vmem, size = 0x20000, scoped, tag = 'output window, operand 0']
    loop: start=0, step=1, limit=6
    $region2: #{phase_mlp_forward.1} parent=1 // loop_pre_header
      _
    $region3: #{phase_mlp_forward.1} parent=1 // loop_header
      %s15 = sphi 0, %s19
      %p16 = scmp.ge.s32.totalorder %s15, 6
      %s22 = sphi 0, %s34
      %s23 = sphi 0, %s30
      %s24 = sphi 0, %s22
      %s25 = sphi 0, %s23
      %s26 = sphi 0, %s24
      %s27 = sphi 0, %s25
      %s39 = sphi 0, %s41
      %s42 = sphi 0, %s39
      %s43 = sphi 0, %s42
      %s59 = sphi 0, %s43
      %s63 = sphi 0, %s63
      %s65 = sphi 0, %s63
      %s66 = sphi 0, %s65
      %s80 = sphi 0, %s66
      %s84 = sphi 0, %s84
      %s86 = sphi 0, %s84
      %s87 = sphi 0, %s86
      %s101 = sphi 0, %s87
      %s105 = sphi 0, %s105
      %s107 = sphi 0, %s105
      %s108 = sphi 0, %s107
      %s122 = sphi 0, %s108
      %s126 = sphi 0, %s126
      %s128 = sphi 0, %s126
      %s129 = sphi 0, %s128
      %s143 = sphi 0, %s129
      %s147 = sphi 0, %s147
      %s149 = sphi 0, %s147
      %s150 = sphi 0, %s149
      %s164 = sphi 0, %s150
      %s168 = sphi 0, %s168
      %s170 = sphi 0, %s168
      %s171 = sphi 0, %s170
      %s185 = sphi 0, %s171
      %s189 = sphi 0, %s189
      %s191 = sphi 0, %s189
      %s192 = sphi 0, %s191
      %s206 = sphi 0, %s192
      %s210 = sphi 0, %s210
      %s212 = sphi 0, %s210
      %s213 = sphi 0, %s212
      %s227 = sphi 0, %s213
      %s235 = sphi 0, %s237
      %s238 = sphi 0, %s235
      %s239 = sphi 0, %s238
      %s255 = sphi 0, %s239
    $region4: #{phase_mlp_forward.1} parent=1 // loop_header_branch
      %18 = sbr.rel (%p16) target = $region8
    $region5: #{phase_mlp_forward.1} parent=1 // loop_body
      %s20 = ssub.s32 %s15, 1
      %s21 = ssub.s32 %s15, 2
      %s28 = sadd.s32 1, %s23
      %p29 = scmp.ge.s32.totalorder %s28, 2
      %s30 = scalar_select %p29, 0, %s28
      %s31 = sadd.s32 1, %s22
      %s32 = scalar_select %p29, %s31, %s22
      %p33 = scmp.ge.s32.totalorder %s32, 2
      %s34 = scalar_select %p33, 0, %s32
      %s35 = ssub.s32 %s22, %s34
      %s36 = ssub.s32 %s23, %s30
      %s37 = sor.u32 %s35, %s36
      %p38 = scmp.eq.s32.totalorder %s37, 0
      %s40 = sadd.s32 %s39, 1
      %s41 = scalar_select %p38, %s39, %s40
      %p44 = pneg %p38
      %p45 = scmp.eq.s32.totalorder %s15, 3
      %p46 = por %p44, %p45
      %p47 = scmp.ne.s32.totalorder %s39, %s42
      %p48 = scmp.eq.s32.totalorder %s15, 0
      %p49 = por %p47, %p48
      %p50 = scmp.ne.s32.totalorder %s39, %s42
      %p51 = scmp.eq.s32.totalorder %s20, 3
      %p52 = por %p50, %p51
      %p53 = scmp.ne.s32.totalorder %s42, %s43
      %p54 = scmp.eq.s32.totalorder %s20, 0
      %p55 = por %p53, %p54
      %p56 = scmp.ne.s32.totalorder %s42, %s43
      %p57 = scmp.eq.s32.totalorder %s21, 3
      %p58 = por %p56, %p57
      %p60 = scmp.ne.s32.totalorder %s43, %s59
      %p61 = scmp.eq.s32.totalorder %s21, 0
      %p62 = por %p60, %p61
      %s64 = sadd.s32 %s63, 1
      %p67 = scmp.eq.s32.totalorder %s15, 3
      %p68 = scmp.ne.s32.totalorder %s63, %s65
      %p69 = scmp.eq.s32.totalorder %s15, 0
      %p70 = por %p68, %p69
      %p71 = scmp.ne.s32.totalorder %s63, %s65
      %p72 = scmp.eq.s32.totalorder %s20, 3
      %p73 = por %p71, %p72
      %p74 = scmp.ne.s32.totalorder %s65, %s66
      %p75 = scmp.eq.s32.totalorder %s20, 0
      %p76 = por %p74, %p75
      %p77 = scmp.ne.s32.totalorder %s65, %s66
      %p78 = scmp.eq.s32.totalorder %s21, 3
      %p79 = por %p77, %p78
      %p81 = scmp.ne.s32.totalorder %s66, %s80
      %p82 = scmp.eq.s32.totalorder %s21, 0
      %p83 = por %p81, %p82
      %s85 = sadd.s32 %s84, 1
      %p88 = scmp.eq.s32.totalorder %s15, 3
      %p89 = scmp.ne.s32.totalorder %s84, %s86
      %p90 = scmp.eq.s32.totalorder %s15, 0
      %p91 = por %p89, %p90
      %p92 = scmp.ne.s32.totalorder %s84, %s86
      %p93 = scmp.eq.s32.totalorder %s20, 3
      %p94 = por %p92, %p93
      %p95 = scmp.ne.s32.totalorder %s86, %s87
      %p96 = scmp.eq.s32.totalorder %s20, 0
      %p97 = por %p95, %p96
      %p98 = scmp.ne.s32.totalorder %s86, %s87
      %p99 = scmp.eq.s32.totalorder %s21, 3
      %p100 = por %p98, %p99
      %p102 = scmp.ne.s32.totalorder %s87, %s101
      %p103 = scmp.eq.s32.totalorder %s21, 0
      %p104 = por %p102, %p103
      %s106 = sadd.s32 %s105, 1
      %p109 = scmp.eq.s32.totalorder %s15, 3
      %p110 = scmp.ne.s32.totalorder %s105, %s107
      %p111 = scmp.eq.s32.totalorder %s15, 0
      %p112 = por %p110, %p111
      %p113 = scmp.ne.s32.totalorder %s105, %s107
      %p114 = scmp.eq.s32.totalorder %s20, 3
      %p115 = por %p113, %p114
      %p116 = scmp.ne.s32.totalorder %s107, %s108
      %p117 = scmp.eq.s32.totalorder %s20, 0
      %p118 = por %p116, %p117
      %p119 = scmp.ne.s32.totalorder %s107, %s108
      %p120 = scmp.eq.s32.totalorder %s21, 3
      %p121 = por %p119, %p120
      %p123 = scmp.ne.s32.totalorder %s108, %s122
      %p124 = scmp.eq.s32.totalorder %s21, 0
      %p125 = por %p123, %p124
      %s127 = sadd.s32 %s126, 1
      %p130 = scmp.eq.s32.totalorder %s15, 3
      %p131 = scmp.ne.s32.totalorder %s126, %s128
      %p132 = scmp.eq.s32.totalorder %s15, 0
      %p133 = por %p131, %p132
      %p134 = scmp.ne.s32.totalorder %s126, %s128
      %p135 = scmp.eq.s32.totalorder %s20, 3
      %p136 = por %p134, %p135
      %p137 = scmp.ne.s32.totalorder %s128, %s129
      %p138 = scmp.eq.s32.totalorder %s20, 0
      %p139 = por %p137, %p138
      %p140 = scmp.ne.s32.totalorder %s128, %s129
      %p141 = scmp.eq.s32.totalorder %s21, 3
      %p142 = por %p140, %p141
      %p144 = scmp.ne.s32.totalorder %s129, %s143
      %p145 = scmp.eq.s32.totalorder %s21, 0
      %p146 = por %p144, %p145
      %s148 = sadd.s32 %s147, 1
      %p151 = scmp.eq.s32.totalorder %s15, 3
      %p152 = scmp.ne.s32.totalorder %s147, %s149
      %p153 = scmp.eq.s32.totalorder %s15, 0
      %p154 = por %p152, %p153
      %p155 = scmp.ne.s32.totalorder %s147, %s149
      %p156 = scmp.eq.s32.totalorder %s20, 3
      %p157 = por %p155, %p156
      %p158 = scmp.ne.s32.totalorder %s149, %s150
      %p159 = scmp.eq.s32.totalorder %s20, 0
      %p160 = por %p158, %p159
      %p161 = scmp.ne.s32.totalorder %s149, %s150
      %p162 = scmp.eq.s32.totalorder %s21, 3
      %p163 = por %p161, %p162
      %p165 = scmp.ne.s32.totalorder %s150, %s164
      %p166 = scmp.eq.s32.totalorder %s21, 0
      %p167 = por %p165, %p166
      %s169 = sadd.s32 %s168, 1
      %p172 = scmp.eq.s32.totalorder %s15, 3
      %p173 = scmp.ne.s32.totalorder %s168, %s170
      %p174 = scmp.eq.s32.totalorder %s15, 0
      %p175 = por %p173, %p174
      %p176 = scmp.ne.s32.totalorder %s168, %s170
      %p177 = scmp.eq.s32.totalorder %s20, 3
      %p178 = por %p176, %p177
      %p179 = scmp.ne.s32.totalorder %s170, %s171
      %p180 = scmp.eq.s32.totalorder %s20, 0
      %p181 = por %p179, %p180
      %p182 = scmp.ne.s32.totalorder %s170, %s171
      %p183 = scmp.eq.s32.totalorder %s21, 3
      %p184 = por %p182, %p183
      %p186 = scmp.ne.s32.totalorder %s171, %s185
      %p187 = scmp.eq.s32.totalorder %s21, 0
      %p188 = por %p186, %p187
      %s190 = sadd.s32 %s189, 1
      %p193 = scmp.eq.s32.totalorder %s15, 3
      %p194 = scmp.ne.s32.totalorder %s189, %s191
      %p195 = scmp.eq.s32.totalorder %s15, 0
      %p196 = por %p194, %p195
      %p197 = scmp.ne.s32.totalorder %s189, %s191
      %p198 = scmp.eq.s32.totalorder %s20, 3
      %p199 = por %p197, %p198
      %p200 = scmp.ne.s32.totalorder %s191, %s192
      %p201 = scmp.eq.s32.totalorder %s20, 0
      %p202 = por %p200, %p201
      %p203 = scmp.ne.s32.totalorder %s191, %s192
      %p204 = scmp.eq.s32.totalorder %s21, 3
      %p205 = por %p203, %p204
      %p207 = scmp.ne.s32.totalorder %s192, %s206
      %p208 = scmp.eq.s32.totalorder %s21, 0
      %p209 = por %p207, %p208
      %s211 = sadd.s32 %s210, 1
      %p214 = scmp.eq.s32.totalorder %s15, 3
      %p215 = scmp.ne.s32.totalorder %s210, %s212
      %p216 = scmp.eq.s32.totalorder %s15, 0
      %p217 = por %p215, %p216
      %p218 = scmp.ne.s32.totalorder %s210, %s212
      %p219 = scmp.eq.s32.totalorder %s20, 3
      %p220 = por %p218, %p219
      %p221 = scmp.ne.s32.totalorder %s212, %s213
      %p222 = scmp.eq.s32.totalorder %s20, 0
      %p223 = por %p221, %p222
      %p224 = scmp.ne.s32.totalorder %s212, %s213
      %p225 = scmp.eq.s32.totalorder %s21, 3
      %p226 = por %p224, %p225
      %p228 = scmp.ne.s32.totalorder %s213, %s227
      %p229 = scmp.eq.s32.totalorder %s21, 0
      %p230 = por %p228, %p229
      %s231 = ssub.s32 %s22, %s34
      %s232 = ssub.s32 %s23, %s30
      %s233 = sor.u32 %s231, %s232
      %p234 = scmp.eq.s32.totalorder %s233, 0
      %s236 = sadd.s32 %s235, 1
      %s237 = scalar_select %p234, %s235, %s236
      %p240 = pneg %p234
      %p241 = scmp.eq.s32.totalorder %s15, 3
      %p242 = por %p240, %p241
      %p243 = scmp.ne.s32.totalorder %s235, %s238
      %p244 = scmp.eq.s32.totalorder %s15, 0
      %p245 = por %p243, %p244
      %p246 = scmp.ne.s32.totalorder %s235, %s238
      %p247 = scmp.eq.s32.totalorder %s20, 3
      %p248 = por %p246, %p247
      %p249 = scmp.ne.s32.totalorder %s238, %s239
      %p250 = scmp.eq.s32.totalorder %s20, 0
      %p251 = por %p249, %p250
      %p252 = scmp.ne.s32.totalorder %s238, %s239
      %p253 = scmp.eq.s32.totalorder %s21, 3
      %p254 = por %p252, %p253
      %p256 = scmp.ne.s32.totalorder %s239, %s255
      %p257 = scmp.eq.s32.totalorder %s21, 0
      %p258 = por %p256, %p257
      %p259 = scmp.le.s32.totalorder 1, %s15
      %p260 = scmp.lt.s32.totalorder %s15, 5
      %p261 = pnand %p259, %p260
      %p262 = pneg %p261
      // Predicated region
      $region9: #{phase_mlp_forward.1} parent=5 // pred_check
        _
      $region10: #{phase_mlp_forward.1} parent=5 // pred_check_branch
        %264 = sbr.rel (%p261) target = $region12
      $region11: #{phase_mlp_forward.1} parent=5 // pred_region
        %s265 = ssub.s32 %s15, 1
        // Predicated region
        $region13: #{phase_mlp_forward.1} parent=11 // pred_check
          %p266 = pneg %p76
        $region14: #{phase_mlp_forward.1} parent=11 // pred_check_branch
          %268 = sbr.rel (%p266) target = $region16
        $region15: #{phase_mlp_forward.1} parent=11 // pred_region
          _
        $region16: #{phase_mlp_forward.1} parent=11 // pred_fallthru
          _
        // Predicated region
        $region17: #{phase_mlp_forward.1} parent=11 // pred_check
          %p269 = pneg %p97
        $region18: #{phase_mlp_forward.1} parent=11 // pred_check_branch
          %271 = sbr.rel (%p269) target = $region20
        $region19: #{phase_mlp_forward.1} parent=11 // pred_region
          _
        $region20: #{phase_mlp_forward.1} parent=11 // pred_fallthru
          _
        // Predicated region
        $region21: #{phase_mlp_forward.1} parent=11 // pred_check
          %p272 = pneg %p118
        $region22: #{phase_mlp_forward.1} parent=11 // pred_check_branch
          %274 = sbr.rel (%p272) target = $region24
        $region23: #{phase_mlp_forward.1} parent=11 // pred_region
          _
        $region24: #{phase_mlp_forward.1} parent=11 // pred_fallthru
          _
        // Predicated region
        $region25: #{phase_mlp_forward.1} parent=11 // pred_check
          %p275 = pneg %p139
        $region26: #{phase_mlp_forward.1} parent=11 // pred_check_branch
          %277 = sbr.rel (%p275) target = $region28
        $region27: #{phase_mlp_forward.1} parent=11 // pred_region
          _
        $region28: #{phase_mlp_forward.1} parent=11 // pred_fallthru
          _
        // Predicated region
        $region29: #{phase_mlp_forward.1} parent=11 // pred_check
          %p278 = pneg %p160
        $region30: #{phase_mlp_forward.1} parent=11 // pred_check_branch
          %280 = sbr.rel (%p278) target = $region32
        $region31: #{phase_mlp_forward.1} parent=11 // pred_region
          _
        $region32: #{phase_mlp_forward.1} parent=11 // pred_fallthru
          _
        // Predicated region
        $region33: #{phase_mlp_forward.1} parent=11 // pred_check
          %p281 = pneg %p181
        $region34: #{phase_mlp_forward.1} parent=11 // pred_check_branch
          %283 = sbr.rel (%p281) target = $region36
        $region35: #{phase_mlp_forward.1} parent=11 // pred_region
          _
        $region36: #{phase_mlp_forward.1} parent=11 // pred_fallthru
          _
        // Predicated region
        $region37: #{phase_mlp_forward.1} parent=11 // pred_check
          %p284 = pneg %p202
        $region38: #{phase_mlp_forward.1} parent=11 // pred_check_branch
          %286 = sbr.rel (%p284) target = $region40
        $region39: #{phase_mlp_forward.1} parent=11 // pred_region
          _
        $region40: #{phase_mlp_forward.1} parent=11 // pred_fallthru
          _
        // Predicated region
        $region41: #{phase_mlp_forward.1} parent=11 // pred_check
          %p287 = pneg %p223
        $region42: #{phase_mlp_forward.1} parent=11 // pred_check_branch
          %289 = sbr.rel (%p287) target = $region44
        $region43: #{phase_mlp_forward.1} parent=11 // pred_region
          _
        $region44: #{phase_mlp_forward.1} parent=11 // pred_fallthru
          _
      $region12: #{phase_mlp_forward.1} parent=5 // pred_fallthru
        _
      %p290 = scmp.lt.s32.totalorder %s15, 4
      // Predicated region
      $region45: #{phase_mlp_forward.1} parent=5 // pred_check
        %p291 = pneg %p290
      $region46: #{phase_mlp_forward.1} parent=5 // pred_check_branch
        %293 = sbr.rel (%p291) target = $region48
      $region47: #{phase_mlp_forward.1} parent=5 // pred_region
        // Predicated region
        $region49: #{phase_mlp_forward.1} parent=47 // pred_check
          %p294 = pneg %p49
        $region50: #{phase_mlp_forward.1} parent=47 // pred_check_branch
          %296 = sbr.rel (%p294) target = $region52
        $region51: #{phase_mlp_forward.1} parent=47 // pred_region
          %s297 = smul.u32 4, %s23
          %p298 = scmp.lt.s32.totalorder %s22, 1
          %s299 = scalar_select %p298, %s22, 1
          %p300 = scmp.lt.s32.totalorder %s297, 7
          %s301 = scalar_select %p300, %s297, 7
          %s302 = smul.addr %s299, 8
          %s303 = sadd.s32 %s301, %s302
          %s304 = smul.addr %s303, 2
          %s305 = scalar_lea.vmem %s0, %s304
          %s306 = smul.u32 4, %s23
        $region52: #{phase_mlp_forward.1} parent=47 // pred_fallthru
          _
      $region48: #{phase_mlp_forward.1} parent=5 // pred_fallthru
        _
      %p307 = scmp.le.s32.totalorder 1, %s15
      %p308 = scmp.lt.s32.totalorder %s15, 5
      %p309 = pnand %p307, %p308
      %p310 = pneg %p309
      // Predicated region
      $region53: #{phase_mlp_forward.1} parent=5 // pred_check
        _
      $region54: #{phase_mlp_forward.1} parent=5 // pred_check_branch
        %312 = sbr.rel (%p309) target = $region56
      $region55: #{phase_mlp_forward.1} parent=5 // pred_region
        %s313 = ssub.s32 %s15, 1
        %s314 = smul.u32 4, %s25
        %p315 = scmp.lt.s32.totalorder %s24, 1
        %s316 = scalar_select %p315, %s24, 1
        %p317 = scmp.lt.s32.totalorder %s314, 7
        %s318 = scalar_select %p317, %s314, 7
        %s319 = smul.addr %s316, 8
        %s320 = sadd.s32 %s318, %s319
        %s321 = smul.addr %s320, 2
        %s322 = scalar_lea.vmem %s0, %s321
        %p323 = pneg %p55
        %p324 = pneg %p52
        %p325 = pneg %p76
        %p326 = pneg %p73
        %p327 = pneg %p97
        %p328 = pneg %p94
        %p329 = pneg %p118
        %p330 = pneg %p115
        %p331 = pneg %p139
        %p332 = pneg %p136
        %p333 = pneg %p160
        %p334 = pneg %p157
        %p335 = pneg %p181
        %p336 = pneg %p178
        %p337 = pneg %p202
        %p338 = pneg %p199
        %p339 = pneg %p223
        %p340 = pneg %p220
        %p341 = pneg %p251
        %p342 = pneg %p248
        %s343 = sand.u32 %s238, 1
        %s344 = sand.u32 %s238, 1
        %s345 = smul.addr %s344, 128
        %s346 = scalar_lea.vmem [#allocation2], %s345
        %s347 = smul.u32 4, %s25
        %p348 = scmp.lt.s32.totalorder %s24, 1
        %s349 = scalar_select %p348, %s24, 1
        %p350 = scmp.lt.s32.totalorder %s347, 7
        %s351 = scalar_select %p350, %s347, 7
        %s352 = smul.addr %s349, 8
        %s353 = sadd.s32 %s351, %s352
        %s354 = smul.addr %s353, 2
        %s355 = scalar_lea.vmem %s0, %s354
        %s356 = smul.u32 4, %s25
        %s357 = smul.u32 4, %s25
        %v358 = vld [vmem:[%s355] sm:$0xff]
        %v359 = vld [vmem:[%s1] sm:$0xff]
        %v360 = vld [vmem:[%s1 + $0x8] sm:$0xff]
        %362 = vset.pattern.permute.xlu0 0
        %363 = vperm.xlu0 %362, %v359
        %v364 = vpop.permute.xlu0 %363
        %367 = vset.pattern.permute.xlu0 0
        %368 = vperm.xlu0 %367, %v360
        %v369 = vpop.permute.xlu0 %368
        %v372 = vlaneseq
        %v373 = vshrl.u32 %v372, 7
        %v374 = vsub.s32 0, %v373
        %v375 = vrot.slane %v358, %v374
        %v376 = vlaneseq
        %v377 = vshrl.u32 %v376, 7
        %v378 = vsub.s32 2, %v377
        %v379 = vrot.slane %v358, %v378
        %v380 = vlaneseq
        %v381 = vshrl.u32 %v380, 7
        %v382 = vsub.s32 4, %v381
        %v383 = vrot.slane %v358, %v382
        %v384 = vlaneseq
        %v385 = vshrl.u32 %v384, 7
        %v386 = vsub.s32 6, %v385
        %v387 = vrot.slane %v358, %v386
        %v392 = vlaneseq
        %v393 = vshrl.u32 %v392, 7
        %v394 = vsub.s32 0, %v393
        %v395 = vrot.slane %v375, %v394
        %v396 = vlaneseq
        %v397 = vshrl.u32 %v396, 7
        %v398 = vsub.s32 0, %v397
        %v399 = vrot.slane %v379, %v398
        %v400 = vlaneseq
        %v401 = vshrl.u32 %v400, 7
        %v402 = vsub.s32 0, %v401
        %v403 = vrot.slane %v383, %v402
        %v404 = vlaneseq
        %v405 = vshrl.u32 %v404, 7
        %v406 = vsub.s32 0, %v405
        %v407 = vrot.slane %v387, %v406
        %v408 = vmul.f32 %v364, %v395
        %v409 = vmul.f32 %v364, %v399
        %v410 = vmul.f32 %v364, %v403
        %v411 = vmul.f32 %v364, %v407
        %v412 = vmul.f32 %v369, %v395
        %v413 = vmul.f32 %v369, %v399
        %v414 = vmul.f32 %v369, %v403
        %v415 = vmul.f32 %v369, %v407
        %416 = vset.pattern.permute.xlu0 1
        %417 = vperm.xlu0 %416, %v359
        %v418 = vpop.permute.xlu0 %417
        %420 = vset.pattern.permute.xlu0 1
        %421 = vperm.xlu0 %420, %v360
        %v422 = vpop.permute.xlu0 %421
        %v424 = vlaneseq
        %v425 = vshrl.u32 %v424, 7
        %v426 = vsub.s32 1, %v425
        %v427 = vrot.slane %v358, %v426
        %v428 = vlaneseq
        %v429 = vshrl.u32 %v428, 7
        %v430 = vsub.s32 3, %v429
        %v431 = vrot.slane %v358, %v430
        %v432 = vlaneseq
        %v433 = vshrl.u32 %v432, 7
        %v434 = vsub.s32 5, %v433
        %v435 = vrot.slane %v358, %v434
        %v436 = vlaneseq
        %v437 = vshrl.u32 %v436, 7
        %v438 = vsub.s32 7, %v437
        %v439 = vrot.slane %v358, %v438
        %v444 = vlaneseq
        %v445 = vshrl.u32 %v444, 7
        %v446 = vsub.s32 1, %v445
        %v447 = vrot.slane %v427, %v446
        %v448 = vlaneseq
        %v449 = vshrl.u32 %v448, 7
        %v450 = vsub.s32 1, %v449
        %v451 = vrot.slane %v431, %v450
        %v452 = vlaneseq
        %v453 = vshrl.u32 %v452, 7
        %v454 = vsub.s32 1, %v453
        %v455 = vrot.slane %v435, %v454
        %v456 = vlaneseq
        %v457 = vshrl.u32 %v456, 7
        %v458 = vsub.s32 1, %v457
        %v459 = vrot.slane %v439, %v458
        %v460 = vmul.f32 %v418, %v447
        %v461 = vmul.f32 %v418, %v451
        %v462 = vmul.f32 %v418, %v455
        %v463 = vmul.f32 %v418, %v459
        %v464 = vmul.f32 %v422, %v447
        %v465 = vmul.f32 %v422, %v451
        %v466 = vmul.f32 %v422, %v455
        %v467 = vmul.f32 %v422, %v459
        %v468 = vadd.f32 %v408, %v460
        %v469 = vadd.f32 %v409, %v461
        %v470 = vadd.f32 %v410, %v462
        %v471 = vadd.f32 %v411, %v463
        %v472 = vadd.f32 %v412, %v464
        %v473 = vadd.f32 %v413, %v465
        %v474 = vadd.f32 %v414, %v466
        %v475 = vadd.f32 %v415, %v467
        %v476 = vmul.f32 %v468, 6.2831855
        %v477 = vmul.f32 %v469, 6.2831855
        %v478 = vmul.f32 %v470, 6.2831855
        %v479 = vmul.f32 %v471, 6.2831855
        %v480 = vmul.f32 %v472, 6.2831855
        %v481 = vmul.f32 %v473, 6.2831855
        %v482 = vmul.f32 %v474, 6.2831855
        %v483 = vmul.f32 %v475, 6.2831855
        %v484 = vand.u32 2147483647, %v476
        %vm485 = vcmp.le.f32.partialorder %v484, 0.7853982
        %vm486 = vcmp.lt.s32.totalorder %v476, 0
        %v487 = vand.u32 %v476, 2139095040
        %v488 = vshrl.u32 %v487, 23
        %v489 = vsub.s32 %v488, 127
        %v490 = vand.u32 2147483647, %v476
        %v491 = vand.u32 %v490, 8388607
        %v492 = vor.u32 %v491, 8388608
        %v493 = vsub.s32 0, %v492
        %v494 = vadd.s32 %v489, 1
        %vm495 = vcmp.gt.s32.totalorder %v494, 0
        %v496 = vsel %vm495, %v494, 0
        %v497 = vshrl.u32 %v496, 5
        %v498 = vand.u32 %v496, 31
        %v499 = vsub.s32 32, %v498
        %v500 = vshrl.u32 683565275, %v499
        %v501 = vshll.u32 683565275, %v498
        %v502 = vshrl.u32 2475754826, %v499
        %v503 = vor.u32 %v501, %v502
        %v504 = vshll.u32 2475754826, %v498
        %v505 = vshrl.u32 2131351028, %v499
        %v506 = vor.u32 %v504, %v505
        %v507 = vshll.u32 2131351028, %v498
        %v508 = vshrl.u32 2102212464, %v499
        %v509 = vor.u32 %v507, %v508
        %v510 = vshll.u32 2102212464, %v498
        %v511 = vshrl.u32 920167782, %v499
        %v512 = vor.u32 %v510, %v511
        %v513 = vshll.u32 920167782, %v498
        %v514 = vshrl.u32 1326507024, %v499
        %v515 = vor.u32 %v513, %v514
        %vm516 = vcmp.lt.s32.totalorder %v497, 1
        %vm517 = vcmp.lt.s32.totalorder %v497, 2
        %vm518 = vcmp.lt.s32.totalorder %v497, 3
        %vm519 = vcmp.lt.s32.totalorder %v497, 4
        %v520 = vsel %vm516, %v500, %v503
        %v521 = vsel %vm519, %v509, 2102212464
        %v522 = vsel %vm518, %v506, %v521
        %v523 = vsel %vm517, %v520, %v522
        %v524 = vsel %vm516, %v503, %v506
        %v525 = vsel %vm519, %v512, 920167782
        %v526 = vsel %vm518, %v509, %v525
        %v527 = vsel %vm517, %v524, %v526
        %v528 = vsel %vm516, %v506, %v509
        %v529 = vsel %vm519, %v515, 1326507024
        %v530 = vsel %vm518, %v512, %v529
        %v531 = vsel %vm517, %v528, %v530
        %v532 = vshll.u32 %v492, 8
        %v533 = vmul.u32.u64.compose %v532, %v531
        %v534 = vextract.low.u32 %v533
        %v535 = vextract.high.u32 %v533
        %v536 = vmul.u32.u64.compose %v532, %v527
        %v537 = vextract.low.u32 %v536
        %v538 = vextract.high.u32 %v536
        %v539 = vmul.u32 %v532, %v523
        %v540 = vadd.s32 %v535, %v537
        %vm541 = vc.u32 %v535, %v537
        %v542 = vadd.s32 %v538, 1
        %v543 = vsel %vm541, %v542, %v538
        %v544 = vadd.s32 %v539, %v543
        %v545 = vadd.s32 %v544, 536870912
        %v546 = vshrl.u32 %v545, 30
        %v547 = vshll.u32 %v546, 30
        %v548 = vsub.s32 %v544, %v547
        %vm549 = vcmp.lt.s32.totalorder %v548, 0
        %v550 = vsub.s32 0, %v548
        %v551 = vsel %vm549, %v550, %v548
        %v552 = vclz %v551
        %v553 = vsub.s32 %v552, 2
        %vm554 = vcmp.gt.s32.totalorder 0, %v553
        %v555 = vsel %vm554, 0, %v553
        %v556 = vsub.s32 32, %v555
        %v557 = vshll.u32 %v548, %v555
        %v558 = vshrl.u32 %v540, %v556
        %v559 = vor.u32 %v557, %v558
        %v560 = vsub.s32 4294967266, %v555
        %v561 = vadd.s32 %v560, 127
        %v562 = vshll.u32 %v561, 23
        %v563 = vor.u32 4788187, %v562
        %v564 = vand.u32 2147483647, %v563
        %v566 = vcvt.s32.f32 %v559
        %v567 = vmul.f32 %v566, %v564
        %v568 = vxor.u32 %v567, 2147483648
        %v569 = vsel %vm486, %v568, %v567
        %v570 = vsub.s32 4, %v546
        %v571 = vsel %vm486, %v570, %v546
        %v572 = vsel %vm485, %v476, %v569
        %v573 = vsel %vm485, 0, %v571
        %v574 = vcosq.f32.pop %v572
        %v575 = vsinq.f32.pop %v572
        %vm576 = vweird.f32 %v476
        %v577 = vadd.s32 %v573, 3
        %v578 = vand.u32 %v577, 3
        %vm579 = vcmp.lt.s32.totalorder %v578, 2
        %vm580 = vcmp.eq.s32.totalorder %v578, 0
        %v581 = vxor.u32 %v575, 2147483648
        %v582 = vsel %vm580, %v574, %v581
        %vm583 = vcmp.eq.s32.totalorder %v578, 2
        %v584 = vxor.u32 %v574, 2147483648
        %v585 = vsel %vm583, %v584, %v575
        %v586 = vsel %vm579, %v582, %v585
        %v587 = vsel %vm576, nan, %v586
        %v588 = vand.u32 2147483647, %v477
        %vm589 = vcmp.le.f32.partialorder %v588, 0.7853982
        %vm590 = vcmp.lt.s32.totalorder %v477, 0
        %v591 = vand.u32 %v477, 2139095040
        %v592 = vshrl.u32 %v591, 23
        %v593 = vsub.s32 %v592, 127
        %v594 = vand.u32 2147483647, %v477
        %v595 = vand.u32 %v594, 8388607
        %v596 = vor.u32 %v595, 8388608
        %v597 = vsub.s32 0, %v596
        %v598 = vadd.s32 %v593, 1
        %vm599 = vcmp.gt.s32.totalorder %v598, 0
        %v600 = vsel %vm599, %v598, 0
        %v601 = vshrl.u32 %v600, 5
        %v602 = vand.u32 %v600, 31
        %v603 = vsub.s32 32, %v602
        %v604 = vshrl.u32 683565275, %v603
        %v605 = vshll.u32 683565275, %v602
        %v606 = vshrl.u32 2475754826, %v603
        %v607 = vor.u32 %v605, %v606
        %v608 = vshll.u32 2475754826, %v602
        %v609 = vshrl.u32 2131351028, %v603
        %v610 = vor.u32 %v608, %v609
        %v611 = vshll.u32 2131351028, %v602
        %v612 = vshrl.u32 2102212464, %v603
        %v613 = vor.u32 %v611, %v612
        %v614 = vshll.u32 2102212464, %v602
        %v615 = vshrl.u32 920167782, %v603
        %v616 = vor.u32 %v614, %v615
        %v617 = vshll.u32 920167782, %v602
        %v618 = vshrl.u32 1326507024, %v603
        %v619 = vor.u32 %v617, %v618
        %vm620 = vcmp.lt.s32.totalorder %v601, 1
        %vm621 = vcmp.lt.s32.totalorder %v601, 2
        %vm622 = vcmp.lt.s32.totalorder %v601, 3
        %vm623 = vcmp.lt.s32.totalorder %v601, 4
        %v624 = vsel %vm620, %v604, %v607
        %v625 = vsel %vm623, %v613, 2102212464
        %v626 = vsel %vm622, %v610, %v625
        %v627 = vsel %vm621, %v624, %v626
        %v628 = vsel %vm620, %v607, %v610
        %v629 = vsel %vm623, %v616, 920167782
        %v630 = vsel %vm622, %v613, %v629
        %v631 = vsel %vm621, %v628, %v630
        %v632 = vsel %vm620, %v610, %v613
        %v633 = vsel %vm623, %v619, 1326507024
        %v634 = vsel %vm622, %v616, %v633
        %v635 = vsel %vm621, %v632, %v634
        %v636 = vshll.u32 %v596, 8
        %v637 = vmul.u32.u64.compose %v636, %v635
        %v638 = vextract.low.u32 %v637
        %v639 = vextract.high.u32 %v637
        %v640 = vmul.u32.u64.compose %v636, %v631
        %v641 = vextract.low.u32 %v640
        %v642 = vextract.high.u32 %v640
        %v643 = vmul.u32 %v636, %v627
        %v644 = vadd.s32 %v639, %v641
        %vm645 = vc.u32 %v639, %v641
        %v646 = vadd.s32 %v642, 1
        %v647 = vsel %vm645, %v646, %v642
        %v648 = vadd.s32 %v643, %v647
        %v649 = vadd.s32 %v648, 536870912
        %v650 = vshrl.u32 %v649, 30
        %v651 = vshll.u32 %v650, 30
        %v652 = vsub.s32 %v648, %v651
        %vm653 = vcmp.lt.s32.totalorder %v652, 0
        %v654 = vsub.s32 0, %v652
        %v655 = vsel %vm653, %v654, %v652
        %v656 = vclz %v655
        %v657 = vsub.s32 %v656, 2
        %vm658 = vcmp.gt.s32.totalorder 0, %v657
        %v659 = vsel %vm658, 0, %v657
        %v660 = vsub.s32 32, %v659
        %v661 = vshll.u32 %v652, %v659
        %v662 = vshrl.u32 %v644, %v660
        %v663 = vor.u32 %v661, %v662
        %v664 = vsub.s32 4294967266, %v659
        %v665 = vadd.s32 %v664, 127
        %v666 = vshll.u32 %v665, 23
        %v667 = vor.u32 4788187, %v666
        %v668 = vand.u32 2147483647, %v667
        %v670 = vcvt.s32.f32 %v663
        %v671 = vmul.f32 %v670, %v668
        %v672 = vxor.u32 %v671, 2147483648
        %v673 = vsel %vm590, %v672, %v671
        %v674 = vsub.s32 4, %v650
        %v675 = vsel %vm590, %v674, %v650
        %v676 = vsel %vm589, %v477, %v673
        %v677 = vsel %vm589, 0, %v675
        %v678 = vcosq.f32.pop %v676
        %v679 = vsinq.f32.pop %v676
        %vm680 = vweird.f32 %v477
        %v681 = vadd.s32 %v677, 3
        %v682 = vand.u32 %v681, 3
        %vm683 = vcmp.lt.s32.totalorder %v682, 2
        %vm684 = vcmp.eq.s32.totalorder %v682, 0
        %v685 = vxor.u32 %v679, 2147483648
        %v686 = vsel %vm684, %v678, %v685
        %vm687 = vcmp.eq.s32.totalorder %v682, 2
        %v688 = vxor.u32 %v678, 2147483648
        %v689 = vsel %vm687, %v688, %v679
        %v690 = vsel %vm683, %v686, %v689
        %v691 = vsel %vm680, nan, %v690
        %v692 = vand.u32 2147483647, %v478
        %vm693 = vcmp.le.f32.partialorder %v692, 0.7853982
        %vm694 = vcmp.lt.s32.totalorder %v478, 0
        %v695 = vand.u32 %v478, 2139095040
        %v696 = vshrl.u32 %v695, 23
        %v697 = vsub.s32 %v696, 127
        %v698 = vand.u32 2147483647, %v478
        %v699 = vand.u32 %v698, 8388607
        %v700 = vor.u32 %v699, 8388608
        %v701 = vsub.s32 0, %v700
        %v702 = vadd.s32 %v697, 1
        %vm703 = vcmp.gt.s32.totalorder %v702, 0
        %v704 = vsel %vm703, %v702, 0
        %v705 = vshrl.u32 %v704, 5
        %v706 = vand.u32 %v704, 31
        %v707 = vsub.s32 32, %v706
        %v708 = vshrl.u32 683565275, %v707
        %v709 = vshll.u32 683565275, %v706
        %v710 = vshrl.u32 2475754826, %v707
        %v711 = vor.u32 %v709, %v710
        %v712 = vshll.u32 2475754826, %v706
        %v713 = vshrl.u32 2131351028, %v707
        %v714 = vor.u32 %v712, %v713
        %v715 = vshll.u32 2131351028, %v706
        %v716 = vshrl.u32 2102212464, %v707
        %v717 = vor.u32 %v715, %v716
        %v718 = vshll.u32 2102212464, %v706
        %v719 = vshrl.u32 920167782, %v707
        %v720 = vor.u32 %v718, %v719
        %v721 = vshll.u32 920167782, %v706
        %v722 = vshrl.u32 1326507024, %v707
        %v723 = vor.u32 %v721, %v722
        %vm724 = vcmp.lt.s32.totalorder %v705, 1
        %vm725 = vcmp.lt.s32.totalorder %v705, 2
        %vm726 = vcmp.lt.s32.totalorder %v705, 3
        %vm727 = vcmp.lt.s32.totalorder %v705, 4
        %v728 = vsel %vm724, %v708, %v711
        %v729 = vsel %vm727, %v717, 2102212464
        %v730 = vsel %vm726, %v714, %v729
        %v731 = vsel %vm725, %v728, %v730
        %v732 = vsel %vm724, %v711, %v714
        %v733 = vsel %vm727, %v720, 920167782
        %v734 = vsel %vm726, %v717, %v733
        %v735 = vsel %vm725, %v732, %v734
        %v736 = vsel %vm724, %v714, %v717
        %v737 = vsel %vm727, %v723, 1326507024
        %v738 = vsel %vm726, %v720, %v737
        %v739 = vsel %vm725, %v736, %v738
        %v740 = vshll.u32 %v700, 8
        %v741 = vmul.u32.u64.compose %v740, %v739
        %v742 = vextract.low.u32 %v741
        %v743 = vextract.high.u32 %v741
        %v744 = vmul.u32.u64.compose %v740, %v735
        %v745 = vextract.low.u32 %v744
        %v746 = vextract.high.u32 %v744
        %v747 = vmul.u32 %v740, %v731
        %v748 = vadd.s32 %v743, %v745
        %vm749 = vc.u32 %v743, %v745
        %v750 = vadd.s32 %v746, 1
        %v751 = vsel %vm749, %v750, %v746
        %v752 = vadd.s32 %v747, %v751
        %v753 = vadd.s32 %v752, 536870912
        %v754 = vshrl.u32 %v753, 30
        %v755 = vshll.u32 %v754, 30
        %v756 = vsub.s32 %v752, %v755
        %vm757 = vcmp.lt.s32.totalorder %v756, 0
        %v758 = vsub.s32 0, %v756
        %v759 = vsel %vm757, %v758, %v756
        %v760 = vclz %v759
        %v761 = vsub.s32 %v760, 2
        %vm762 = vcmp.gt.s32.totalorder 0, %v761
        %v763 = vsel %vm762, 0, %v761
        %v764 = vsub.s32 32, %v763
        %v765 = vshll.u32 %v756, %v763
        %v766 = vshrl.u32 %v748, %v764
        %v767 = vor.u32 %v765, %v766
        %v768 = vsub.s32 4294967266, %v763
        %v769 = vadd.s32 %v768, 127
        %v770 = vshll.u32 %v769, 23
        %v771 = vor.u32 4788187, %v770
        %v772 = vand.u32 2147483647, %v771
        %v774 = vcvt.s32.f32 %v767
        %v775 = vmul.f32 %v774, %v772
        %v776 = vxor.u32 %v775, 2147483648
        %v777 = vsel %vm694, %v776, %v775
        %v778 = vsub.s32 4, %v754
        %v779 = vsel %vm694, %v778, %v754
        %v780 = vsel %vm693, %v478, %v777
        %v781 = vsel %vm693, 0, %v779
        %v782 = vcosq.f32.pop %v780
        %v783 = vsinq.f32.pop %v780
        %vm784 = vweird.f32 %v478
        %v785 = vadd.s32 %v781, 3
        %v786 = vand.u32 %v785, 3
        %vm787 = vcmp.lt.s32.totalorder %v786, 2
        %vm788 = vcmp.eq.s32.totalorder %v786, 0
        %v789 = vxor.u32 %v783, 2147483648
        %v790 = vsel %vm788, %v782, %v789
        %vm791 = vcmp.eq.s32.totalorder %v786, 2
        %v792 = vxor.u32 %v782, 2147483648
        %v793 = vsel %vm791, %v792, %v783
        %v794 = vsel %vm787, %v790, %v793
        %v795 = vsel %vm784, nan, %v794
        %v796 = vand.u32 2147483647, %v479
        %vm797 = vcmp.le.f32.partialorder %v796, 0.7853982
        %vm798 = vcmp.lt.s32.totalorder %v479, 0
        %v799 = vand.u32 %v479, 2139095040
        %v800 = vshrl.u32 %v799, 23
        %v801 = vsub.s32 %v800, 127
        %v802 = vand.u32 2147483647, %v479
        %v803 = vand.u32 %v802, 8388607
        %v804 = vor.u32 %v803, 8388608
        %v805 = vsub.s32 0, %v804
        %v806 = vadd.s32 %v801, 1
        %vm807 = vcmp.gt.s32.totalorder %v806, 0
        %v808 = vsel %vm807, %v806, 0
        %v809 = vshrl.u32 %v808, 5
        %v810 = vand.u32 %v808, 31
        %v811 = vsub.s32 32, %v810
        %v812 = vshrl.u32 683565275, %v811
        %v813 = vshll.u32 683565275, %v810
        %v814 = vshrl.u32 2475754826, %v811
        %v815 = vor.u32 %v813, %v814
        %v816 = vshll.u32 2475754826, %v810
        %v817 = vshrl.u32 2131351028, %v811
        %v818 = vor.u32 %v816, %v817
        %v819 = vshll.u32 2131351028, %v810
        %v820 = vshrl.u32 2102212464, %v811
        %v821 = vor.u32 %v819, %v820
        %v822 = vshll.u32 2102212464, %v810
        %v823 = vshrl.u32 920167782, %v811
        %v824 = vor.u32 %v822, %v823
        %v825 = vshll.u32 920167782, %v810
        %v826 = vshrl.u32 1326507024, %v811
        %v827 = vor.u32 %v825, %v826
        %vm828 = vcmp.lt.s32.totalorder %v809, 1
        %vm829 = vcmp.lt.s32.totalorder %v809, 2
        %vm830 = vcmp.lt.s32.totalorder %v809, 3
        %vm831 = vcmp.lt.s32.totalorder %v809, 4
        %v832 = vsel %vm828, %v812, %v815
        %v833 = vsel %vm831, %v821, 2102212464
        %v834 = vsel %vm830, %v818, %v833
        %v835 = vsel %vm829, %v832, %v834
        %v836 = vsel %vm828, %v815, %v818
        %v837 = vsel %vm831, %v824, 920167782
        %v838 = vsel %vm830, %v821, %v837
        %v839 = vsel %vm829, %v836, %v838
        %v840 = vsel %vm828, %v818, %v821
        %v841 = vsel %vm831, %v827, 1326507024
        %v842 = vsel %vm830, %v824, %v841
        %v843 = vsel %vm829, %v840, %v842
        %v844 = vshll.u32 %v804, 8
        %v845 = vmul.u32.u64.compose %v844, %v843
        %v846 = vextract.low.u32 %v845
        %v847 = vextract.high.u32 %v845
        %v848 = vmul.u32.u64.compose %v844, %v839
        %v849 = vextract.low.u32 %v848
        %v850 = vextract.high.u32 %v848
        %v851 = vmul.u32 %v844, %v835
        %v852 = vadd.s32 %v847, %v849
        %vm853 = vc.u32 %v847, %v849
        %v854 = vadd.s32 %v850, 1
        %v855 = vsel %vm853, %v854, %v850
        %v856 = vadd.s32 %v851, %v855
        %v857 = vadd.s32 %v856, 536870912
        %v858 = vshrl.u32 %v857, 30
        %v859 = vshll.u32 %v858, 30
        %v860 = vsub.s32 %v856, %v859
        %vm861 = vcmp.lt.s32.totalorder %v860, 0
        %v862 = vsub.s32 0, %v860
        %v863 = vsel %vm861, %v862, %v860
        %v864 = vclz %v863
        %v865 = vsub.s32 %v864, 2
        %vm866 = vcmp.gt.s32.totalorder 0, %v865
        %v867 = vsel %vm866, 0, %v865
        %v868 = vsub.s32 32, %v867
        %v869 = vshll.u32 %v860, %v867
        %v870 = vshrl.u32 %v852, %v868
        %v871 = vor.u32 %v869, %v870
        %v872 = vsub.s32 4294967266, %v867
        %v873 = vadd.s32 %v872, 127
        %v874 = vshll.u32 %v873, 23
        %v875 = vor.u32 4788187, %v874
        %v876 = vand.u32 2147483647, %v875
        %v878 = vcvt.s32.f32 %v871
        %v879 = vmul.f32 %v878, %v876
        %v880 = vxor.u32 %v879, 2147483648
        %v881 = vsel %vm798, %v880, %v879
        %v882 = vsub.s32 4, %v858
        %v883 = vsel %vm798, %v882, %v858
        %v884 = vsel %vm797, %v479, %v881
        %v885 = vsel %vm797, 0, %v883
        %v886 = vcosq.f32.pop %v884
        %v887 = vsinq.f32.pop %v884
        %vm888 = vweird.f32 %v479
        %v889 = vadd.s32 %v885, 3
        %v890 = vand.u32 %v889, 3
        %vm891 = vcmp.lt.s32.totalorder %v890, 2
        %vm892 = vcmp.eq.s32.totalorder %v890, 0
        %v893 = vxor.u32 %v887, 2147483648
        %v894 = vsel %vm892, %v886, %v893
        %vm895 = vcmp.eq.s32.totalorder %v890, 2
        %v896 = vxor.u32 %v886, 2147483648
        %v897 = vsel %vm895, %v896, %v887
        %v898 = vsel %vm891, %v894, %v897
        %v899 = vsel %vm888, nan, %v898
        %v900 = vand.u32 2147483647, %v480
        %vm901 = vcmp.le.f32.partialorder %v900, 0.7853982
        %vm902 = vcmp.lt.s32.totalorder %v480, 0
        %v903 = vand.u32 %v480, 2139095040
        %v904 = vshrl.u32 %v903, 23
        %v905 = vsub.s32 %v904, 127
        %v906 = vand.u32 2147483647, %v480
        %v907 = vand.u32 %v906, 8388607
        %v908 = vor.u32 %v907, 8388608
        %v909 = vsub.s32 0, %v908
        %v910 = vadd.s32 %v905, 1
        %vm911 = vcmp.gt.s32.totalorder %v910, 0
        %v912 = vsel %vm911, %v910, 0
        %v913 = vshrl.u32 %v912, 5
        %v914 = vand.u32 %v912, 31
        %v915 = vsub.s32 32, %v914
        %v916 = vshrl.u32 683565275, %v915
        %v917 = vshll.u32 683565275, %v914
        %v918 = vshrl.u32 2475754826, %v915
        %v919 = vor.u32 %v917, %v918
        %v920 = vshll.u32 2475754826, %v914
        %v921 = vshrl.u32 2131351028, %v915
        %v922 = vor.u32 %v920, %v921
        %v923 = vshll.u32 2131351028, %v914
        %v924 = vshrl.u32 2102212464, %v915
        %v925 = vor.u32 %v923, %v924
        %v926 = vshll.u32 2102212464, %v914
        %v927 = vshrl.u32 920167782, %v915
        %v928 = vor.u32 %v926, %v927
        %v929 = vshll.u32 920167782, %v914
        %v930 = vshrl.u32 1326507024, %v915
        %v931 = vor.u32 %v929, %v930
        %vm932 = vcmp.lt.s32.totalorder %v913, 1
        %vm933 = vcmp.lt.s32.totalorder %v913, 2
        %vm934 = vcmp.lt.s32.totalorder %v913, 3
        %vm935 = vcmp.lt.s32.totalorder %v913, 4
        %v936 = vsel %vm932, %v916, %v919
        %v937 = vsel %vm935, %v925, 2102212464
        %v938 = vsel %vm934, %v922, %v937
        %v939 = vsel %vm933, %v936, %v938
        %v940 = vsel %vm932, %v919, %v922
        %v941 = vsel %vm935, %v928, 920167782
        %v942 = vsel %vm934, %v925, %v941
        %v943 = vsel %vm933, %v940, %v942
        %v944 = vsel %vm932, %v922, %v925
        %v945 = vsel %vm935, %v931, 1326507024
        %v946 = vsel %vm934, %v928, %v945
        %v947 = vsel %vm933, %v944, %v946
        %v948 = vshll.u32 %v908, 8
        %v949 = vmul.u32.u64.compose %v948, %v947
        %v950 = vextract.low.u32 %v949
        %v951 = vextract.high.u32 %v949
        %v952 = vmul.u32.u64.compose %v948, %v943
        %v953 = vextract.low.u32 %v952
        %v954 = vextract.high.u32 %v952
        %v955 = vmul.u32 %v948, %v939
        %v956 = vadd.s32 %v951, %v953
        %vm957 = vc.u32 %v951, %v953
        %v958 = vadd.s32 %v954, 1
        %v959 = vsel %vm957, %v958, %v954
        %v960 = vadd.s32 %v955, %v959
        %v961 = vadd.s32 %v960, 536870912
        %v962 = vshrl.u32 %v961, 30
        %v963 = vshll.u32 %v962, 30
        %v964 = vsub.s32 %v960, %v963
        %vm965 = vcmp.lt.s32.totalorder %v964, 0
        %v966 = vsub.s32 0, %v964
        %v967 = vsel %vm965, %v966, %v964
        %v968 = vclz %v967
        %v969 = vsub.s32 %v968, 2
        %vm970 = vcmp.gt.s32.totalorder 0, %v969
        %v971 = vsel %vm970, 0, %v969
        %v972 = vsub.s32 32, %v971
        %v973 = vshll.u32 %v964, %v971
        %v974 = vshrl.u32 %v956, %v972
        %v975 = vor.u32 %v973, %v974
        %v976 = vsub.s32 4294967266, %v971
        %v977 = vadd.s32 %v976, 127
        %v978 = vshll.u32 %v977, 23
        %v979 = vor.u32 4788187, %v978
        %v980 = vand.u32 2147483647, %v979
        %v982 = vcvt.s32.f32 %v975
        %v983 = vmul.f32 %v982, %v980
        %v984 = vxor.u32 %v983, 2147483648
        %v985 = vsel %vm902, %v984, %v983
        %v986 = vsub.s32 4, %v962
        %v987 = vsel %vm902, %v986, %v962
        %v988 = vsel %vm901, %v480, %v985
        %v989 = vsel %vm901, 0, %v987
        %v990 = vcosq.f32.pop %v988
        %v991 = vsinq.f32.pop %v988
        %vm992 = vweird.f32 %v480
        %v993 = vadd.s32 %v989, 3
        %v994 = vand.u32 %v993, 3
        %vm995 = vcmp.lt.s32.totalorder %v994, 2
        %vm996 = vcmp.eq.s32.totalorder %v994, 0
        %v997 = vxor.u32 %v991, 2147483648
        %v998 = vsel %vm996, %v990, %v997
        %vm999 = vcmp.eq.s32.totalorder %v994, 2
        %v1000 = vxor.u32 %v990, 2147483648
        %v1001 = vsel %vm999, %v1000, %v991
        %v1002 = vsel %vm995, %v998, %v1001
        %v1003 = vsel %vm992, nan, %v1002
        %v1004 = vand.u32 2147483647, %v481
        %vm1005 = vcmp.le.f32.partialorder %v1004, 0.7853982
        %vm1006 = vcmp.lt.s32.totalorder %v481, 0
        %v1007 = vand.u32 %v481, 2139095040
        %v1008 = vshrl.u32 %v1007, 23
        %v1009 = vsub.s32 %v1008, 127
        %v1010 = vand.u32 2147483647, %v481
        %v1011 = vand.u32 %v1010, 8388607
        %v1012 = vor.u32 %v1011, 8388608
        %v1013 = vsub.s32 0, %v1012
        %v1014 = vadd.s32 %v1009, 1
        %vm1015 = vcmp.gt.s32.totalorder %v1014, 0
        %v1016 = vsel %vm1015, %v1014, 0
        %v1017 = vshrl.u32 %v1016, 5
        %v1018 = vand.u32 %v1016, 31
        %v1019 = vsub.s32 32, %v1018
        %v1020 = vshrl.u32 683565275, %v1019
        %v1021 = vshll.u32 683565275, %v1018
        %v1022 = vshrl.u32 2475754826, %v1019
        %v1023 = vor.u32 %v1021, %v1022
        %v1024 = vshll.u32 2475754826, %v1018
        %v1025 = vshrl.u32 2131351028, %v1019
        %v1026 = vor.u32 %v1024, %v1025
        %v1027 = vshll.u32 2131351028, %v1018
        %v1028 = vshrl.u32 2102212464, %v1019
        %v1029 = vor.u32 %v1027, %v1028
        %v1030 = vshll.u32 2102212464, %v1018
        %v1031 = vshrl.u32 920167782, %v1019
        %v1032 = vor.u32 %v1030, %v1031
        %v1033 = vshll.u32 920167782, %v1018
        %v1034 = vshrl.u32 1326507024, %v1019
        %v1035 = vor.u32 %v1033, %v1034
        %vm1036 = vcmp.lt.s32.totalorder %v1017, 1
        %vm1037 = vcmp.lt.s32.totalorder %v1017, 2
        %vm1038 = vcmp.lt.s32.totalorder %v1017, 3
        %vm1039 = vcmp.lt.s32.totalorder %v1017, 4
        %v1040 = vsel %vm1036, %v1020, %v1023
        %v1041 = vsel %vm1039, %v1029, 2102212464
        %v1042 = vsel %vm1038, %v1026, %v1041
        %v1043 = vsel %vm1037, %v1040, %v1042
        %v1044 = vsel %vm1036, %v1023, %v1026
        %v1045 = vsel %vm1039, %v1032, 920167782
        %v1046 = vsel %vm1038, %v1029, %v1045
        %v1047 = vsel %vm1037, %v1044, %v1046
        %v1048 = vsel %vm1036, %v1026, %v1029
        %v1049 = vsel %vm1039, %v1035, 1326507024
        %v1050 = vsel %vm1038, %v1032, %v1049
        %v1051 = vsel %vm1037, %v1048, %v1050
        %v1052 = vshll.u32 %v1012, 8
        %v1053 = vmul.u32.u64.compose %v1052, %v1051
        %v1054 = vextract.low.u32 %v1053
        %v1055 = vextract.high.u32 %v1053
        %v1056 = vmul.u32.u64.compose %v1052, %v1047
        %v1057 = vextract.low.u32 %v1056
        %v1058 = vextract.high.u32 %v1056
        %v1059 = vmul.u32 %v1052, %v1043
        %v1060 = vadd.s32 %v1055, %v1057
        %vm1061 = vc.u32 %v1055, %v1057
        %v1062 = vadd.s32 %v1058, 1
        %v1063 = vsel %vm1061, %v1062, %v1058
        %v1064 = vadd.s32 %v1059, %v1063
        %v1065 = vadd.s32 %v1064, 536870912
        %v1066 = vshrl.u32 %v1065, 30
        %v1067 = vshll.u32 %v1066, 30
        %v1068 = vsub.s32 %v1064, %v1067
        %vm1069 = vcmp.lt.s32.totalorder %v1068, 0
        %v1070 = vsub.s32 0, %v1068
        %v1071 = vsel %vm1069, %v1070, %v1068
        %v1072 = vclz %v1071
        %v1073 = vsub.s32 %v1072, 2
        %vm1074 = vcmp.gt.s32.totalorder 0, %v1073
        %v1075 = vsel %vm1074, 0, %v1073
        %v1076 = vsub.s32 32, %v1075
        %v1077 = vshll.u32 %v1068, %v1075
        %v1078 = vshrl.u32 %v1060, %v1076
        %v1079 = vor.u32 %v1077, %v1078
        %v1080 = vsub.s32 4294967266, %v1075
        %v1081 = vadd.s32 %v1080, 127
        %v1082 = vshll.u32 %v1081, 23
        %v1083 = vor.u32 4788187, %v1082
        %v1084 = vand.u32 2147483647, %v1083
        %v1086 = vcvt.s32.f32 %v1079
        %v1087 = vmul.f32 %v1086, %v1084
        %v1088 = vxor.u32 %v1087, 2147483648
        %v1089 = vsel %vm1006, %v1088, %v1087
        %v1090 = vsub.s32 4, %v1066
        %v1091 = vsel %vm1006, %v1090, %v1066
        %v1092 = vsel %vm1005, %v481, %v1089
        %v1093 = vsel %vm1005, 0, %v1091
        %v1094 = vcosq.f32.pop %v1092
        %v1095 = vsinq.f32.pop %v1092
        %vm1096 = vweird.f32 %v481
        %v1097 = vadd.s32 %v1093, 3
        %v1098 = vand.u32 %v1097, 3
        %vm1099 = vcmp.lt.s32.totalorder %v1098, 2
        %vm1100 = vcmp.eq.s32.totalorder %v1098, 0
        %v1101 = vxor.u32 %v1095, 2147483648
        %v1102 = vsel %vm1100, %v1094, %v1101
        %vm1103 = vcmp.eq.s32.totalorder %v1098, 2
        %v1104 = vxor.u32 %v1094, 2147483648
        %v1105 = vsel %vm1103, %v1104, %v1095
        %v1106 = vsel %vm1099, %v1102, %v1105
        %v1107 = vsel %vm1096, nan, %v1106
        %v1108 = vand.u32 2147483647, %v482
        %vm1109 = vcmp.le.f32.partialorder %v1108, 0.7853982
        %vm1110 = vcmp.lt.s32.totalorder %v482, 0
        %v1111 = vand.u32 %v482, 2139095040
        %v1112 = vshrl.u32 %v1111, 23
        %v1113 = vsub.s32 %v1112, 127
        %v1114 = vand.u32 2147483647, %v482
        %v1115 = vand.u32 %v1114, 8388607
        %v1116 = vor.u32 %v1115, 8388608
        %v1117 = vsub.s32 0, %v1116
        %v1118 = vadd.s32 %v1113, 1
        %vm1119 = vcmp.gt.s32.totalorder %v1118, 0
        %v1120 = vsel %vm1119, %v1118, 0
        %v1121 = vshrl.u32 %v1120, 5
        %v1122 = vand.u32 %v1120, 31
        %v1123 = vsub.s32 32, %v1122
        %v1124 = vshrl.u32 683565275, %v1123
        %v1125 = vshll.u32 683565275, %v1122
        %v1126 = vshrl.u32 2475754826, %v1123
        %v1127 = vor.u32 %v1125, %v1126
        %v1128 = vshll.u32 2475754826, %v1122
        %v1129 = vshrl.u32 2131351028, %v1123
        %v1130 = vor.u32 %v1128, %v1129
        %v1131 = vshll.u32 2131351028, %v1122
        %v1132 = vshrl.u32 2102212464, %v1123
        %v1133 = vor.u32 %v1131, %v1132
        %v1134 = vshll.u32 2102212464, %v1122
        %v1135 = vshrl.u32 920167782, %v1123
        %v1136 = vor.u32 %v1134, %v1135
        %v1137 = vshll.u32 920167782, %v1122
        %v1138 = vshrl.u32 1326507024, %v1123
        %v1139 = vor.u32 %v1137, %v1138
        %vm1140 = vcmp.lt.s32.totalorder %v1121, 1
        %vm1141 = vcmp.lt.s32.totalorder %v1121, 2
        %vm1142 = vcmp.lt.s32.totalorder %v1121, 3
        %vm1143 = vcmp.lt.s32.totalorder %v1121, 4
        %v1144 = vsel %vm1140, %v1124, %v1127
        %v1145 = vsel %vm1143, %v1133, 2102212464
        %v1146 = vsel %vm1142, %v1130, %v1145
        %v1147 = vsel %vm1141, %v1144, %v1146
        %v1148 = vsel %vm1140, %v1127, %v1130
        %v1149 = vsel %vm1143, %v1136, 920167782
        %v1150 = vsel %vm1142, %v1133, %v1149
        %v1151 = vsel %vm1141, %v1148, %v1150
        %v1152 = vsel %vm1140, %v1130, %v1133
        %v1153 = vsel %vm1143, %v1139, 1326507024
        %v1154 = vsel %vm1142, %v1136, %v1153
        %v1155 = vsel %vm1141, %v1152, %v1154
        %v1156 = vshll.u32 %v1116, 8
        %v1157 = vmul.u32.u64.compose %v1156, %v1155
        %v1158 = vextract.low.u32 %v1157
        %v1159 = vextract.high.u32 %v1157
        %v1160 = vmul.u32.u64.compose %v1156, %v1151
        %v1161 = vextract.low.u32 %v1160
        %v1162 = vextract.high.u32 %v1160
        %v1163 = vmul.u32 %v1156, %v1147
        %v1164 = vadd.s32 %v1159, %v1161
        %vm1165 = vc.u32 %v1159, %v1161
        %v1166 = vadd.s32 %v1162, 1
        %v1167 = vsel %vm1165, %v1166, %v1162
        %v1168 = vadd.s32 %v1163, %v1167
        %v1169 = vadd.s32 %v1168, 536870912
        %v1170 = vshrl.u32 %v1169, 30
        %v1171 = vshll.u32 %v1170, 30
        %v1172 = vsub.s32 %v1168, %v1171
        %vm1173 = vcmp.lt.s32.totalorder %v1172, 0
        %v1174 = vsub.s32 0, %v1172
        %v1175 = vsel %vm1173, %v1174, %v1172
        %v1176 = vclz %v1175
        %v1177 = vsub.s32 %v1176, 2
        %vm1178 = vcmp.gt.s32.totalorder 0, %v1177
        %v1179 = vsel %vm1178, 0, %v1177
        %v1180 = vsub.s32 32, %v1179
        %v1181 = vshll.u32 %v1172, %v1179
        %v1182 = vshrl.u32 %v1164, %v1180
        %v1183 = vor.u32 %v1181, %v1182
        %v1184 = vsub.s32 4294967266, %v1179
        %v1185 = vadd.s32 %v1184, 127
        %v1186 = vshll.u32 %v1185, 23
        %v1187 = vor.u32 4788187, %v1186
        %v1188 = vand.u32 2147483647, %v1187
        %v1190 = vcvt.s32.f32 %v1183
        %v1191 = vmul.f32 %v1190, %v1188
        %v1192 = vxor.u32 %v1191, 2147483648
        %v1193 = vsel %vm1110, %v1192, %v1191
        %v1194 = vsub.s32 4, %v1170
        %v1195 = vsel %vm1110, %v1194, %v1170
        %v1196 = vsel %vm1109, %v482, %v1193
        %v1197 = vsel %vm1109, 0, %v1195
        %v1198 = vcosq.f32.pop %v1196
        %v1199 = vsinq.f32.pop %v1196
        %vm1200 = vweird.f32 %v482
        %v1201 = vadd.s32 %v1197, 3
        %v1202 = vand.u32 %v1201, 3
        %vm1203 = vcmp.lt.s32.totalorder %v1202, 2
        %vm1204 = vcmp.eq.s32.totalorder %v1202, 0
        %v1205 = vxor.u32 %v1199, 2147483648
        %v1206 = vsel %vm1204, %v1198, %v1205
        %vm1207 = vcmp.eq.s32.totalorder %v1202, 2
        %v1208 = vxor.u32 %v1198, 2147483648
        %v1209 = vsel %vm1207, %v1208, %v1199
        %v1210 = vsel %vm1203, %v1206, %v1209
        %v1211 = vsel %vm1200, nan, %v1210
        %v1212 = vand.u32 2147483647, %v483
        %vm1213 = vcmp.le.f32.partialorder %v1212, 0.7853982
        %vm1214 = vcmp.lt.s32.totalorder %v483, 0
        %v1215 = vand.u32 %v483, 2139095040
        %v1216 = vshrl.u32 %v1215, 23
        %v1217 = vsub.s32 %v1216, 127
        %v1218 = vand.u32 2147483647, %v483
        %v1219 = vand.u32 %v1218, 8388607
        %v1220 = vor.u32 %v1219, 8388608
        %v1221 = vsub.s32 0, %v1220
        %v1222 = vadd.s32 %v1217, 1
        %vm1223 = vcmp.gt.s32.totalorder %v1222, 0
        %v1224 = vsel %vm1223, %v1222, 0
        %v1225 = vshrl.u32 %v1224, 5
        %v1226 = vand.u32 %v1224, 31
        %v1227 = vsub.s32 32, %v1226
        %v1228 = vshrl.u32 683565275, %v1227
        %v1229 = vshll.u32 683565275, %v1226
        %v1230 = vshrl.u32 2475754826, %v1227
        %v1231 = vor.u32 %v1229, %v1230
        %v1232 = vshll.u32 2475754826, %v1226
        %v1233 = vshrl.u32 2131351028, %v1227
        %v1234 = vor.u32 %v1232, %v1233
        %v1235 = vshll.u32 2131351028, %v1226
        %v1236 = vshrl.u32 2102212464, %v1227
        %v1237 = vor.u32 %v1235, %v1236
        %v1238 = vshll.u32 2102212464, %v1226
        %v1239 = vshrl.u32 920167782, %v1227
        %v1240 = vor.u32 %v1238, %v1239
        %v1241 = vshll.u32 920167782, %v1226
        %v1242 = vshrl.u32 1326507024, %v1227
        %v1243 = vor.u32 %v1241, %v1242
        %vm1244 = vcmp.lt.s32.totalorder %v1225, 1
        %vm1245 = vcmp.lt.s32.totalorder %v1225, 2
        %vm1246 = vcmp.lt.s32.totalorder %v1225, 3
        %vm1247 = vcmp.lt.s32.totalorder %v1225, 4
        %v1248 = vsel %vm1244, %v1228, %v1231
        %v1249 = vsel %vm1247, %v1237, 2102212464
        %v1250 = vsel %vm1246, %v1234, %v1249
        %v1251 = vsel %vm1245, %v1248, %v1250
        %v1252 = vsel %vm1244, %v1231, %v1234
        %v1253 = vsel %vm1247, %v1240, 920167782
        %v1254 = vsel %vm1246, %v1237, %v1253
        %v1255 = vsel %vm1245, %v1252, %v1254
        %v1256 = vsel %vm1244, %v1234, %v1237
        %v1257 = vsel %vm1247, %v1243, 1326507024
        %v1258 = vsel %vm1246, %v1240, %v1257
        %v1259 = vsel %vm1245, %v1256, %v1258
        %v1260 = vshll.u32 %v1220, 8
        %v1261 = vmul.u32.u64.compose %v1260, %v1259
        %v1262 = vextract.low.u32 %v1261
        %v1263 = vextract.high.u32 %v1261
        %v1264 = vmul.u32.u64.compose %v1260, %v1255
        %v1265 = vextract.low.u32 %v1264
        %v1266 = vextract.high.u32 %v1264
        %v1267 = vmul.u32 %v1260, %v1251
        %v1268 = vadd.s32 %v1263, %v1265
        %vm1269 = vc.u32 %v1263, %v1265
        %v1270 = vadd.s32 %v1266, 1
        %v1271 = vsel %vm1269, %v1270, %v1266
        %v1272 = vadd.s32 %v1267, %v1271
        %v1273 = vadd.s32 %v1272, 536870912
        %v1274 = vshrl.u32 %v1273, 30
        %v1275 = vshll.u32 %v1274, 30
        %v1276 = vsub.s32 %v1272, %v1275
        %vm1277 = vcmp.lt.s32.totalorder %v1276, 0
        %v1278 = vsub.s32 0, %v1276
        %v1279 = vsel %vm1277, %v1278, %v1276
        %v1280 = vclz %v1279
        %v1281 = vsub.s32 %v1280, 2
        %vm1282 = vcmp.gt.s32.totalorder 0, %v1281
        %v1283 = vsel %vm1282, 0, %v1281
        %v1284 = vsub.s32 32, %v1283
        %v1285 = vshll.u32 %v1276, %v1283
        %v1286 = vshrl.u32 %v1268, %v1284
        %v1287 = vor.u32 %v1285, %v1286
        %v1288 = vsub.s32 4294967266, %v1283
        %v1289 = vadd.s32 %v1288, 127
        %v1290 = vshll.u32 %v1289, 23
        %v1291 = vor.u32 4788187, %v1290
        %v1292 = vand.u32 2147483647, %v1291
        %v1294 = vcvt.s32.f32 %v1287
        %v1295 = vmul.f32 %v1294, %v1292
        %v1296 = vxor.u32 %v1295, 2147483648
        %v1297 = vsel %vm1214, %v1296, %v1295
        %v1298 = vsub.s32 4, %v1274
        %v1299 = vsel %vm1214, %v1298, %v1274
        %v1300 = vsel %vm1213, %v483, %v1297
        %v1301 = vsel %vm1213, 0, %v1299
        %v1302 = vcosq.f32.pop %v1300
        %v1303 = vsinq.f32.pop %v1300
        %vm1304 = vweird.f32 %v483
        %v1305 = vadd.s32 %v1301, 3
        %v1306 = vand.u32 %v1305, 3
        %vm1307 = vcmp.lt.s32.totalorder %v1306, 2
        %vm1308 = vcmp.eq.s32.totalorder %v1306, 0
        %v1309 = vxor.u32 %v1303, 2147483648
        %v1310 = vsel %vm1308, %v1302, %v1309
        %vm1311 = vcmp.eq.s32.totalorder %v1306, 2
        %v1312 = vxor.u32 %v1302, 2147483648
        %v1313 = vsel %vm1311, %v1312, %v1303
        %v1314 = vsel %vm1307, %v1310, %v1313
        %v1315 = vsel %vm1304, nan, %v1314
        %v1316 = vand.u32 2147483647, %v476
        %vm1317 = vcmp.le.f32.partialorder %v1316, 0.7853982
        %vm1318 = vcmp.lt.s32.totalorder %v476, 0
        %v1319 = vand.u32 %v476, 2139095040
        %v1320 = vshrl.u32 %v1319, 23
        %v1321 = vsub.s32 %v1320, 127
        %v1322 = vand.u32 2147483647, %v476
        %v1323 = vand.u32 %v1322, 8388607
        %v1324 = vor.u32 %v1323, 8388608
        %v1325 = vsub.s32 0, %v1324
        %v1326 = vadd.s32 %v1321, 1
        %vm1327 = vcmp.gt.s32.totalorder %v1326, 0
        %v1328 = vsel %vm1327, %v1326, 0
        %v1329 = vshrl.u32 %v1328, 5
        %v1330 = vand.u32 %v1328, 31
        %v1331 = vsub.s32 32, %v1330
        %v1332 = vshrl.u32 683565275, %v1331
        %v1333 = vshll.u32 683565275, %v1330
        %v1334 = vshrl.u32 2475754826, %v1331
        %v1335 = vor.u32 %v1333, %v1334
        %v1336 = vshll.u32 2475754826, %v1330
        %v1337 = vshrl.u32 2131351028, %v1331
        %v1338 = vor.u32 %v1336, %v1337
        %v1339 = vshll.u32 2131351028, %v1330
        %v1340 = vshrl.u32 2102212464, %v1331
        %v1341 = vor.u32 %v1339, %v1340
        %v1342 = vshll.u32 2102212464, %v1330
        %v1343 = vshrl.u32 920167782, %v1331
        %v1344 = vor.u32 %v1342, %v1343
        %v1345 = vshll.u32 920167782, %v1330
        %v1346 = vshrl.u32 1326507024, %v1331
        %v1347 = vor.u32 %v1345, %v1346
        %vm1348 = vcmp.lt.s32.totalorder %v1329, 1
        %vm1349 = vcmp.lt.s32.totalorder %v1329, 2
        %vm1350 = vcmp.lt.s32.totalorder %v1329, 3
        %vm1351 = vcmp.lt.s32.totalorder %v1329, 4
        %v1352 = vsel %vm1348, %v1332, %v1335
        %v1353 = vsel %vm1351, %v1341, 2102212464
        %v1354 = vsel %vm1350, %v1338, %v1353
        %v1355 = vsel %vm1349, %v1352, %v1354
        %v1356 = vsel %vm1348, %v1335, %v1338
        %v1357 = vsel %vm1351, %v1344, 920167782
        %v1358 = vsel %vm1350, %v1341, %v1357
        %v1359 = vsel %vm1349, %v1356, %v1358
        %v1360 = vsel %vm1348, %v1338, %v1341
        %v1361 = vsel %vm1351, %v1347, 1326507024
        %v1362 = vsel %vm1350, %v1344, %v1361
        %v1363 = vsel %vm1349, %v1360, %v1362
        %v1364 = vshll.u32 %v1324, 8
        %v1365 = vmul.u32.u64.compose %v1364, %v1363
        %v1366 = vextract.low.u32 %v1365
        %v1367 = vextract.high.u32 %v1365
        %v1368 = vmul.u32.u64.compose %v1364, %v1359
        %v1369 = vextract.low.u32 %v1368
        %v1370 = vextract.high.u32 %v1368
        %v1371 = vmul.u32 %v1364, %v1355
        %v1372 = vadd.s32 %v1367, %v1369
        %vm1373 = vc.u32 %v1367, %v1369
        %v1374 = vadd.s32 %v1370, 1
        %v1375 = vsel %vm1373, %v1374, %v1370
        %v1376 = vadd.s32 %v1371, %v1375
        %v1377 = vadd.s32 %v1376, 536870912
        %v1378 = vshrl.u32 %v1377, 30
        %v1379 = vshll.u32 %v1378, 30
        %v1380 = vsub.s32 %v1376, %v1379
        %vm1381 = vcmp.lt.s32.totalorder %v1380, 0
        %v1382 = vsub.s32 0, %v1380
        %v1383 = vsel %vm1381, %v1382, %v1380
        %v1384 = vclz %v1383
        %v1385 = vsub.s32 %v1384, 2
        %vm1386 = vcmp.gt.s32.totalorder 0, %v1385
        %v1387 = vsel %vm1386, 0, %v1385
        %v1388 = vsub.s32 32, %v1387
        %v1389 = vshll.u32 %v1380, %v1387
        %v1390 = vshrl.u32 %v1372, %v1388
        %v1391 = vor.u32 %v1389, %v1390
        %v1392 = vsub.s32 4294967266, %v1387
        %v1393 = vadd.s32 %v1392, 127
        %v1394 = vshll.u32 %v1393, 23
        %v1395 = vor.u32 4788187, %v1394
        %v1396 = vand.u32 2147483647, %v1395
        %v1398 = vcvt.s32.f32 %v1391
        %v1399 = vmul.f32 %v1398, %v1396
        %v1400 = vxor.u32 %v1399, 2147483648
        %v1401 = vsel %vm1318, %v1400, %v1399
        %v1402 = vsub.s32 4, %v1378
        %v1403 = vsel %vm1318, %v1402, %v1378
        %v1404 = vsel %vm1317, %v476, %v1401
        %v1405 = vsel %vm1317, 0, %v1403
        %v1406 = vcosq.f32.pop %v1404
        %v1407 = vsinq.f32.pop %v1404
        %vm1408 = vweird.f32 %v476
        %v1409 = vand.u32 %v1405, 3
        %vm1410 = vcmp.lt.s32.totalorder %v1409, 2
        %vm1411 = vcmp.eq.s32.totalorder %v1409, 0
        %v1412 = vxor.u32 %v1407, 2147483648
        %v1413 = vsel %vm1411, %v1406, %v1412
        %vm1414 = vcmp.eq.s32.totalorder %v1409, 2
        %v1415 = vxor.u32 %v1406, 2147483648
        %v1416 = vsel %vm1414, %v1415, %v1407
        %v1417 = vsel %vm1410, %v1413, %v1416
        %v1418 = vsel %vm1408, nan, %v1417
        %v1419 = vand.u32 2147483647, %v477
        %vm1420 = vcmp.le.f32.partialorder %v1419, 0.7853982
        %vm1421 = vcmp.lt.s32.totalorder %v477, 0
        %v1422 = vand.u32 %v477, 2139095040
        %v1423 = vshrl.u32 %v1422, 23
        %v1424 = vsub.s32 %v1423, 127
        %v1425 = vand.u32 2147483647, %v477
        %v1426 = vand.u32 %v1425, 8388607
        %v1427 = vor.u32 %v1426, 8388608
        %v1428 = vsub.s32 0, %v1427
        %v1429 = vadd.s32 %v1424, 1
        %vm1430 = vcmp.gt.s32.totalorder %v1429, 0
        %v1431 = vsel %vm1430, %v1429, 0
        %v1432 = vshrl.u32 %v1431, 5
        %v1433 = vand.u32 %v1431, 31
        %v1434 = vsub.s32 32, %v1433
        %v1435 = vshrl.u32 683565275, %v1434
        %v1436 = vshll.u32 683565275, %v1433
        %v1437 = vshrl.u32 2475754826, %v1434
        %v1438 = vor.u32 %v1436, %v1437
        %v1439 = vshll.u32 2475754826, %v1433
        %v1440 = vshrl.u32 2131351028, %v1434
        %v1441 = vor.u32 %v1439, %v1440
        %v1442 = vshll.u32 2131351028, %v1433
        %v1443 = vshrl.u32 2102212464, %v1434
        %v1444 = vor.u32 %v1442, %v1443
        %v1445 = vshll.u32 2102212464, %v1433
        %v1446 = vshrl.u32 920167782, %v1434
        %v1447 = vor.u32 %v1445, %v1446
        %v1448 = vshll.u32 920167782, %v1433
        %v1449 = vshrl.u32 1326507024, %v1434
        %v1450 = vor.u32 %v1448, %v1449
        %vm1451 = vcmp.lt.s32.totalorder %v1432, 1
        %vm1452 = vcmp.lt.s32.totalorder %v1432, 2
        %vm1453 = vcmp.lt.s32.totalorder %v1432, 3
        %vm1454 = vcmp.lt.s32.totalorder %v1432, 4
        %v1455 = vsel %vm1451, %v1435, %v1438
        %v1456 = vsel %vm1454, %v1444, 2102212464
        %v1457 = vsel %vm1453, %v1441, %v1456
        %v1458 = vsel %vm1452, %v1455, %v1457
        %v1459 = vsel %vm1451, %v1438, %v1441
        %v1460 = vsel %vm1454, %v1447, 920167782
        %v1461 = vsel %vm1453, %v1444, %v1460
        %v1462 = vsel %vm1452, %v1459, %v1461
        %v1463 = vsel %vm1451, %v1441, %v1444
        %v1464 = vsel %vm1454, %v1450, 1326507024
        %v1465 = vsel %vm1453, %v1447, %v1464
        %v1466 = vsel %vm1452, %v1463, %v1465
        %v1467 = vshll.u32 %v1427, 8
        %v1468 = vmul.u32.u64.compose %v1467, %v1466
        %v1469 = vextract.low.u32 %v1468
        %v1470 = vextract.high.u32 %v1468
        %v1471 = vmul.u32.u64.compose %v1467, %v1462
        %v1472 = vextract.low.u32 %v1471
        %v1473 = vextract.high.u32 %v1471
        %v1474 = vmul.u32 %v1467, %v1458
        %v1475 = vadd.s32 %v1470, %v1472
        %vm1476 = vc.u32 %v1470, %v1472
        %v1477 = vadd.s32 %v1473, 1
        %v1478 = vsel %vm1476, %v1477, %v1473
        %v1479 = vadd.s32 %v1474, %v1478
        %v1480 = vadd.s32 %v1479, 536870912
        %v1481 = vshrl.u32 %v1480, 30
        %v1482 = vshll.u32 %v1481, 30
        %v1483 = vsub.s32 %v1479, %v1482
        %vm1484 = vcmp.lt.s32.totalorder %v1483, 0
        %v1485 = vsub.s32 0, %v1483
        %v1486 = vsel %vm1484, %v1485, %v1483
        %v1487 = vclz %v1486
        %v1488 = vsub.s32 %v1487, 2
        %vm1489 = vcmp.gt.s32.totalorder 0, %v1488
        %v1490 = vsel %vm1489, 0, %v1488
        %v1491 = vsub.s32 32, %v1490
        %v1492 = vshll.u32 %v1483, %v1490
        %v1493 = vshrl.u32 %v1475, %v1491
        %v1494 = vor.u32 %v1492, %v1493
        %v1495 = vsub.s32 4294967266, %v1490
        %v1496 = vadd.s32 %v1495, 127
        %v1497 = vshll.u32 %v1496, 23
        %v1498 = vor.u32 4788187, %v1497
        %v1499 = vand.u32 2147483647, %v1498
        %v1501 = vcvt.s32.f32 %v1494
        %v1502 = vmul.f32 %v1501, %v1499
        %v1503 = vxor.u32 %v1502, 2147483648
        %v1504 = vsel %vm1421, %v1503, %v1502
        %v1505 = vsub.s32 4, %v1481
        %v1506 = vsel %vm1421, %v1505, %v1481
        %v1507 = vsel %vm1420, %v477, %v1504
        %v1508 = vsel %vm1420, 0, %v1506
        %v1509 = vcosq.f32.pop %v1507
        %v1510 = vsinq.f32.pop %v1507
        %vm1511 = vweird.f32 %v477
        %v1512 = vand.u32 %v1508, 3
        %vm1513 = vcmp.lt.s32.totalorder %v1512, 2
        %vm1514 = vcmp.eq.s32.totalorder %v1512, 0
        %v1515 = vxor.u32 %v1510, 2147483648
        %v1516 = vsel %vm1514, %v1509, %v1515
        %vm1517 = vcmp.eq.s32.totalorder %v1512, 2
        %v1518 = vxor.u32 %v1509, 2147483648
        %v1519 = vsel %vm1517, %v1518, %v1510
        %v1520 = vsel %vm1513, %v1516, %v1519
        %v1521 = vsel %vm1511, nan, %v1520
        %v1522 = vand.u32 2147483647, %v478
        %vm1523 = vcmp.le.f32.partialorder %v1522, 0.7853982
        %vm1524 = vcmp.lt.s32.totalorder %v478, 0
        %v1525 = vand.u32 %v478, 2139095040
        %v1526 = vshrl.u32 %v1525, 23
        %v1527 = vsub.s32 %v1526, 127
        %v1528 = vand.u32 2147483647, %v478
        %v1529 = vand.u32 %v1528, 8388607
        %v1530 = vor.u32 %v1529, 8388608
        %v1531 = vsub.s32 0, %v1530
        %v1532 = vadd.s32 %v1527, 1
        %vm1533 = vcmp.gt.s32.totalorder %v1532, 0
        %v1534 = vsel %vm1533, %v1532, 0
        %v1535 = vshrl.u32 %v1534, 5
        %v1536 = vand.u32 %v1534, 31
        %v1537 = vsub.s32 32, %v1536
        %v1538 = vshrl.u32 683565275, %v1537
        %v1539 = vshll.u32 683565275, %v1536
        %v1540 = vshrl.u32 2475754826, %v1537
        %v1541 = vor.u32 %v1539, %v1540
        %v1542 = vshll.u32 2475754826, %v1536
        %v1543 = vshrl.u32 2131351028, %v1537
        %v1544 = vor.u32 %v1542, %v1543
        %v1545 = vshll.u32 2131351028, %v1536
        %v1546 = vshrl.u32 2102212464, %v1537
        %v1547 = vor.u32 %v1545, %v1546
        %v1548 = vshll.u32 2102212464, %v1536
        %v1549 = vshrl.u32 920167782, %v1537
        %v1550 = vor.u32 %v1548, %v1549
        %v1551 = vshll.u32 920167782, %v1536
        %v1552 = vshrl.u32 1326507024, %v1537
        %v1553 = vor.u32 %v1551, %v1552
        %vm1554 = vcmp.lt.s32.totalorder %v1535, 1
        %vm1555 = vcmp.lt.s32.totalorder %v1535, 2
        %vm1556 = vcmp.lt.s32.totalorder %v1535, 3
        %vm1557 = vcmp.lt.s32.totalorder %v1535, 4
        %v1558 = vsel %vm1554, %v1538, %v1541
        %v1559 = vsel %vm1557, %v1547, 2102212464
        %v1560 = vsel %vm1556, %v1544, %v1559
        %v1561 = vsel %vm1555, %v1558, %v1560
        %v1562 = vsel %vm1554, %v1541, %v1544
        %v1563 = vsel %vm1557, %v1550, 920167782
        %v1564 = vsel %vm1556, %v1547, %v1563
        %v1565 = vsel %vm1555, %v1562, %v1564
        %v1566 = vsel %vm1554, %v1544, %v1547
        %v1567 = vsel %vm1557, %v1553, 1326507024
        %v1568 = vsel %vm1556, %v1550, %v1567
        %v1569 = vsel %vm1555, %v1566, %v1568
        %v1570 = vshll.u32 %v1530, 8
        %v1571 = vmul.u32.u64.compose %v1570, %v1569
        %v1572 = vextract.low.u32 %v1571
        %v1573 = vextract.high.u32 %v1571
        %v1574 = vmul.u32.u64.compose %v1570, %v1565
        %v1575 = vextract.low.u32 %v1574
        %v1576 = vextract.high.u32 %v1574
        %v1577 = vmul.u32 %v1570, %v1561
        %v1578 = vadd.s32 %v1573, %v1575
        %vm1579 = vc.u32 %v1573, %v1575
        %v1580 = vadd.s32 %v1576, 1
        %v1581 = vsel %vm1579, %v1580, %v1576
        %v1582 = vadd.s32 %v1577, %v1581
        %v1583 = vadd.s32 %v1582, 536870912
        %v1584 = vshrl.u32 %v1583, 30
        %v1585 = vshll.u32 %v1584, 30
        %v1586 = vsub.s32 %v1582, %v1585
        %vm1587 = vcmp.lt.s32.totalorder %v1586, 0
        %v1588 = vsub.s32 0, %v1586
        %v1589 = vsel %vm1587, %v1588, %v1586
        %v1590 = vclz %v1589
        %v1591 = vsub.s32 %v1590, 2
        %vm1592 = vcmp.gt.s32.totalorder 0, %v1591
        %v1593 = vsel %vm1592, 0, %v1591
        %v1594 = vsub.s32 32, %v1593
        %v1595 = vshll.u32 %v1586, %v1593
        %v1596 = vshrl.u32 %v1578, %v1594
        %v1597 = vor.u32 %v1595, %v1596
        %v1598 = vsub.s32 4294967266, %v1593
        %v1599 = vadd.s32 %v1598, 127
        %v1600 = vshll.u32 %v1599, 23
        %v1601 = vor.u32 4788187, %v1600
        %v1602 = vand.u32 2147483647, %v1601
        %v1604 = vcvt.s32.f32 %v1597
        %v1605 = vmul.f32 %v1604, %v1602
        %v1606 = vxor.u32 %v1605, 2147483648
        %v1607 = vsel %vm1524, %v1606, %v1605
        %v1608 = vsub.s32 4, %v1584
        %v1609 = vsel %vm1524, %v1608, %v1584
        %v1610 = vsel %vm1523, %v478, %v1607
        %v1611 = vsel %vm1523, 0, %v1609
        %v1612 = vcosq.f32.pop %v1610
        %v1613 = vsinq.f32.pop %v1610
        %vm1614 = vweird.f32 %v478
        %v1615 = vand.u32 %v1611, 3
        %vm1616 = vcmp.lt.s32.totalorder %v1615, 2
        %vm1617 = vcmp.eq.s32.totalorder %v1615, 0
        %v1618 = vxor.u32 %v1613, 2147483648
        %v1619 = vsel %vm1617, %v1612, %v1618
        %vm1620 = vcmp.eq.s32.totalorder %v1615, 2
        %v1621 = vxor.u32 %v1612, 2147483648
        %v1622 = vsel %vm1620, %v1621, %v1613
        %v1623 = vsel %vm1616, %v1619, %v1622
        %v1624 = vsel %vm1614, nan, %v1623
        %v1625 = vand.u32 2147483647, %v479
        %vm1626 = vcmp.le.f32.partialorder %v1625, 0.7853982
        %vm1627 = vcmp.lt.s32.totalorder %v479, 0
        %v1628 = vand.u32 %v479, 2139095040
        %v1629 = vshrl.u32 %v1628, 23
        %v1630 = vsub.s32 %v1629, 127
        %v1631 = vand.u32 2147483647, %v479
        %v1632 = vand.u32 %v1631, 8388607
        %v1633 = vor.u32 %v1632, 8388608
        %v1634 = vsub.s32 0, %v1633
        %v1635 = vadd.s32 %v1630, 1
        %vm1636 = vcmp.gt.s32.totalorder %v1635, 0
        %v1637 = vsel %vm1636, %v1635, 0
        %v1638 = vshrl.u32 %v1637, 5
        %v1639 = vand.u32 %v1637, 31
        %v1640 = vsub.s32 32, %v1639
        %v1641 = vshrl.u32 683565275, %v1640
        %v1642 = vshll.u32 683565275, %v1639
        %v1643 = vshrl.u32 2475754826, %v1640
        %v1644 = vor.u32 %v1642, %v1643
        %v1645 = vshll.u32 2475754826, %v1639
        %v1646 = vshrl.u32 2131351028, %v1640
        %v1647 = vor.u32 %v1645, %v1646
        %v1648 = vshll.u32 2131351028, %v1639
        %v1649 = vshrl.u32 2102212464, %v1640
        %v1650 = vor.u32 %v1648, %v1649
        %v1651 = vshll.u32 2102212464, %v1639
        %v1652 = vshrl.u32 920167782, %v1640
        %v1653 = vor.u32 %v1651, %v1652
        %v1654 = vshll.u32 920167782, %v1639
        %v1655 = vshrl.u32 1326507024, %v1640
        %v1656 = vor.u32 %v1654, %v1655
        %vm1657 = vcmp.lt.s32.totalorder %v1638, 1
        %vm1658 = vcmp.lt.s32.totalorder %v1638, 2
        %vm1659 = vcmp.lt.s32.totalorder %v1638, 3
        %vm1660 = vcmp.lt.s32.totalorder %v1638, 4
        %v1661 = vsel %vm1657, %v1641, %v1644
        %v1662 = vsel %vm1660, %v1650, 2102212464
        %v1663 = vsel %vm1659, %v1647, %v1662
        %v1664 = vsel %vm1658, %v1661, %v1663
        %v1665 = vsel %vm1657, %v1644, %v1647
        %v1666 = vsel %vm1660, %v1653, 920167782
        %v1667 = vsel %vm1659, %v1650, %v1666
        %v1668 = vsel %vm1658, %v1665, %v1667
        %v1669 = vsel %vm1657, %v1647, %v1650
        %v1670 = vsel %vm1660, %v1656, 1326507024
        %v1671 = vsel %vm1659, %v1653, %v1670
        %v1672 = vsel %vm1658, %v1669, %v1671
        %v1673 = vshll.u32 %v1633, 8
        %v1674 = vmul.u32.u64.compose %v1673, %v1672
        %v1675 = vextract.low.u32 %v1674
        %v1676 = vextract.high.u32 %v1674
        %v1677 = vmul.u32.u64.compose %v1673, %v1668
        %v1678 = vextract.low.u32 %v1677
        %v1679 = vextract.high.u32 %v1677
        %v1680 = vmul.u32 %v1673, %v1664
        %v1681 = vadd.s32 %v1676, %v1678
        %vm1682 = vc.u32 %v1676, %v1678
        %v1683 = vadd.s32 %v1679, 1
        %v1684 = vsel %vm1682, %v1683, %v1679
        %v1685 = vadd.s32 %v1680, %v1684
        %v1686 = vadd.s32 %v1685, 536870912
        %v1687 = vshrl.u32 %v1686, 30
        %v1688 = vshll.u32 %v1687, 30
        %v1689 = vsub.s32 %v1685, %v1688
        %vm1690 = vcmp.lt.s32.totalorder %v1689, 0
        %v1691 = vsub.s32 0, %v1689
        %v1692 = vsel %vm1690, %v1691, %v1689
        %v1693 = vclz %v1692
        %v1694 = vsub.s32 %v1693, 2
        %vm1695 = vcmp.gt.s32.totalorder 0, %v1694
        %v1696 = vsel %vm1695, 0, %v1694
        %v1697 = vsub.s32 32, %v1696
        %v1698 = vshll.u32 %v1689, %v1696
        %v1699 = vshrl.u32 %v1681, %v1697
        %v1700 = vor.u32 %v1698, %v1699
        %v1701 = vsub.s32 4294967266, %v1696
        %v1702 = vadd.s32 %v1701, 127
        %v1703 = vshll.u32 %v1702, 23
        %v1704 = vor.u32 4788187, %v1703
        %v1705 = vand.u32 2147483647, %v1704
        %v1707 = vcvt.s32.f32 %v1700
        %v1708 = vmul.f32 %v1707, %v1705
        %v1709 = vxor.u32 %v1708, 2147483648
        %v1710 = vsel %vm1627, %v1709, %v1708
        %v1711 = vsub.s32 4, %v1687
        %v1712 = vsel %vm1627, %v1711, %v1687
        %v1713 = vsel %vm1626, %v479, %v1710
        %v1714 = vsel %vm1626, 0, %v1712
        %v1715 = vcosq.f32.pop %v1713
        %v1716 = vsinq.f32.pop %v1713
        %vm1717 = vweird.f32 %v479
        %v1718 = vand.u32 %v1714, 3
        %vm1719 = vcmp.lt.s32.totalorder %v1718, 2
        %vm1720 = vcmp.eq.s32.totalorder %v1718, 0
        %v1721 = vxor.u32 %v1716, 2147483648
        %v1722 = vsel %vm1720, %v1715, %v1721
        %vm1723 = vcmp.eq.s32.totalorder %v1718, 2
        %v1724 = vxor.u32 %v1715, 2147483648
        %v1725 = vsel %vm1723, %v1724, %v1716
        %v1726 = vsel %vm1719, %v1722, %v1725
        %v1727 = vsel %vm1717, nan, %v1726
        %v1728 = vand.u32 2147483647, %v480
        %vm1729 = vcmp.le.f32.partialorder %v1728, 0.7853982
        %vm1730 = vcmp.lt.s32.totalorder %v480, 0
        %v1731 = vand.u32 %v480, 2139095040
        %v1732 = vshrl.u32 %v1731, 23
        %v1733 = vsub.s32 %v1732, 127
        %v1734 = vand.u32 2147483647, %v480
        %v1735 = vand.u32 %v1734, 8388607
        %v1736 = vor.u32 %v1735, 8388608
        %v1737 = vsub.s32 0, %v1736
        %v1738 = vadd.s32 %v1733, 1
        %vm1739 = vcmp.gt.s32.totalorder %v1738, 0
        %v1740 = vsel %vm1739, %v1738, 0
        %v1741 = vshrl.u32 %v1740, 5
        %v1742 = vand.u32 %v1740, 31
        %v1743 = vsub.s32 32, %v1742
        %v1744 = vshrl.u32 683565275, %v1743
        %v1745 = vshll.u32 683565275, %v1742
        %v1746 = vshrl.u32 2475754826, %v1743
        %v1747 = vor.u32 %v1745, %v1746
        %v1748 = vshll.u32 2475754826, %v1742
        %v1749 = vshrl.u32 2131351028, %v1743
        %v1750 = vor.u32 %v1748, %v1749
        %v1751 = vshll.u32 2131351028, %v1742
        %v1752 = vshrl.u32 2102212464, %v1743
        %v1753 = vor.u32 %v1751, %v1752
        %v1754 = vshll.u32 2102212464, %v1742
        %v1755 = vshrl.u32 920167782, %v1743
        %v1756 = vor.u32 %v1754, %v1755
        %v1757 = vshll.u32 920167782, %v1742
        %v1758 = vshrl.u32 1326507024, %v1743
        %v1759 = vor.u32 %v1757, %v1758
        %vm1760 = vcmp.lt.s32.totalorder %v1741, 1
        %vm1761 = vcmp.lt.s32.totalorder %v1741, 2
        %vm1762 = vcmp.lt.s32.totalorder %v1741, 3
        %vm1763 = vcmp.lt.s32.totalorder %v1741, 4
        %v1764 = vsel %vm1760, %v1744, %v1747
        %v1765 = vsel %vm1763, %v1753, 2102212464
        %v1766 = vsel %vm1762, %v1750, %v1765
        %v1767 = vsel %vm1761, %v1764, %v1766
        %v1768 = vsel %vm1760, %v1747, %v1750
        %v1769 = vsel %vm1763, %v1756, 920167782
        %v1770 = vsel %vm1762, %v1753, %v1769
        %v1771 = vsel %vm1761, %v1768, %v1770
        %v1772 = vsel %vm1760, %v1750, %v1753
        %v1773 = vsel %vm1763, %v1759, 1326507024
        %v1774 = vsel %vm1762, %v1756, %v1773
        %v1775 = vsel %vm1761, %v1772, %v1774
        %v1776 = vshll.u32 %v1736, 8
        %v1777 = vmul.u32.u64.compose %v1776, %v1775
        %v1778 = vextract.low.u32 %v1777
        %v1779 = vextract.high.u32 %v1777
        %v1780 = vmul.u32.u64.compose %v1776, %v1771
        %v1781 = vextract.low.u32 %v1780
        %v1782 = vextract.high.u32 %v1780
        %v1783 = vmul.u32 %v1776, %v1767
        %v1784 = vadd.s32 %v1779, %v1781
        %vm1785 = vc.u32 %v1779, %v1781
        %v1786 = vadd.s32 %v1782, 1
        %v1787 = vsel %vm1785, %v1786, %v1782
        %v1788 = vadd.s32 %v1783, %v1787
        %v1789 = vadd.s32 %v1788, 536870912
        %v1790 = vshrl.u32 %v1789, 30
        %v1791 = vshll.u32 %v1790, 30
        %v1792 = vsub.s32 %v1788, %v1791
        %vm1793 = vcmp.lt.s32.totalorder %v1792, 0
        %v1794 = vsub.s32 0, %v1792
        %v1795 = vsel %vm1793, %v1794, %v1792
        %v1796 = vclz %v1795
        %v1797 = vsub.s32 %v1796, 2
        %vm1798 = vcmp.gt.s32.totalorder 0, %v1797
        %v1799 = vsel %vm1798, 0, %v1797
        %v1800 = vsub.s32 32, %v1799
        %v1801 = vshll.u32 %v1792, %v1799
        %v1802 = vshrl.u32 %v1784, %v1800
        %v1803 = vor.u32 %v1801, %v1802
        %v1804 = vsub.s32 4294967266, %v1799
        %v1805 = vadd.s32 %v1804, 127
        %v1806 = vshll.u32 %v1805, 23
        %v1807 = vor.u32 4788187, %v1806
        %v1808 = vand.u32 2147483647, %v1807
        %v1810 = vcvt.s32.f32 %v1803
        %v1811 = vmul.f32 %v1810, %v1808
        %v1812 = vxor.u32 %v1811, 2147483648
        %v1813 = vsel %vm1730, %v1812, %v1811
        %v1814 = vsub.s32 4, %v1790
        %v1815 = vsel %vm1730, %v1814, %v1790
        %v1816 = vsel %vm1729, %v480, %v1813
        %v1817 = vsel %vm1729, 0, %v1815
        %v1818 = vcosq.f32.pop %v1816
        %v1819 = vsinq.f32.pop %v1816
        %vm1820 = vweird.f32 %v480
        %v1821 = vand.u32 %v1817, 3
        %vm1822 = vcmp.lt.s32.totalorder %v1821, 2
        %vm1823 = vcmp.eq.s32.totalorder %v1821, 0
        %v1824 = vxor.u32 %v1819, 2147483648
        %v1825 = vsel %vm1823, %v1818, %v1824
        %vm1826 = vcmp.eq.s32.totalorder %v1821, 2
        %v1827 = vxor.u32 %v1818, 2147483648
        %v1828 = vsel %vm1826, %v1827, %v1819
        %v1829 = vsel %vm1822, %v1825, %v1828
        %v1830 = vsel %vm1820, nan, %v1829
        %v1831 = vand.u32 2147483647, %v481
        %vm1832 = vcmp.le.f32.partialorder %v1831, 0.7853982
        %vm1833 = vcmp.lt.s32.totalorder %v481, 0
        %v1834 = vand.u32 %v481, 2139095040
        %v1835 = vshrl.u32 %v1834, 23
        %v1836 = vsub.s32 %v1835, 127
        %v1837 = vand.u32 2147483647, %v481
        %v1838 = vand.u32 %v1837, 8388607
        %v1839 = vor.u32 %v1838, 8388608
        %v1840 = vsub.s32 0, %v1839
        %v1841 = vadd.s32 %v1836, 1
        %vm1842 = vcmp.gt.s32.totalorder %v1841, 0
        %v1843 = vsel %vm1842, %v1841, 0
        %v1844 = vshrl.u32 %v1843, 5
        %v1845 = vand.u32 %v1843, 31
        %v1846 = vsub.s32 32, %v1845
        %v1847 = vshrl.u32 683565275, %v1846
        %v1848 = vshll.u32 683565275, %v1845
        %v1849 = vshrl.u32 2475754826, %v1846
        %v1850 = vor.u32 %v1848, %v1849
        %v1851 = vshll.u32 2475754826, %v1845
        %v1852 = vshrl.u32 2131351028, %v1846
        %v1853 = vor.u32 %v1851, %v1852
        %v1854 = vshll.u32 2131351028, %v1845
        %v1855 = vshrl.u32 2102212464, %v1846
        %v1856 = vor.u32 %v1854, %v1855
        %v1857 = vshll.u32 2102212464, %v1845
        %v1858 = vshrl.u32 920167782, %v1846
        %v1859 = vor.u32 %v1857, %v1858
        %v1860 = vshll.u32 920167782, %v1845
        %v1861 = vshrl.u32 1326507024, %v1846
        %v1862 = vor.u32 %v1860, %v1861
        %vm1863 = vcmp.lt.s32.totalorder %v1844, 1
        %vm1864 = vcmp.lt.s32.totalorder %v1844, 2
        %vm1865 = vcmp.lt.s32.totalorder %v1844, 3
        %vm1866 = vcmp.lt.s32.totalorder %v1844, 4
        %v1867 = vsel %vm1863, %v1847, %v1850
        %v1868 = vsel %vm1866, %v1856, 2102212464
        %v1869 = vsel %vm1865, %v1853, %v1868
        %v1870 = vsel %vm1864, %v1867, %v1869
        %v1871 = vsel %vm1863, %v1850, %v1853
        %v1872 = vsel %vm1866, %v1859, 920167782
        %v1873 = vsel %vm1865, %v1856, %v1872
        %v1874 = vsel %vm1864, %v1871, %v1873
        %v1875 = vsel %vm1863, %v1853, %v1856
        %v1876 = vsel %vm1866, %v1862, 1326507024
        %v1877 = vsel %vm1865, %v1859, %v1876
        %v1878 = vsel %vm1864, %v1875, %v1877
        %v1879 = vshll.u32 %v1839, 8
        %v1880 = vmul.u32.u64.compose %v1879, %v1878
        %v1881 = vextract.low.u32 %v1880
        %v1882 = vextract.high.u32 %v1880
        %v1883 = vmul.u32.u64.compose %v1879, %v1874
        %v1884 = vextract.low.u32 %v1883
        %v1885 = vextract.high.u32 %v1883
        %v1886 = vmul.u32 %v1879, %v1870
        %v1887 = vadd.s32 %v1882, %v1884
        %vm1888 = vc.u32 %v1882, %v1884
        %v1889 = vadd.s32 %v1885, 1
        %v1890 = vsel %vm1888, %v1889, %v1885
        %v1891 = vadd.s32 %v1886, %v1890
        %v1892 = vadd.s32 %v1891, 536870912
        %v1893 = vshrl.u32 %v1892, 30
        %v1894 = vshll.u32 %v1893, 30
        %v1895 = vsub.s32 %v1891, %v1894
        %vm1896 = vcmp.lt.s32.totalorder %v1895, 0
        %v1897 = vsub.s32 0, %v1895
        %v1898 = vsel %vm1896, %v1897, %v1895
        %v1899 = vclz %v1898
        %v1900 = vsub.s32 %v1899, 2
        %vm1901 = vcmp.gt.s32.totalorder 0, %v1900
        %v1902 = vsel %vm1901, 0, %v1900
        %v1903 = vsub.s32 32, %v1902
        %v1904 = vshll.u32 %v1895, %v1902
        %v1905 = vshrl.u32 %v1887, %v1903
        %v1906 = vor.u32 %v1904, %v1905
        %v1907 = vsub.s32 4294967266, %v1902
        %v1908 = vadd.s32 %v1907, 127
        %v1909 = vshll.u32 %v1908, 23
        %v1910 = vor.u32 4788187, %v1909
        %v1911 = vand.u32 2147483647, %v1910
        %v1913 = vcvt.s32.f32 %v1906
        %v1914 = vmul.f32 %v1913, %v1911
        %v1915 = vxor.u32 %v1914, 2147483648
        %v1916 = vsel %vm1833, %v1915, %v1914
        %v1917 = vsub.s32 4, %v1893
        %v1918 = vsel %vm1833, %v1917, %v1893
        %v1919 = vsel %vm1832, %v481, %v1916
        %v1920 = vsel %vm1832, 0, %v1918
        %v1921 = vcosq.f32.pop %v1919
        %v1922 = vsinq.f32.pop %v1919
        %vm1923 = vweird.f32 %v481
        %v1924 = vand.u32 %v1920, 3
        %vm1925 = vcmp.lt.s32.totalorder %v1924, 2
        %vm1926 = vcmp.eq.s32.totalorder %v1924, 0
        %v1927 = vxor.u32 %v1922, 2147483648
        %v1928 = vsel %vm1926, %v1921, %v1927
        %vm1929 = vcmp.eq.s32.totalorder %v1924, 2
        %v1930 = vxor.u32 %v1921, 2147483648
        %v1931 = vsel %vm1929, %v1930, %v1922
        %v1932 = vsel %vm1925, %v1928, %v1931
        %v1933 = vsel %vm1923, nan, %v1932
        %v1934 = vand.u32 2147483647, %v482
        %vm1935 = vcmp.le.f32.partialorder %v1934, 0.7853982
        %vm1936 = vcmp.lt.s32.totalorder %v482, 0
        %v1937 = vand.u32 %v482, 2139095040
        %v1938 = vshrl.u32 %v1937, 23
        %v1939 = vsub.s32 %v1938, 127
        %v1940 = vand.u32 2147483647, %v482
        %v1941 = vand.u32 %v1940, 8388607
        %v1942 = vor.u32 %v1941, 8388608
        %v1943 = vsub.s32 0, %v1942
        %v1944 = vadd.s32 %v1939, 1
        %vm1945 = vcmp.gt.s32.totalorder %v1944, 0
        %v1946 = vsel %vm1945, %v1944, 0
        %v1947 = vshrl.u32 %v1946, 5
        %v1948 = vand.u32 %v1946, 31
        %v1949 = vsub.s32 32, %v1948
        %v1950 = vshrl.u32 683565275, %v1949
        %v1951 = vshll.u32 683565275, %v1948
        %v1952 = vshrl.u32 2475754826, %v1949
        %v1953 = vor.u32 %v1951, %v1952
        %v1954 = vshll.u32 2475754826, %v1948
        %v1955 = vshrl.u32 2131351028, %v1949
        %v1956 = vor.u32 %v1954, %v1955
        %v1957 = vshll.u32 2131351028, %v1948
        %v1958 = vshrl.u32 2102212464, %v1949
        %v1959 = vor.u32 %v1957, %v1958
        %v1960 = vshll.u32 2102212464, %v1948
        %v1961 = vshrl.u32 920167782, %v1949
        %v1962 = vor.u32 %v1960, %v1961
        %v1963 = vshll.u32 920167782, %v1948
        %v1964 = vshrl.u32 1326507024, %v1949
        %v1965 = vor.u32 %v1963, %v1964
        %vm1966 = vcmp.lt.s32.totalorder %v1947, 1
        %vm1967 = vcmp.lt.s32.totalorder %v1947, 2
        %vm1968 = vcmp.lt.s32.totalorder %v1947, 3
        %vm1969 = vcmp.lt.s32.totalorder %v1947, 4
        %v1970 = vsel %vm1966, %v1950, %v1953
        %v1971 = vsel %vm1969, %v1959, 2102212464
        %v1972 = vsel %vm1968, %v1956, %v1971
        %v1973 = vsel %vm1967, %v1970, %v1972
        %v1974 = vsel %vm1966, %v1953, %v1956
        %v1975 = vsel %vm1969, %v1962, 920167782
        %v1976 = vsel %vm1968, %v1959, %v1975
        %v1977 = vsel %vm1967, %v1974, %v1976
        %v1978 = vsel %vm1966, %v1956, %v1959
        %v1979 = vsel %vm1969, %v1965, 1326507024
        %v1980 = vsel %vm1968, %v1962, %v1979
        %v1981 = vsel %vm1967, %v1978, %v1980
        %v1982 = vshll.u32 %v1942, 8
        %v1983 = vmul.u32.u64.compose %v1982, %v1981
        %v1984 = vextract.low.u32 %v1983
        %v1985 = vextract.high.u32 %v1983
        %v1986 = vmul.u32.u64.compose %v1982, %v1977
        %v1987 = vextract.low.u32 %v1986
        %v1988 = vextract.high.u32 %v1986
        %v1989 = vmul.u32 %v1982, %v1973
        %v1990 = vadd.s32 %v1985, %v1987
        %vm1991 = vc.u32 %v1985, %v1987
        %v1992 = vadd.s32 %v1988, 1
        %v1993 = vsel %vm1991, %v1992, %v1988
        %v1994 = vadd.s32 %v1989, %v1993
        %v1995 = vadd.s32 %v1994, 536870912
        %v1996 = vshrl.u32 %v1995, 30
        %v1997 = vshll.u32 %v1996, 30
        %v1998 = vsub.s32 %v1994, %v1997
        %vm1999 = vcmp.lt.s32.totalorder %v1998, 0
        %v2000 = vsub.s32 0, %v1998
        %v2001 = vsel %vm1999, %v2000, %v1998
        %v2002 = vclz %v2001
        %v2003 = vsub.s32 %v2002, 2
        %vm2004 = vcmp.gt.s32.totalorder 0, %v2003
        %v2005 = vsel %vm2004, 0, %v2003
        %v2006 = vsub.s32 32, %v2005
        %v2007 = vshll.u32 %v1998, %v2005
        %v2008 = vshrl.u32 %v1990, %v2006
        %v2009 = vor.u32 %v2007, %v2008
        %v2010 = vsub.s32 4294967266, %v2005
        %v2011 = vadd.s32 %v2010, 127
        %v2012 = vshll.u32 %v2011, 23
        %v2013 = vor.u32 4788187, %v2012
        %v2014 = vand.u32 2147483647, %v2013
        %v2016 = vcvt.s32.f32 %v2009
        %v2017 = vmul.f32 %v2016, %v2014
        %v2018 = vxor.u32 %v2017, 2147483648
        %v2019 = vsel %vm1936, %v2018, %v2017
        %v2020 = vsub.s32 4, %v1996
        %v2021 = vsel %vm1936, %v2020, %v1996
        %v2022 = vsel %vm1935, %v482, %v2019
        %v2023 = vsel %vm1935, 0, %v2021
        %v2024 = vcosq.f32.pop %v2022
        %v2025 = vsinq.f32.pop %v2022
        %vm2026 = vweird.f32 %v482
        %v2027 = vand.u32 %v2023, 3
        %vm2028 = vcmp.lt.s32.totalorder %v2027, 2
        %vm2029 = vcmp.eq.s32.totalorder %v2027, 0
        %v2030 = vxor.u32 %v2025, 2147483648
        %v2031 = vsel %vm2029, %v2024, %v2030
        %vm2032 = vcmp.eq.s32.totalorder %v2027, 2
        %v2033 = vxor.u32 %v2024, 2147483648
        %v2034 = vsel %vm2032, %v2033, %v2025
        %v2035 = vsel %vm2028, %v2031, %v2034
        %v2036 = vsel %vm2026, nan, %v2035
        %v2037 = vand.u32 2147483647, %v483
        %vm2038 = vcmp.le.f32.partialorder %v2037, 0.7853982
        %vm2039 = vcmp.lt.s32.totalorder %v483, 0
        %v2040 = vand.u32 %v483, 2139095040
        %v2041 = vshrl.u32 %v2040, 23
        %v2042 = vsub.s32 %v2041, 127
        %v2043 = vand.u32 2147483647, %v483
        %v2044 = vand.u32 %v2043, 8388607
        %v2045 = vor.u32 %v2044, 8388608
        %v2046 = vsub.s32 0, %v2045
        %v2047 = vadd.s32 %v2042, 1
        %vm2048 = vcmp.gt.s32.totalorder %v2047, 0
        %v2049 = vsel %vm2048, %v2047, 0
        %v2050 = vshrl.u32 %v2049, 5
        %v2051 = vand.u32 %v2049, 31
        %v2052 = vsub.s32 32, %v2051
        %v2053 = vshrl.u32 683565275, %v2052
        %v2054 = vshll.u32 683565275, %v2051
        %v2055 = vshrl.u32 2475754826, %v2052
        %v2056 = vor.u32 %v2054, %v2055
        %v2057 = vshll.u32 2475754826, %v2051
        %v2058 = vshrl.u32 2131351028, %v2052
        %v2059 = vor.u32 %v2057, %v2058
        %v2060 = vshll.u32 2131351028, %v2051
        %v2061 = vshrl.u32 2102212464, %v2052
        %v2062 = vor.u32 %v2060, %v2061
        %v2063 = vshll.u32 2102212464, %v2051
        %v2064 = vshrl.u32 920167782, %v2052
        %v2065 = vor.u32 %v2063, %v2064
        %v2066 = vshll.u32 920167782, %v2051
        %v2067 = vshrl.u32 1326507024, %v2052
        %v2068 = vor.u32 %v2066, %v2067
        %vm2069 = vcmp.lt.s32.totalorder %v2050, 1
        %vm2070 = vcmp.lt.s32.totalorder %v2050, 2
        %vm2071 = vcmp.lt.s32.totalorder %v2050, 3
        %vm2072 = vcmp.lt.s32.totalorder %v2050, 4
        %v2073 = vsel %vm2069, %v2053, %v2056
        %v2074 = vsel %vm2072, %v2062, 2102212464
        %v2075 = vsel %vm2071, %v2059, %v2074
        %v2076 = vsel %vm2070, %v2073, %v2075
        %v2077 = vsel %vm2069, %v2056, %v2059
        %v2078 = vsel %vm2072, %v2065, 920167782
        %v2079 = vsel %vm2071, %v2062, %v2078
        %v2080 = vsel %vm2070, %v2077, %v2079
        %v2081 = vsel %vm2069, %v2059, %v2062
        %v2082 = vsel %vm2072, %v2068, 1326507024
        %v2083 = vsel %vm2071, %v2065, %v2082
        %v2084 = vsel %vm2070, %v2081, %v2083
        %v2085 = vshll.u32 %v2045, 8
        %v2086 = vmul.u32.u64.compose %v2085, %v2084
        %v2087 = vextract.low.u32 %v2086
        %v2088 = vextract.high.u32 %v2086
        %v2089 = vmul.u32.u64.compose %v2085, %v2080
        %v2090 = vextract.low.u32 %v2089
        %v2091 = vextract.high.u32 %v2089
        %v2092 = vmul.u32 %v2085, %v2076
        %v2093 = vadd.s32 %v2088, %v2090
        %vm2094 = vc.u32 %v2088, %v2090
        %v2095 = vadd.s32 %v2091, 1
        %v2096 = vsel %vm2094, %v2095, %v2091
        %v2097 = vadd.s32 %v2092, %v2096
        %v2098 = vadd.s32 %v2097, 536870912
        %v2099 = vshrl.u32 %v2098, 30
        %v2100 = vshll.u32 %v2099, 30
        %v2101 = vsub.s32 %v2097, %v2100
        %vm2102 = vcmp.lt.s32.totalorder %v2101, 0
        %v2103 = vsub.s32 0, %v2101
        %v2104 = vsel %vm2102, %v2103, %v2101
        %v2105 = vclz %v2104
        %v2106 = vsub.s32 %v2105, 2
        %vm2107 = vcmp.gt.s32.totalorder 0, %v2106
        %v2108 = vsel %vm2107, 0, %v2106
        %v2109 = vsub.s32 32, %v2108
        %v2110 = vshll.u32 %v2101, %v2108
        %v2111 = vshrl.u32 %v2093, %v2109
        %v2112 = vor.u32 %v2110, %v2111
        %v2113 = vsub.s32 4294967266, %v2108
        %v2114 = vadd.s32 %v2113, 127
        %v2115 = vshll.u32 %v2114, 23
        %v2116 = vor.u32 4788187, %v2115
        %v2117 = vand.u32 2147483647, %v2116
        %v2119 = vcvt.s32.f32 %v2112
        %v2120 = vmul.f32 %v2119, %v2117
        %v2121 = vxor.u32 %v2120, 2147483648
        %v2122 = vsel %vm2039, %v2121, %v2120
        %v2123 = vsub.s32 4, %v2099
        %v2124 = vsel %vm2039, %v2123, %v2099
        %v2125 = vsel %vm2038, %v483, %v2122
        %v2126 = vsel %vm2038, 0, %v2124
        %v2127 = vcosq.f32.pop %v2125
        %v2128 = vsinq.f32.pop %v2125
        %vm2129 = vweird.f32 %v483
        %v2130 = vand.u32 %v2126, 3
        %vm2131 = vcmp.lt.s32.totalorder %v2130, 2
        %vm2132 = vcmp.eq.s32.totalorder %v2130, 0
        %v2133 = vxor.u32 %v2128, 2147483648
        %v2134 = vsel %vm2132, %v2127, %v2133
        %vm2135 = vcmp.eq.s32.totalorder %v2130, 2
        %v2136 = vxor.u32 %v2127, 2147483648
        %v2137 = vsel %vm2135, %v2136, %v2128
        %v2138 = vsel %vm2131, %v2134, %v2137
        %v2139 = vsel %vm2129, nan, %v2138
        %v2140 = vld [vmem:[%s2] sm:$0xff]
        %v2141 = vld [vmem:[%s2 + $0x8] sm:$0xff]
        %v2142 = vld [vmem:[%s2 + $0x10] sm:$0xff]
        %v2143 = vld [vmem:[%s2 + $0x18] sm:$0xff]
        %v2144 = vld [vmem:[%s3] sm:$0xff]
        %v2145 = vld [vmem:[%s3 + $0x8] sm:$0xff]
        %v2146 = vld [vmem:[%s3 + $0x10] sm:$0xff]
        %v2147 = vld [vmem:[%s3 + $0x18] sm:$0xff]
        %vm2148 = vcmask 130048
        %v2150 = vsel %vm2148, %v2144, 0
        %v2153 = vsel %vm2148, %v2145, 0
        %v2156 = vsel %vm2148, %v2146, 0
        %v2159 = vsel %vm2148, %v2147, 0
        %2161 = vmatprep.subr.mxu0 0.0
        %2162 = vmatpush1.msra.mxu0 0.0
        %2163 = vmatprep.subr.mxu0 0.0
        %2164 = vmatpush1.msra.mxu0 0.0
        %2165 = vmatprep.subr.mxu0 0.0
        %2166 = vmatpush1.msra.mxu0 0.0
        %2167 = vmatprep.subr.mxu0 0.0
        %2168 = vmatpush1.msra.mxu0 0.0
        %2169 = vmatprep.subr.mxu0 0.0
        %2170 = vmatpush1.msra.mxu0 0.0
        %2171 = vmatprep.subr.mxu0 0.0
        %2172 = vmatpush1.msra.mxu0 0.0
        %2173 = vmatprep.subr.mxu0 0.0
        %2174 = vmatpush1.msra.mxu0 0.0
        %2175 = vmatprep.subr.mxu0 0.0
        %2176 = vmatpush1.msra.mxu0 0.0
        %2177 = vmatprep.subr.mxu0 0.0
        %2178 = vmatpush1.msra.mxu0 0.0
        %2179 = vmatprep.subr.mxu0 0.0
        %2180 = vmatpush1.msra.mxu0 0.0
        %2181 = vmatprep.subr.mxu0 0.0
        %2182 = vmatpush1.msra.mxu0 0.0
        %2183 = vmatprep.subr.mxu0 0.0
        %2184 = vmatpush1.msra.mxu0 0.0
        %2185 = vmatprep.subr.mxu0 0.0
        %2186 = vmatpush1.msra.mxu0 0.0
        %2187 = vmatprep.subr.mxu0 0.0
        %2188 = vmatpush1.msra.mxu0 0.0
        %2189 = vmatprep.subr.mxu0 %v1933
        %2190 = vmatpush1.msra.mxu0 %v1830
        %2191 = vmatprep.subr.mxu0 %v1521
        %2192 = vmatpush1.msra.mxu0 %v1418
        %2193 = vmatprep.subr.mxu0 0.0
        %2194 = vmatpush2.msra.mxu0 0.0
        %2195 = vmatprep.subr.mxu0 0.0
        %2196 = vmatpush2.msra.mxu0 0.0
        %2197 = vmatprep.subr.mxu0 0.0
        %2198 = vmatpush2.msra.mxu0 0.0
        %2199 = vmatprep.subr.mxu0 0.0
        %2200 = vmatpush2.msra.mxu0 0.0
        %2201 = vmatprep.subr.mxu0 0.0
        %2202 = vmatpush2.msra.mxu0 0.0
        %2203 = vmatprep.subr.mxu0 0.0
        %2204 = vmatpush2.msra.mxu0 0.0
        %2205 = vmatprep.subr.mxu0 0.0
        %2206 = vmatpush2.msra.mxu0 0.0
        %2207 = vmatprep.subr.mxu0 0.0
        %2208 = vmatpush2.msra.mxu0 0.0
        %2209 = vmatprep.subr.mxu0 0.0
        %2210 = vmatpush2.msra.mxu0 0.0
        %2211 = vmatprep.subr.mxu0 0.0
        %2212 = vmatpush2.msra.mxu0 0.0
        %2213 = vmatprep.subr.mxu0 0.0
        %2214 = vmatpush2.msra.mxu0 0.0
        %2215 = vmatprep.subr.mxu0 0.0
        %2216 = vmatpush2.msra.mxu0 0.0
        %2217 = vmatprep.subr.mxu0 0.0
        %2218 = vmatpush2.msra.mxu0 0.0
        %2219 = vmatprep.subr.mxu0 0.0
        %2220 = vmatpush2.msra.mxu0 0.0
        %2221 = vmatprep.subr.mxu0 0.0
        %2222 = vmatpush2.msra.mxu0 0.0
        %2223 = vmatprep.subr.mxu0 0.0
        %2224 = vmatpush2.msra.mxu0 0.0
        %2225 = vmatprep.mubr.f32.mxu0 0.0
        %2226 = vmatmul.mubr.f32.gmra.mxu0 %v2150
        %v2227 = vpop.f32.mrf.mxu0
        %v2228 = vadd.f32 0.0, %v2227
        %v2229 = vpop.f32.mrf.mxu0
        %v2230 = vadd.f32 0.0, %v2229
        %2231 = vmatprep.mubr.f32.mxu0 0.0
        %2232 = vmatmul.mubr.f32.gmra.mxu0 %v2153
        %v2233 = vpop.f32.mrf.mxu0
        %v2234 = vadd.f32 0.0, %v2233
        %v2235 = vpop.f32.mrf.mxu0
        %v2236 = vadd.f32 0.0, %v2235
        %2237 = vmatprep.mubr.f32.mxu0 0.0
        %2238 = vmatmul.mubr.f32.gmra.mxu0 %v2156
        %v2239 = vpop.f32.mrf.mxu0
        %v2240 = vadd.f32 0.0, %v2239
        %v2241 = vpop.f32.mrf.mxu0
        %v2242 = vadd.f32 0.0, %v2241
        %2243 = vmatprep.mubr.f32.mxu0 0.0
        %2244 = vmatmul.mubr.f32.gmra.mxu0 %v2159
        %v2245 = vpop.f32.mrf.mxu0
        %v2246 = vadd.f32 0.0, %v2245
        %v2247 = vpop.f32.mrf.mxu0
        %v2248 = vadd.f32 0.0, %v2247
        %2249 = vdwg.mxu0
        %2250 = vmatprep.subr.mxu0 0.0
        %2251 = vmatpush1.msra.mxu0 0.0
        %2252 = vmatprep.subr.mxu0 0.0
        %2253 = vmatpush1.msra.mxu0 0.0
        %2254 = vmatprep.subr.mxu0 0.0
        %2255 = vmatpush1.msra.mxu0 0.0
        %2256 = vmatprep.subr.mxu0 0.0
        %2257 = vmatpush1.msra.mxu0 0.0
        %2258 = vmatprep.subr.mxu0 0.0
        %2259 = vmatpush1.msra.mxu0 0.0
        %2260 = vmatprep.subr.mxu0 0.0
        %2261 = vmatpush1.msra.mxu0 0.0
        %2262 = vmatprep.subr.mxu0 0.0
        %2263 = vmatpush1.msra.mxu0 0.0
        %2264 = vmatprep.subr.mxu0 0.0
        %2265 = vmatpush1.msra.mxu0 0.0
        %2266 = vmatprep.subr.mxu0 0.0
        %2267 = vmatpush1.msra.mxu0 0.0
        %2268 = vmatprep.subr.mxu0 0.0
        %2269 = vmatpush1.msra.mxu0 0.0
        %2270 = vmatprep.subr.mxu0 0.0
        %2271 = vmatpush1.msra.mxu0 0.0
        %2272 = vmatprep.subr.mxu0 0.0
        %2273 = vmatpush1.msra.mxu0 0.0
        %2274 = vmatprep.subr.mxu0 0.0
        %2275 = vmatpush1.msra.mxu0 0.0
        %2276 = vmatprep.subr.mxu0 0.0
        %2277 = vmatpush1.msra.mxu0 0.0
        %2278 = vmatprep.subr.mxu0 %v2139
        %2279 = vmatpush1.msra.mxu0 %v2036
        %2280 = vmatprep.subr.mxu0 %v1727
        %2281 = vmatpush1.msra.mxu0 %v1624
        %2282 = vmatprep.subr.mxu0 0.0
        %2283 = vmatpush2.msra.mxu0 0.0
        %2284 = vmatprep.subr.mxu0 0.0
        %2285 = vmatpush2.msra.mxu0 0.0
        %2286 = vmatprep.subr.mxu0 0.0
        %2287 = vmatpush2.msra.mxu0 0.0
        %2288 = vmatprep.subr.mxu0 0.0
        %2289 = vmatpush2.msra.mxu0 0.0
        %2290 = vmatprep.subr.mxu0 0.0
        %2291 = vmatpush2.msra.mxu0 0.0
        %2292 = vmatprep.subr.mxu0 0.0
        %2293 = vmatpush2.msra.mxu0 0.0
        %2294 = vmatprep.subr.mxu0 0.0
        %2295 = vmatpush2.msra.mxu0 0.0
        %2296 = vmatprep.subr.mxu0 0.0
        %2297 = vmatpush2.msra.mxu0 0.0
        %2298 = vmatprep.subr.mxu0 0.0
        %2299 = vmatpush2.msra.mxu0 0.0
        %2300 = vmatprep.subr.mxu0 0.0
        %2301 = vmatpush2.msra.mxu0 0.0
        %2302 = vmatprep.subr.mxu0 0.0
        %2303 = vmatpush2.msra.mxu0 0.0
        %2304 = vmatprep.subr.mxu0 0.0
        %2305 = vmatpush2.msra.mxu0 0.0
        %2306 = vmatprep.subr.mxu0 0.0
        %2307 = vmatpush2.msra.mxu0 0.0
        %2308 = vmatprep.subr.mxu0 0.0
        %2309 = vmatpush2.msra.mxu0 0.0
        %2310 = vmatprep.subr.mxu0 0.0
        %2311 = vmatpush2.msra.mxu0 0.0
        %2312 = vmatprep.subr.mxu0 0.0
        %2313 = vmatpush2.msra.mxu0 0.0
        %2314 = vmatprep.mubr.f32.mxu0 0.0
        %2315 = vmatmul.mubr.f32.gmra.mxu0 %v2150
        %v2316 = vpop.f32.mrf.mxu0
        %v2317 = vadd.f32 0.0, %v2316
        %v2318 = vpop.f32.mrf.mxu0
        %v2319 = vadd.f32 0.0, %v2318
        %2320 = vmatprep.mubr.f32.mxu0 0.0
        %2321 = vmatmul.mubr.f32.gmra.mxu0 %v2153
        %v2322 = vpop.f32.mrf.mxu0
        %v2323 = vadd.f32 0.0, %v2322
        %v2324 = vpop.f32.mrf.mxu0
        %v2325 = vadd.f32 0.0, %v2324
        %2326 = vmatprep.mubr.f32.mxu0 0.0
        %2327 = vmatmul.mubr.f32.gmra.mxu0 %v2156
        %v2328 = vpop.f32.mrf.mxu0
        %v2329 = vadd.f32 0.0, %v2328
        %v2330 = vpop.f32.mrf.mxu0
        %v2331 = vadd.f32 0.0, %v2330
        %2332 = vmatprep.mubr.f32.mxu0 0.0
        %2333 = vmatmul.mubr.f32.gmra.mxu0 %v2159
        %v2334 = vpop.f32.mrf.mxu0
        %v2335 = vadd.f32 0.0, %v2334
        %v2336 = vpop.f32.mrf.mxu0
        %v2337 = vadd.f32 0.0, %v2336
        %2338 = vdwg.mxu0
        %v2340 = vsel %vm2148, %v2140, 0
        %v2343 = vsel %vm2148, %v2141, 0
        %v2346 = vsel %vm2148, %v2142, 0
        %v2349 = vsel %vm2148, %v2143, 0
        %2351 = vmatprep.subr.mxu0 0.0
        %2352 = vmatpush1.msra.mxu0 0.0
        %2353 = vmatprep.subr.mxu0 0.0
        %2354 = vmatpush1.msra.mxu0 0.0
        %2355 = vmatprep.subr.mxu0 0.0
        %2356 = vmatpush1.msra.mxu0 0.0
        %2357 = vmatprep.subr.mxu0 0.0
        %2358 = vmatpush1.msra.mxu0 0.0
        %2359 = vmatprep.subr.mxu0 0.0
        %2360 = vmatpush1.msra.mxu0 0.0
        %2361 = vmatprep.subr.mxu0 0.0
        %2362 = vmatpush1.msra.mxu0 0.0
        %2363 = vmatprep.subr.mxu0 0.0
        %2364 = vmatpush1.msra.mxu0 0.0
        %2365 = vmatprep.subr.mxu0 0.0
        %2366 = vmatpush1.msra.mxu0 0.0
        %2367 = vmatprep.subr.mxu0 0.0
        %2368 = vmatpush1.msra.mxu0 0.0
        %2369 = vmatprep.subr.mxu0 0.0
        %2370 = vmatpush1.msra.mxu0 0.0
        %2371 = vmatprep.subr.mxu0 0.0
        %2372 = vmatpush1.msra.mxu0 0.0
        %2373 = vmatprep.subr.mxu0 0.0
        %2374 = vmatpush1.msra.mxu0 0.0
        %2375 = vmatprep.subr.mxu0 0.0
        %2376 = vmatpush1.msra.mxu0 0.0
        %2377 = vmatprep.subr.mxu0 0.0
        %2378 = vmatpush1.msra.mxu0 0.0
        %2379 = vmatprep.subr.mxu0 %v1107
        %2380 = vmatpush1.msra.mxu0 %v1003
        %2381 = vmatprep.subr.mxu0 %v691
        %2382 = vmatpush1.msra.mxu0 %v587
        %2383 = vmatprep.subr.mxu0 0.0
        %2384 = vmatpush2.msra.mxu0 0.0
        %2385 = vmatprep.subr.mxu0 0.0
        %2386 = vmatpush2.msra.mxu0 0.0
        %2387 = vmatprep.subr.mxu0 0.0
        %2388 = vmatpush2.msra.mxu0 0.0
        %2389 = vmatprep.subr.mxu0 0.0
        %2390 = vmatpush2.msra.mxu0 0.0
        %2391 = vmatprep.subr.mxu0 0.0
        %2392 = vmatpush2.msra.mxu0 0.0
        %2393 = vmatprep.subr.mxu0 0.0
        %2394 = vmatpush2.msra.mxu0 0.0
        %2395 = vmatprep.subr.mxu0 0.0
        %2396 = vmatpush2.msra.mxu0 0.0
        %2397 = vmatprep.subr.mxu0 0.0
        %2398 = vmatpush2.msra.mxu0 0.0
        %2399 = vmatprep.subr.mxu0 0.0
        %2400 = vmatpush2.msra.mxu0 0.0
        %2401 = vmatprep.subr.mxu0 0.0
        %2402 = vmatpush2.msra.mxu0 0.0
        %2403 = vmatprep.subr.mxu0 0.0
        %2404 = vmatpush2.msra.mxu0 0.0
        %2405 = vmatprep.subr.mxu0 0.0
        %2406 = vmatpush2.msra.mxu0 0.0
        %2407 = vmatprep.subr.mxu0 0.0
        %2408 = vmatpush2.msra.mxu0 0.0
        %2409 = vmatprep.subr.mxu0 0.0
        %2410 = vmatpush2.msra.mxu0 0.0
        %2411 = vmatprep.subr.mxu0 0.0
        %2412 = vmatpush2.msra.mxu0 0.0
        %2413 = vmatprep.subr.mxu0 0.0
        %2414 = vmatpush2.msra.mxu0 0.0
        %2415 = vmatprep.mubr.f32.mxu0 0.0
        %2416 = vmatmul.mubr.f32.gmra.mxu0 %v2340
        %v2417 = vpop.f32.mrf.mxu0
        %v2418 = vadd.f32 %v2228, %v2417
        %v2419 = vpop.f32.mrf.mxu0
        %v2420 = vadd.f32 %v2230, %v2419
        %2421 = vmatprep.mubr.f32.mxu0 0.0
        %2422 = vmatmul.mubr.f32.gmra.mxu0 %v2343
        %v2423 = vpop.f32.mrf.mxu0
        %v2424 = vadd.f32 %v2234, %v2423
        %v2425 = vpop.f32.mrf.mxu0
        %v2426 = vadd.f32 %v2236, %v2425
        %2427 = vmatprep.mubr.f32.mxu0 0.0
        %2428 = vmatmul.mubr.f32.gmra.mxu0 %v2346
        %v2429 = vpop.f32.mrf.mxu0
        %v2430 = vadd.f32 %v2240, %v2429
        %v2431 = vpop.f32.mrf.mxu0
        %v2432 = vadd.f32 %v2242, %v2431
        %2433 = vmatprep.mubr.f32.mxu0 0.0
        %2434 = vmatmul.mubr.f32.gmra.mxu0 %v2349
        %v2435 = vpop.f32.mrf.mxu0
        %v2436 = vadd.f32 %v2246, %v2435
        %v2437 = vpop.f32.mrf.mxu0
        %v2438 = vadd.f32 %v2248, %v2437
        %2439 = vdwg.mxu0
        %2440 = vmatprep.subr.mxu0 0.0
        %2441 = vmatpush1.msra.mxu0 0.0
        %2442 = vmatprep.subr.mxu0 0.0
        %2443 = vmatpush1.msra.mxu0 0.0
        %2444 = vmatprep.subr.mxu0 0.0
        %2445 = vmatpush1.msra.mxu0 0.0
        %2446 = vmatprep.subr.mxu0 0.0
        %2447 = vmatpush1.msra.mxu0 0.0
        %2448 = vmatprep.subr.mxu0 0.0
        %2449 = vmatpush1.msra.mxu0 0.0
        %2450 = vmatprep.subr.mxu0 0.0
        %2451 = vmatpush1.msra.mxu0 0.0
        %2452 = vmatprep.subr.mxu0 0.0
        %2453 = vmatpush1.msra.mxu0 0.0
        %2454 = vmatprep.subr.mxu0 0.0
        %2455 = vmatpush1.msra.mxu0 0.0
        %2456 = vmatprep.subr.mxu0 0.0
        %2457 = vmatpush1.msra.mxu0 0.0
        %2458 = vmatprep.subr.mxu0 0.0
        %2459 = vmatpush1.msra.mxu0 0.0
        %2460 = vmatprep.subr.mxu0 0.0
        %2461 = vmatpush1.msra.mxu0 0.0
        %2462 = vmatprep.subr.mxu0 0.0
        %2463 = vmatpush1.msra.mxu0 0.0
        %2464 = vmatprep.subr.mxu0 0.0
        %2465 = vmatpush1.msra.mxu0 0.0
        %2466 = vmatprep.subr.mxu0 0.0
        %2467 = vmatpush1.msra.mxu0 0.0
        %2468 = vmatprep.subr.mxu0 %v1315
        %2469 = vmatpush1.msra.mxu0 %v1211
        %2470 = vmatprep.subr.mxu0 %v899
        %2471 = vmatpush1.msra.mxu0 %v795
        %2472 = vmatprep.subr.mxu0 0.0
        %2473 = vmatpush2.msra.mxu0 0.0
        %2474 = vmatprep.subr.mxu0 0.0
        %2475 = vmatpush2.msra.mxu0 0.0
        %2476 = vmatprep.subr.mxu0 0.0
        %2477 = vmatpush2.msra.mxu0 0.0
        %2478 = vmatprep.subr.mxu0 0.0
        %2479 = vmatpush2.msra.mxu0 0.0
        %2480 = vmatprep.subr.mxu0 0.0
        %2481 = vmatpush2.msra.mxu0 0.0
        %2482 = vmatprep.subr.mxu0 0.0
        %2483 = vmatpush2.msra.mxu0 0.0
        %2484 = vmatprep.subr.mxu0 0.0
        %2485 = vmatpush2.msra.mxu0 0.0
        %2486 = vmatprep.subr.mxu0 0.0
        %2487 = vmatpush2.msra.mxu0 0.0
        %2488 = vmatprep.subr.mxu0 0.0
        %2489 = vmatpush2.msra.mxu0 0.0
        %2490 = vmatprep.subr.mxu0 0.0
        %2491 = vmatpush2.msra.mxu0 0.0
        %2492 = vmatprep.subr.mxu0 0.0
        %2493 = vmatpush2.msra.mxu0 0.0
        %2494 = vmatprep.subr.mxu0 0.0
        %2495 = vmatpush2.msra.mxu0 0.0
        %2496 = vmatprep.subr.mxu0 0.0
        %2497 = vmatpush2.msra.mxu0 0.0
        %2498 = vmatprep.subr.mxu0 0.0
        %2499 = vmatpush2.msra.mxu0 0.0
        %2500 = vmatprep.subr.mxu0 0.0
        %2501 = vmatpush2.msra.mxu0 0.0
        %2502 = vmatprep.subr.mxu0 0.0
        %2503 = vmatpush2.msra.mxu0 0.0
        %2504 = vmatprep.mubr.f32.mxu0 0.0
        %2505 = vmatmul.mubr.f32.gmra.mxu0 %v2340
        %v2506 = vpop.f32.mrf.mxu0
        %v2507 = vadd.f32 %v2317, %v2506
        %v2508 = vpop.f32.mrf.mxu0
        %v2509 = vadd.f32 %v2319, %v2508
        %2510 = vmatprep.mubr.f32.mxu0 0.0
        %2511 = vmatmul.mubr.f32.gmra.mxu0 %v2343
        %v2512 = vpop.f32.mrf.mxu0
        %v2513 = vadd.f32 %v2323, %v2512
        %v2514 = vpop.f32.mrf.mxu0
        %v2515 = vadd.f32 %v2325, %v2514
        %2516 = vmatprep.mubr.f32.mxu0 0.0
        %2517 = vmatmul.mubr.f32.gmra.mxu0 %v2346
        %v2518 = vpop.f32.mrf.mxu0
        %v2519 = vadd.f32 %v2329, %v2518
        %v2520 = vpop.f32.mrf.mxu0
        %v2521 = vadd.f32 %v2331, %v2520
        %2522 = vmatprep.mubr.f32.mxu0 0.0
        %2523 = vmatmul.mubr.f32.gmra.mxu0 %v2349
        %v2524 = vpop.f32.mrf.mxu0
        %v2525 = vadd.f32 %v2335, %v2524
        %v2526 = vpop.f32.mrf.mxu0
        %v2527 = vadd.f32 %v2337, %v2526
        %2528 = vdwg.mxu0
        %v2529 = vld [vmem:[%s4] sm:$0xff]
        %v2530 = vld [vmem:[%s4 + $0x8] sm:$0xff]
        %v2531 = vld [vmem:[%s4 + $0x10] sm:$0xff]
        %v2532 = vld [vmem:[%s4 + $0x18] sm:$0xff]
        %2534 = vset.pattern.permute.xlu0 0
        %2535 = vperm.xlu0 %2534, %v2529
        %v2536 = vpop.permute.xlu0 %2535
        %2539 = vset.pattern.permute.xlu0 0
        %2540 = vperm.xlu0 %2539, %v2530
        %v2541 = vpop.permute.xlu0 %2540
        %2544 = vset.pattern.permute.xlu0 0
        %2545 = vperm.xlu0 %2544, %v2531
        %v2546 = vpop.permute.xlu0 %2545
        %2549 = vset.pattern.permute.xlu0 0
        %2550 = vperm.xlu0 %2549, %v2532
        %v2551 = vpop.permute.xlu0 %2550
        %v2553 = vadd.f32 %v2418, %v2536
        %v2554 = vadd.f32 %v2420, %v2536
        %v2555 = vadd.f32 %v2507, %v2536
        %v2556 = vadd.f32 %v2509, %v2536
        %v2557 = vadd.f32 %v2424, %v2541
        %v2558 = vadd.f32 %v2426, %v2541
        %v2559 = vadd.f32 %v2513, %v2541
        %v2560 = vadd.f32 %v2515, %v2541
        %v2561 = vadd.f32 %v2430, %v2546
        %v2562 = vadd.f32 %v2432, %v2546
        %v2563 = vadd.f32 %v2519, %v2546
        %v2564 = vadd.f32 %v2521, %v2546
        %v2565 = vadd.f32 %v2436, %v2551
        %v2566 = vadd.f32 %v2438, %v2551
        %v2567 = vadd.f32 %v2525, %v2551
        %v2568 = vadd.f32 %v2527, %v2551
        %vm2569 = vcmp.gt.f32.partialorder %v2553, 0.0
        %vm2570 = vcmp.gt.f32.partialorder %v2554, 0.0
        %vm2571 = vcmp.gt.f32.partialorder %v2555, 0.0
        %vm2572 = vcmp.gt.f32.partialorder %v2556, 0.0
        %vm2573 = vcmp.gt.f32.partialorder %v2557, 0.0
        %vm2574 = vcmp.gt.f32.partialorder %v2558, 0.0
        %vm2575 = vcmp.gt.f32.partialorder %v2559, 0.0
        %vm2576 = vcmp.gt.f32.partialorder %v2560, 0.0
        %vm2577 = vcmp.gt.f32.partialorder %v2561, 0.0
        %vm2578 = vcmp.gt.f32.partialorder %v2562, 0.0
        %vm2579 = vcmp.gt.f32.partialorder %v2563, 0.0
        %vm2580 = vcmp.gt.f32.partialorder %v2564, 0.0
        %vm2581 = vcmp.gt.f32.partialorder %v2565, 0.0
        %vm2582 = vcmp.gt.f32.partialorder %v2566, 0.0
        %vm2583 = vcmp.gt.f32.partialorder %v2567, 0.0
        %vm2584 = vcmp.gt.f32.partialorder %v2568, 0.0
        %v2585 = vmul.f32 %v2553, 0.01
        %v2586 = vmul.f32 %v2554, 0.01
        %v2587 = vmul.f32 %v2555, 0.01
        %v2588 = vmul.f32 %v2556, 0.01
        %v2589 = vmul.f32 %v2557, 0.01
        %v2590 = vmul.f32 %v2558, 0.01
        %v2591 = vmul.f32 %v2559, 0.01
        %v2592 = vmul.f32 %v2560, 0.01
        %v2593 = vmul.f32 %v2561, 0.01
        %v2594 = vmul.f32 %v2562, 0.01
        %v2595 = vmul.f32 %v2563, 0.01
        %v2596 = vmul.f32 %v2564, 0.01
        %v2597 = vmul.f32 %v2565, 0.01
        %v2598 = vmul.f32 %v2566, 0.01
        %v2599 = vmul.f32 %v2567, 0.01
        %v2600 = vmul.f32 %v2568, 0.01
        %v2601 = vsel %vm2569, %v2553, %v2585
        %v2602 = vsel %vm2570, %v2554, %v2586
        %v2603 = vsel %vm2571, %v2555, %v2587
        %v2604 = vsel %vm2572, %v2556, %v2588
        %v2605 = vsel %vm2573, %v2557, %v2589
        %v2606 = vsel %vm2574, %v2558, %v2590
        %v2607 = vsel %vm2575, %v2559, %v2591
        %v2608 = vsel %vm2576, %v2560, %v2592
        %v2609 = vsel %vm2577, %v2561, %v2593
        %v2610 = vsel %vm2578, %v2562, %v2594
        %v2611 = vsel %vm2579, %v2563, %v2595
        %v2612 = vsel %vm2580, %v2564, %v2596
        %v2613 = vsel %vm2581, %v2565, %v2597
        %v2614 = vsel %vm2582, %v2566, %v2598
        %v2615 = vsel %vm2583, %v2567, %v2599
        %v2616 = vsel %vm2584, %v2568, %v2600
        %v2617 = vld [vmem:[%s5] sm:$0xff]
        %v2618 = vld [vmem:[%s5 + $0x8] sm:$0xff]
        %v2619 = vld [vmem:[%s5 + $0x10] sm:$0xff]
        %v2620 = vld [vmem:[%s5 + $0x18] sm:$0xff]
        %v2621 = vld [vmem:[%s6] sm:$0xff]
        %v2622 = vld [vmem:[%s6 + $0x8] sm:$0xff]
        %v2623 = vld [vmem:[%s6 + $0x10] sm:$0xff]
        %v2624 = vld [vmem:[%s6 + $0x18] sm:$0xff]
        %2626 = vset.pattern.permute.xlu0 0
        %2627 = vperm.xlu0 %2626, %v2621
        %v2628 = vpop.permute.xlu0 %2627
        %2631 = vset.pattern.permute.xlu0 0
        %2632 = vperm.xlu0 %2631, %v2622
        %v2633 = vpop.permute.xlu0 %2632
        %2636 = vset.pattern.permute.xlu0 0
        %2637 = vperm.xlu0 %2636, %v2623
        %v2638 = vpop.permute.xlu0 %2637
        %2641 = vset.pattern.permute.xlu0 0
        %2642 = vperm.xlu0 %2641, %v2624
        %v2643 = vpop.permute.xlu0 %2642
        %vm2645 = vcmask 261120
        %v2647 = vsel %vm2645, %v2617, 0
        %v2650 = vsel %vm2645, %v2618, 0
        %v2653 = vsel %vm2645, %v2619, 0
        %v2656 = vsel %vm2645, %v2620, 0
        %2658 = vmatprep.subr.mxu0 0.0
        %2659 = vmatpush1.msra.mxu0 0.0
        %2660 = vmatprep.subr.mxu0 0.0
        %2661 = vmatpush1.msra.mxu0 0.0
        %2662 = vmatprep.subr.mxu0 0.0
        %2663 = vmatpush1.msra.mxu0 0.0
        %2664 = vmatprep.subr.mxu0 0.0
        %2665 = vmatpush1.msra.mxu0 0.0
        %2666 = vmatprep.subr.mxu0 0.0
        %2667 = vmatpush1.msra.mxu0 0.0
        %2668 = vmatprep.subr.mxu0 0.0
        %2669 = vmatpush1.msra.mxu0 0.0
        %2670 = vmatprep.subr.mxu0 0.0
        %2671 = vmatpush1.msra.mxu0 0.0
        %2672 = vmatprep.subr.mxu0 0.0
        %2673 = vmatpush1.msra.mxu0 0.0
        %2674 = vmatprep.subr.mxu0 0.0
        %2675 = vmatpush1.msra.mxu0 0.0
        %2676 = vmatprep.subr.mxu0 0.0
        %2677 = vmatpush1.msra.mxu0 0.0
        %2678 = vmatprep.subr.mxu0 0.0
        %2679 = vmatpush1.msra.mxu0 0.0
        %2680 = vmatprep.subr.mxu0 0.0
        %2681 = vmatpush1.msra.mxu0 0.0
        %2682 = vmatprep.subr.mxu0 %v2614
        %2683 = vmatpush1.msra.mxu0 %v2613
        %2684 = vmatprep.subr.mxu0 %v2610
        %2685 = vmatpush1.msra.mxu0 %v2609
        %2686 = vmatprep.subr.mxu0 %v2606
        %2687 = vmatpush1.msra.mxu0 %v2605
        %2688 = vmatprep.subr.mxu0 %v2602
        %2689 = vmatpush1.msra.mxu0 %v2601
        %2690 = vmatprep.subr.mxu0 0.0
        %2691 = vmatpush2.msra.mxu0 0.0
        %2692 = vmatprep.subr.mxu0 0.0
        %2693 = vmatpush2.msra.mxu0 0.0
        %2694 = vmatprep.subr.mxu0 0.0
        %2695 = vmatpush2.msra.mxu0 0.0
        %2696 = vmatprep.subr.mxu0 0.0
        %2697 = vmatpush2.msra.mxu0 0.0
        %2698 = vmatprep.subr.mxu0 0.0
        %2699 = vmatpush2.msra.mxu0 0.0
        %2700 = vmatprep.subr.mxu0 0.0
        %2701 = vmatpush2.msra.mxu0 0.0
        %2702 = vmatprep.subr.mxu0 0.0
        %2703 = vmatpush2.msra.mxu0 0.0
        %2704 = vmatprep.subr.mxu0 0.0
        %2705 = vmatpush2.msra.mxu0 0.0
        %2706 = vmatprep.subr.mxu0 0.0
        %2707 = vmatpush2.msra.mxu0 0.0
        %2708 = vmatprep.subr.mxu0 0.0
        %2709 = vmatpush2.msra.mxu0 0.0
        %2710 = vmatprep.subr.mxu0 0.0
        %2711 = vmatpush2.msra.mxu0 0.0
        %2712 = vmatprep.subr.mxu0 0.0
        %2713 = vmatpush2.msra.mxu0 0.0
        %2714 = vmatprep.subr.mxu0 0.0
        %2715 = vmatpush2.msra.mxu0 0.0
        %2716 = vmatprep.subr.mxu0 0.0
        %2717 = vmatpush2.msra.mxu0 0.0
        %2718 = vmatprep.subr.mxu0 0.0
        %2719 = vmatpush2.msra.mxu0 0.0
        %2720 = vmatprep.subr.mxu0 0.0
        %2721 = vmatpush2.msra.mxu0 0.0
        %2722 = vmatprep.mubr.f32.mxu0 0.0
        %2723 = vmatmul.mubr.f32.gmra.mxu0 %v2647
        %v2724 = vpop.f32.mrf.mxu0
        %v2725 = vadd.f32 %v2628, %v2724
        %v2726 = vpop.f32.mrf.mxu0
        %v2727 = vadd.f32 %v2628, %v2726
        %2728 = vmatprep.mubr.f32.mxu0 0.0
        %2729 = vmatmul.mubr.f32.gmra.mxu0 %v2650
        %v2730 = vpop.f32.mrf.mxu0
        %v2731 = vadd.f32 %v2633, %v2730
        %v2732 = vpop.f32.mrf.mxu0
        %v2733 = vadd.f32 %v2633, %v2732
        %2734 = vmatprep.mubr.f32.mxu0 0.0
        %2735 = vmatmul.mubr.f32.gmra.mxu0 %v2653
        %v2736 = vpop.f32.mrf.mxu0
        %v2737 = vadd.f32 %v2638, %v2736
        %v2738 = vpop.f32.mrf.mxu0
        %v2739 = vadd.f32 %v2638, %v2738
        %2740 = vmatprep.mubr.f32.mxu0 0.0
        %2741 = vmatmul.mubr.f32.gmra.mxu0 %v2656
        %v2742 = vpop.f32.mrf.mxu0
        %v2743 = vadd.f32 %v2643, %v2742
        %v2744 = vpop.f32.mrf.mxu0
        %v2745 = vadd.f32 %v2643, %v2744
        %2746 = vdwg.mxu0
        %2747 = vmatprep.subr.mxu0 0.0
        %2748 = vmatpush1.msra.mxu0 0.0
        %2749 = vmatprep.subr.mxu0 0.0
        %2750 = vmatpush1.msra.mxu0 0.0
        %2751 = vmatprep.subr.mxu0 0.0
        %2752 = vmatpush1.msra.mxu0 0.0
        %2753 = vmatprep.subr.mxu0 0.0
        %2754 = vmatpush1.msra.mxu0 0.0
        %2755 = vmatprep.subr.mxu0 0.0
        %2756 = vmatpush1.msra.mxu0 0.0
        %2757 = vmatprep.subr.mxu0 0.0
        %2758 = vmatpush1.msra.mxu0 0.0
        %2759 = vmatprep.subr.mxu0 0.0
        %2760 = vmatpush1.msra.mxu0 0.0
        %2761 = vmatprep.subr.mxu0 0.0
        %2762 = vmatpush1.msra.mxu0 0.0
        %2763 = vmatprep.subr.mxu0 0.0
        %2764 = vmatpush1.msra.mxu0 0.0
        %2765 = vmatprep.subr.mxu0 0.0
        %2766 = vmatpush1.msra.mxu0 0.0
        %2767 = vmatprep.subr.mxu0 0.0
        %2768 = vmatpush1.msra.mxu0 0.0
        %2769 = vmatprep.subr.mxu0 0.0
        %2770 = vmatpush1.msra.mxu0 0.0
        %2771 = vmatprep.subr.mxu0 %v2616
        %2772 = vmatpush1.msra.mxu0 %v2615
        %2773 = vmatprep.subr.mxu0 %v2612
        %2774 = vmatpush1.msra.mxu0 %v2611
        %2775 = vmatprep.subr.mxu0 %v2608
        %2776 = vmatpush1.msra.mxu0 %v2607
        %2777 = vmatprep.subr.mxu0 %v2604
        %2778 = vmatpush1.msra.mxu0 %v2603
        %2779 = vmatprep.subr.mxu0 0.0
        %2780 = vmatpush2.msra.mxu0 0.0
        %2781 = vmatprep.subr.mxu0 0.0
        %2782 = vmatpush2.msra.mxu0 0.0
        %2783 = vmatprep.subr.mxu0 0.0
        %2784 = vmatpush2.msra.mxu0 0.0
        %2785 = vmatprep.subr.mxu0 0.0
        %2786 = vmatpush2.msra.mxu0 0.0
        %2787 = vmatprep.subr.mxu0 0.0
        %2788 = vmatpush2.msra.mxu0 0.0
        %2789 = vmatprep.subr.mxu0 0.0
        %2790 = vmatpush2.msra.mxu0 0.0
        %2791 = vmatprep.subr.mxu0 0.0
        %2792 = vmatpush2.msra.mxu0 0.0
        %2793 = vmatprep.subr.mxu0 0.0
        %2794 = vmatpush2.msra.mxu0 0.0
        %2795 = vmatprep.subr.mxu0 0.0
        %2796 = vmatpush2.msra.mxu0 0.0
        %2797 = vmatprep.subr.mxu0 0.0
        %2798 = vmatpush2.msra.mxu0 0.0
        %2799 = vmatprep.subr.mxu0 0.0
        %2800 = vmatpush2.msra.mxu0 0.0
        %2801 = vmatprep.subr.mxu0 0.0
        %2802 = vmatpush2.msra.mxu0 0.0
        %2803 = vmatprep.subr.mxu0 0.0
        %2804 = vmatpush2.msra.mxu0 0.0
        %2805 = vmatprep.subr.mxu0 0.0
        %2806 = vmatpush2.msra.mxu0 0.0
        %2807 = vmatprep.subr.mxu0 0.0
        %2808 = vmatpush2.msra.mxu0 0.0
        %2809 = vmatprep.subr.mxu0 0.0
        %2810 = vmatpush2.msra.mxu0 0.0
        %2811 = vmatprep.mubr.f32.mxu0 0.0
        %2812 = vmatmul.mubr.f32.gmra.mxu0 %v2647
        %v2813 = vpop.f32.mrf.mxu0
        %v2814 = vadd.f32 %v2628, %v2813
        %v2815 = vpop.f32.mrf.mxu0
        %v2816 = vadd.f32 %v2628, %v2815
        %2817 = vmatprep.mubr.f32.mxu0 0.0
        %2818 = vmatmul.mubr.f32.gmra.mxu0 %v2650
        %v2819 = vpop.f32.mrf.mxu0
        %v2820 = vadd.f32 %v2633, %v2819
        %v2821 = vpop.f32.mrf.mxu0
        %v2822 = vadd.f32 %v2633, %v2821
        %2823 = vmatprep.mubr.f32.mxu0 0.0
        %2824 = vmatmul.mubr.f32.gmra.mxu0 %v2653
        %v2825 = vpop.f32.mrf.mxu0
        %v2826 = vadd.f32 %v2638, %v2825
        %v2827 = vpop.f32.mrf.mxu0
        %v2828 = vadd.f32 %v2638, %v2827
        %2829 = vmatprep.mubr.f32.mxu0 0.0
        %2830 = vmatmul.mubr.f32.gmra.mxu0 %v2656
        %v2831 = vpop.f32.mrf.mxu0
        %v2832 = vadd.f32 %v2643, %v2831
        %v2833 = vpop.f32.mrf.mxu0
        %v2834 = vadd.f32 %v2643, %v2833
        %2835 = vdwg.mxu0
        %vm2836 = vcmp.gt.f32.partialorder %v2725, 0.0
        %vm2837 = vcmp.gt.f32.partialorder %v2727, 0.0
        %vm2838 = vcmp.gt.f32.partialorder %v2814, 0.0
        %vm2839 = vcmp.gt.f32.partialorder %v2816, 0.0
        %vm2840 = vcmp.gt.f32.partialorder %v2731, 0.0
        %vm2841 = vcmp.gt.f32.partialorder %v2733, 0.0
        %vm2842 = vcmp.gt.f32.partialorder %v2820, 0.0
        %vm2843 = vcmp.gt.f32.partialorder %v2822, 0.0
        %vm2844 = vcmp.gt.f32.partialorder %v2737, 0.0
        %vm2845 = vcmp.gt.f32.partialorder %v2739, 0.0
        %vm2846 = vcmp.gt.f32.partialorder %v2826, 0.0
        %vm2847 = vcmp.gt.f32.partialorder %v2828, 0.0
        %vm2848 = vcmp.gt.f32.partialorder %v2743, 0.0
        %vm2849 = vcmp.gt.f32.partialorder %v2745, 0.0
        %vm2850 = vcmp.gt.f32.partialorder %v2832, 0.0
        %vm2851 = vcmp.gt.f32.partialorder %v2834, 0.0
        %v2852 = vmul.f32 %v2725, 0.01
        %v2853 = vmul.f32 %v2727, 0.01
        %v2854 = vmul.f32 %v2814, 0.01
        %v2855 = vmul.f32 %v2816, 0.01
        %v2856 = vmul.f32 %v2731, 0.01
        %v2857 = vmul.f32 %v2733, 0.01
        %v2858 = vmul.f32 %v2820, 0.01
        %v2859 = vmul.f32 %v2822, 0.01
        %v2860 = vmul.f32 %v2737, 0.01
        %v2861 = vmul.f32 %v2739, 0.01
        %v2862 = vmul.f32 %v2826, 0.01
        %v2863 = vmul.f32 %v2828, 0.01
        %v2864 = vmul.f32 %v2743, 0.01
        %v2865 = vmul.f32 %v2745, 0.01
        %v2866 = vmul.f32 %v2832, 0.01
        %v2867 = vmul.f32 %v2834, 0.01
        %v2868 = vsel %vm2836, %v2725, %v2852
        %v2869 = vsel %vm2837, %v2727, %v2853
        %v2870 = vsel %vm2838, %v2814, %v2854
        %v2871 = vsel %vm2839, %v2816, %v2855
        %v2872 = vsel %vm2840, %v2731, %v2856
        %v2873 = vsel %vm2841, %v2733, %v2857
        %v2874 = vsel %vm2842, %v2820, %v2858
        %v2875 = vsel %vm2843, %v2822, %v2859
        %v2876 = vsel %vm2844, %v2737, %v2860
        %v2877 = vsel %vm2845, %v2739, %v2861
        %v2878 = vsel %vm2846, %v2826, %v2862
        %v2879 = vsel %vm2847, %v2828, %v2863
        %v2880 = vsel %vm2848, %v2743, %v2864
        %v2881 = vsel %vm2849, %v2745, %v2865
        %v2882 = vsel %vm2850, %v2832, %v2866
        %v2883 = vsel %vm2851, %v2834, %v2867
        %s2884 = scalar_lea.vmem %s5, 32
        %v2885 = vld [vmem:[%s2884] sm:$0xff]
        %v2886 = vld [vmem:[%s2884 + $0x8] sm:$0xff]
        %v2887 = vld [vmem:[%s2884 + $0x10] sm:$0xff]
        %v2888 = vld [vmem:[%s2884 + $0x18] sm:$0xff]
        %s2889 = scalar_lea.vmem %s6, 32
        %v2890 = vld [vmem:[%s2889] sm:$0xff]
        %v2891 = vld [vmem:[%s2889 + $0x8] sm:$0xff]
        %v2892 = vld [vmem:[%s2889 + $0x10] sm:$0xff]
        %v2893 = vld [vmem:[%s2889 + $0x18] sm:$0xff]
        %2895 = vset.pattern.permute.xlu0 0
        %2896 = vperm.xlu0 %2895, %v2890
        %v2897 = vpop.permute.xlu0 %2896
        %2900 = vset.pattern.permute.xlu0 0
        %2901 = vperm.xlu0 %2900, %v2891
        %v2902 = vpop.permute.xlu0 %2901
        %2905 = vset.pattern.permute.xlu0 0
        %2906 = vperm.xlu0 %2905, %v2892
        %v2907 = vpop.permute.xlu0 %2906
        %2910 = vset.pattern.permute.xlu0 0
        %2911 = vperm.xlu0 %2910, %v2893
        %v2912 = vpop.permute.xlu0 %2911
        %v2915 = vsel %vm2645, %v2885, 0
        %v2918 = vsel %vm2645, %v2886, 0
        %v2921 = vsel %vm2645, %v2887, 0
        %v2924 = vsel %vm2645, %v2888, 0
        %2926 = vmatprep.subr.mxu0 0.0
        %2927 = vmatpush1.msra.mxu0 0.0
        %2928 = vmatprep.subr.mxu0 0.0
        %2929 = vmatpush1.msra.mxu0 0.0
        %2930 = vmatprep.subr.mxu0 0.0
        %2931 = vmatpush1.msra.mxu0 0.0
        %2932 = vmatprep.subr.mxu0 0.0
        %2933 = vmatpush1.msra.mxu0 0.0
        %2934 = vmatprep.subr.mxu0 0.0
        %2935 = vmatpush1.msra.mxu0 0.0
        %2936 = vmatprep.subr.mxu0 0.0
        %2937 = vmatpush1.msra.mxu0 0.0
        %2938 = vmatprep.subr.mxu0 0.0
        %2939 = vmatpush1.msra.mxu0 0.0
        %2940 = vmatprep.subr.mxu0 0.0
        %2941 = vmatpush1.msra.mxu0 0.0
        %2942 = vmatprep.subr.mxu0 0.0
        %2943 = vmatpush1.msra.mxu0 0.0
        %2944 = vmatprep.subr.mxu0 0.0
        %2945 = vmatpush1.msra.mxu0 0.0
        %2946 = vmatprep.subr.mxu0 0.0
        %2947 = vmatpush1.msra.mxu0 0.0
        %2948 = vmatprep.subr.mxu0 0.0
        %2949 = vmatpush1.msra.mxu0 0.0
        %2950 = vmatprep.subr.mxu0 %v2881
        %2951 = vmatpush1.msra.mxu0 %v2880
        %2952 = vmatprep.subr.mxu0 %v2877
        %2953 = vmatpush1.msra.mxu0 %v2876
        %2954 = vmatprep.subr.mxu0 %v2873
        %2955 = vmatpush1.msra.mxu0 %v2872
        %2956 = vmatprep.subr.mxu0 %v2869
        %2957 = vmatpush1.msra.mxu0 %v2868
        %2958 = vmatprep.subr.mxu0 0.0
        %2959 = vmatpush2.msra.mxu0 0.0
        %2960 = vmatprep.subr.mxu0 0.0
        %2961 = vmatpush2.msra.mxu0 0.0
        %2962 = vmatprep.subr.mxu0 0.0
        %2963 = vmatpush2.msra.mxu0 0.0
        %2964 = vmatprep.subr.mxu0 0.0
        %2965 = vmatpush2.msra.mxu0 0.0
        %2966 = vmatprep.subr.mxu0 0.0
        %2967 = vmatpush2.msra.mxu0 0.0
        %2968 = vmatprep.subr.mxu0 0.0
        %2969 = vmatpush2.msra.mxu0 0.0
        %2970 = vmatprep.subr.mxu0 0.0
        %2971 = vmatpush2.msra.mxu0 0.0
        %2972 = vmatprep.subr.mxu0 0.0
        %2973 = vmatpush2.msra.mxu0 0.0
        %2974 = vmatprep.subr.mxu0 0.0
        %2975 = vmatpush2.msra.mxu0 0.0
        %2976 = vmatprep.subr.mxu0 0.0
        %2977 = vmatpush2.msra.mxu0 0.0
        %2978 = vmatprep.subr.mxu0 0.0
        %2979 = vmatpush2.msra.mxu0 0.0
        %2980 = vmatprep.subr.mxu0 0.0
        %2981 = vmatpush2.msra.mxu0 0.0
        %2982 = vmatprep.subr.mxu0 0.0
        %2983 = vmatpush2.msra.mxu0 0.0
        %2984 = vmatprep.subr.mxu0 0.0
        %2985 = vmatpush2.msra.mxu0 0.0
        %2986 = vmatprep.subr.mxu0 0.0
        %2987 = vmatpush2.msra.mxu0 0.0
        %2988 = vmatprep.subr.mxu0 0.0
        %2989 = vmatpush2.msra.mxu0 0.0
        %2990 = vmatprep.mubr.f32.mxu0 0.0
        %2991 = vmatmul.mubr.f32.gmra.mxu0 %v2915
        %v2992 = vpop.f32.mrf.mxu0
        %v2993 = vadd.f32 %v2897, %v2992
        %v2994 = vpop.f32.mrf.mxu0
        %v2995 = vadd.f32 %v2897, %v2994
        %2996 = vmatprep.mubr.f32.mxu0 0.0
        %2997 = vmatmul.mubr.f32.gmra.mxu0 %v2918
        %v2998 = vpop.f32.mrf.mxu0
        %v2999 = vadd.f32 %v2902, %v2998
        %v3000 = vpop.f32.mrf.mxu0
        %v3001 = vadd.f32 %v2902, %v3000
        %3002 = vmatprep.mubr.f32.mxu0 0.0
        %3003 = vmatmul.mubr.f32.gmra.mxu0 %v2921
        %v3004 = vpop.f32.mrf.mxu0
        %v3005 = vadd.f32 %v2907, %v3004
        %v3006 = vpop.f32.mrf.mxu0
        %v3007 = vadd.f32 %v2907, %v3006
        %3008 = vmatprep.mubr.f32.mxu0 0.0
        %3009 = vmatmul.mubr.f32.gmra.mxu0 %v2924
        %v3010 = vpop.f32.mrf.mxu0
        %v3011 = vadd.f32 %v2912, %v3010
        %v3012 = vpop.f32.mrf.mxu0
        %v3013 = vadd.f32 %v2912, %v3012
        %3014 = vdwg.mxu0
        %3015 = vmatprep.subr.mxu0 0.0
        %3016 = vmatpush1.msra.mxu0 0.0
        %3017 = vmatprep.subr.mxu0 0.0
        %3018 = vmatpush1.msra.mxu0 0.0
        %3019 = vmatprep.subr.mxu0 0.0
        %3020 = vmatpush1.msra.mxu0 0.0
        %3021 = vmatprep.subr.mxu0 0.0
        %3022 = vmatpush1.msra.mxu0 0.0
        %3023 = vmatprep.subr.mxu0 0.0
        %3024 = vmatpush1.msra.mxu0 0.0
        %3025 = vmatprep.subr.mxu0 0.0
        %3026 = vmatpush1.msra.mxu0 0.0
        %3027 = vmatprep.subr.mxu0 0.0
        %3028 = vmatpush1.msra.mxu0 0.0
        %3029 = vmatprep.subr.mxu0 0.0
        %3030 = vmatpush1.msra.mxu0 0.0
        %3031 = vmatprep.subr.mxu0 0.0
        %3032 = vmatpush1.msra.mxu0 0.0
        %3033 = vmatprep.subr.mxu0 0.0
        %3034 = vmatpush1.msra.mxu0 0.0
        %3035 = vmatprep.subr.mxu0 0.0
        %3036 = vmatpush1.msra.mxu0 0.0
        %3037 = vmatprep.subr.mxu0 0.0
        %3038 = vmatpush1.msra.mxu0 0.0
        %3039 = vmatprep.subr.mxu0 %v2883
        %3040 = vmatpush1.msra.mxu0 %v2882
        %3041 = vmatprep.subr.mxu0 %v2879
        %3042 = vmatpush1.msra.mxu0 %v2878
        %3043 = vmatprep.subr.mxu0 %v2875
        %3044 = vmatpush1.msra.mxu0 %v2874
        %3045 = vmatprep.subr.mxu0 %v2871
        %3046 = vmatpush1.msra.mxu0 %v2870
        %3047 = vmatprep.subr.mxu0 0.0
        %3048 = vmatpush2.msra.mxu0 0.0
        %3049 = vmatprep.subr.mxu0 0.0
        %3050 = vmatpush2.msra.mxu0 0.0
        %3051 = vmatprep.subr.mxu0 0.0
        %3052 = vmatpush2.msra.mxu0 0.0
        %3053 = vmatprep.subr.mxu0 0.0
        %3054 = vmatpush2.msra.mxu0 0.0
        %3055 = vmatprep.subr.mxu0 0.0
        %3056 = vmatpush2.msra.mxu0 0.0
        %3057 = vmatprep.subr.mxu0 0.0
        %3058 = vmatpush2.msra.mxu0 0.0
        %3059 = vmatprep.subr.mxu0 0.0
        %3060 = vmatpush2.msra.mxu0 0.0
        %3061 = vmatprep.subr.mxu0 0.0
        %3062 = vmatpush2.msra.mxu0 0.0
        %3063 = vmatprep.subr.mxu0 0.0
        %3064 = vmatpush2.msra.mxu0 0.0
        %3065 = vmatprep.subr.mxu0 0.0
        %3066 = vmatpush2.msra.mxu0 0.0
        %3067 = vmatprep.subr.mxu0 0.0
        %3068 = vmatpush2.msra.mxu0 0.0
        %3069 = vmatprep.subr.mxu0 0.0
        %3070 = vmatpush2.msra.mxu0 0.0
        %3071 = vmatprep.subr.mxu0 0.0
        %3072 = vmatpush2.msra.mxu0 0.0
        %3073 = vmatprep.subr.mxu0 0.0
        %3074 = vmatpush2.msra.mxu0 0.0
        %3075 = vmatprep.subr.mxu0 0.0
        %3076 = vmatpush2.msra.mxu0 0.0
        %3077 = vmatprep.subr.mxu0 0.0
        %3078 = vmatpush2.msra.mxu0 0.0
        %3079 = vmatprep.mubr.f32.mxu0 0.0
        %3080 = vmatmul.mubr.f32.gmra.mxu0 %v2915
        %v3081 = vpop.f32.mrf.mxu0
        %v3082 = vadd.f32 %v2897, %v3081
        %v3083 = vpop.f32.mrf.mxu0
        %v3084 = vadd.f32 %v2897, %v3083
        %3085 = vmatprep.mubr.f32.mxu0 0.0
        %3086 = vmatmul.mubr.f32.gmra.mxu0 %v2918
        %v3087 = vpop.f32.mrf.mxu0
        %v3088 = vadd.f32 %v2902, %v3087
        %v3089 = vpop.f32.mrf.mxu0
        %v3090 = vadd.f32 %v2902, %v3089
        %3091 = vmatprep.mubr.f32.mxu0 0.0
        %3092 = vmatmul.mubr.f32.gmra.mxu0 %v2921
        %v3093 = vpop.f32.mrf.mxu0
        %v3094 = vadd.f32 %v2907, %v3093
        %v3095 = vpop.f32.mrf.mxu0
        %v3096 = vadd.f32 %v2907, %v3095
        %3097 = vmatprep.mubr.f32.mxu0 0.0
        %3098 = vmatmul.mubr.f32.gmra.mxu0 %v2924
        %v3099 = vpop.f32.mrf.mxu0
        %v3100 = vadd.f32 %v2912, %v3099
        %v3101 = vpop.f32.mrf.mxu0
        %v3102 = vadd.f32 %v2912, %v3101
        %3103 = vdwg.mxu0
        %vm3104 = vcmp.gt.f32.partialorder %v2993, 0.0
        %vm3105 = vcmp.gt.f32.partialorder %v2995, 0.0
        %vm3106 = vcmp.gt.f32.partialorder %v3082, 0.0
        %vm3107 = vcmp.gt.f32.partialorder %v3084, 0.0
        %vm3108 = vcmp.gt.f32.partialorder %v2999, 0.0
        %vm3109 = vcmp.gt.f32.partialorder %v3001, 0.0
        %vm3110 = vcmp.gt.f32.partialorder %v3088, 0.0
        %vm3111 = vcmp.gt.f32.partialorder %v3090, 0.0
        %vm3112 = vcmp.gt.f32.partialorder %v3005, 0.0
        %vm3113 = vcmp.gt.f32.partialorder %v3007, 0.0
        %vm3114 = vcmp.gt.f32.partialorder %v3094, 0.0
        %vm3115 = vcmp.gt.f32.partialorder %v3096, 0.0
        %vm3116 = vcmp.gt.f32.partialorder %v3011, 0.0
        %vm3117 = vcmp.gt.f32.partialorder %v3013, 0.0
        %vm3118 = vcmp.gt.f32.partialorder %v3100, 0.0
        %vm3119 = vcmp.gt.f32.partialorder %v3102, 0.0
        %v3120 = vmul.f32 %v2993, 0.01
        %v3121 = vmul.f32 %v2995, 0.01
        %v3122 = vmul.f32 %v3082, 0.01
        %v3123 = vmul.f32 %v3084, 0.01
        %v3124 = vmul.f32 %v2999, 0.01
        %v3125 = vmul.f32 %v3001, 0.01
        %v3126 = vmul.f32 %v3088, 0.01
        %v3127 = vmul.f32 %v3090, 0.01
        %v3128 = vmul.f32 %v3005, 0.01
        %v3129 = vmul.f32 %v3007, 0.01
        %v3130 = vmul.f32 %v3094, 0.01
        %v3131 = vmul.f32 %v3096, 0.01
        %v3132 = vmul.f32 %v3011, 0.01
        %v3133 = vmul.f32 %v3013, 0.01
        %v3134 = vmul.f32 %v3100, 0.01
        %v3135 = vmul.f32 %v3102, 0.01
        %v3136 = vsel %vm3104, %v2993, %v3120
        %v3137 = vsel %vm3105, %v2995, %v3121
        %v3138 = vsel %vm3106, %v3082, %v3122
        %v3139 = vsel %vm3107, %v3084, %v3123
        %v3140 = vsel %vm3108, %v2999, %v3124
        %v3141 = vsel %vm3109, %v3001, %v3125
        %v3142 = vsel %vm3110, %v3088, %v3126
        %v3143 = vsel %vm3111, %v3090, %v3127
        %v3144 = vsel %vm3112, %v3005, %v3128
        %v3145 = vsel %vm3113, %v3007, %v3129
        %v3146 = vsel %vm3114, %v3094, %v3130
        %v3147 = vsel %vm3115, %v3096, %v3131
        %v3148 = vsel %vm3116, %v3011, %v3132
        %v3149 = vsel %vm3117, %v3013, %v3133
        %v3150 = vsel %vm3118, %v3100, %v3134
        %v3151 = vsel %vm3119, %v3102, %v3135
        %v3152 = vld [vmem:[%s7] sm:$0xff]
        %v3153 = vld [vmem:[%s7 + $0x8] sm:$0xff]
        %v3154 = vld [vmem:[%s7 + $0x10] sm:$0xff]
        %v3155 = vld [vmem:[%s7 + $0x18] sm:$0xff]
        %v3156 = vld [vmem:[%s8] sm:$0xff]
        %v3157 = vld [vmem:[%s8 + $0x8] sm:$0xff]
        %v3158 = vld [vmem:[%s8 + $0x10] sm:$0xff]
        %v3159 = vld [vmem:[%s8 + $0x18] sm:$0xff]
        %3161 = vset.pattern.permute.xlu0 0
        %3162 = vperm.xlu0 %3161, %v3156
        %v3163 = vpop.permute.xlu0 %3162
        %3166 = vset.pattern.permute.xlu0 0
        %3167 = vperm.xlu0 %3166, %v3157
        %v3168 = vpop.permute.xlu0 %3167
        %3171 = vset.pattern.permute.xlu0 0
        %3172 = vperm.xlu0 %3171, %v3158
        %v3173 = vpop.permute.xlu0 %3172
        %3176 = vset.pattern.permute.xlu0 0
        %3177 = vperm.xlu0 %3176, %v3159
        %v3178 = vpop.permute.xlu0 %3177
        %v3181 = vsel %vm2645, %v3152, 0
        %v3184 = vsel %vm2645, %v3153, 0
        %v3187 = vsel %vm2645, %v3154, 0
        %v3190 = vsel %vm2645, %v3155, 0
        %3192 = vmatprep.subr.mxu0 0.0
        %3193 = vmatpush1.msra.mxu0 0.0
        %3194 = vmatprep.subr.mxu0 0.0
        %3195 = vmatpush1.msra.mxu0 0.0
        %3196 = vmatprep.subr.mxu0 0.0
        %3197 = vmatpush1.msra.mxu0 0.0
        %3198 = vmatprep.subr.mxu0 0.0
        %3199 = vmatpush1.msra.mxu0 0.0
        %3200 = vmatprep.subr.mxu0 0.0
        %3201 = vmatpush1.msra.mxu0 0.0
        %3202 = vmatprep.subr.mxu0 0.0
        %3203 = vmatpush1.msra.mxu0 0.0
        %3204 = vmatprep.subr.mxu0 0.0
        %3205 = vmatpush1.msra.mxu0 0.0
        %3206 = vmatprep.subr.mxu0 0.0
        %3207 = vmatpush1.msra.mxu0 0.0
        %3208 = vmatprep.subr.mxu0 0.0
        %3209 = vmatpush1.msra.mxu0 0.0
        %3210 = vmatprep.subr.mxu0 0.0
        %3211 = vmatpush1.msra.mxu0 0.0
        %3212 = vmatprep.subr.mxu0 0.0
        %3213 = vmatpush1.msra.mxu0 0.0
        %3214 = vmatprep.subr.mxu0 0.0
        %3215 = vmatpush1.msra.mxu0 0.0
        %3216 = vmatprep.subr.mxu0 %v3149
        %3217 = vmatpush1.msra.mxu0 %v3148
        %3218 = vmatprep.subr.mxu0 %v3145
        %3219 = vmatpush1.msra.mxu0 %v3144
        %3220 = vmatprep.subr.mxu0 %v3141
        %3221 = vmatpush1.msra.mxu0 %v3140
        %3222 = vmatprep.subr.mxu0 %v3137
        %3223 = vmatpush1.msra.mxu0 %v3136
        %3224 = vmatprep.subr.mxu0 0.0
        %3225 = vmatpush2.msra.mxu0 0.0
        %3226 = vmatprep.subr.mxu0 0.0
        %3227 = vmatpush2.msra.mxu0 0.0
        %3228 = vmatprep.subr.mxu0 0.0
        %3229 = vmatpush2.msra.mxu0 0.0
        %3230 = vmatprep.subr.mxu0 0.0
        %3231 = vmatpush2.msra.mxu0 0.0
        %3232 = vmatprep.subr.mxu0 0.0
        %3233 = vmatpush2.msra.mxu0 0.0
        %3234 = vmatprep.subr.mxu0 0.0
        %3235 = vmatpush2.msra.mxu0 0.0
        %3236 = vmatprep.subr.mxu0 0.0
        %3237 = vmatpush2.msra.mxu0 0.0
        %3238 = vmatprep.subr.mxu0 0.0
        %3239 = vmatpush2.msra.mxu0 0.0
        %3240 = vmatprep.subr.mxu0 0.0
        %3241 = vmatpush2.msra.mxu0 0.0
        %3242 = vmatprep.subr.mxu0 0.0
        %3243 = vmatpush2.msra.mxu0 0.0
        %3244 = vmatprep.subr.mxu0 0.0
        %3245 = vmatpush2.msra.mxu0 0.0
        %3246 = vmatprep.subr.mxu0 0.0
        %3247 = vmatpush2.msra.mxu0 0.0
        %3248 = vmatprep.subr.mxu0 0.0
        %3249 = vmatpush2.msra.mxu0 0.0
        %3250 = vmatprep.subr.mxu0 0.0
        %3251 = vmatpush2.msra.mxu0 0.0
        %3252 = vmatprep.subr.mxu0 0.0
        %3253 = vmatpush2.msra.mxu0 0.0
        %3254 = vmatprep.subr.mxu0 0.0
        %3255 = vmatpush2.msra.mxu0 0.0
        %3256 = vmatprep.mubr.f32.mxu0 0.0
        %3257 = vmatmul.mubr.f32.gmra.mxu0 %v3181
        %v3258 = vpop.f32.mrf.mxu0
        %v3259 = vadd.f32 %v3163, %v3258
        %v3260 = vpop.f32.mrf.mxu0
        %v3261 = vadd.f32 %v3163, %v3260
        %3262 = vmatprep.mubr.f32.mxu0 0.0
        %3263 = vmatmul.mubr.f32.gmra.mxu0 %v3184
        %v3264 = vpop.f32.mrf.mxu0
        %v3265 = vadd.f32 %v3168, %v3264
        %v3266 = vpop.f32.mrf.mxu0
        %v3267 = vadd.f32 %v3168, %v3266
        %3268 = vmatprep.mubr.f32.mxu0 0.0
        %3269 = vmatmul.mubr.f32.gmra.mxu0 %v3187
        %v3270 = vpop.f32.mrf.mxu0
        %v3271 = vadd.f32 %v3173, %v3270
        %v3272 = vpop.f32.mrf.mxu0
        %v3273 = vadd.f32 %v3173, %v3272
        %3274 = vmatprep.mubr.f32.mxu0 0.0
        %3275 = vmatmul.mubr.f32.gmra.mxu0 %v3190
        %v3276 = vpop.f32.mrf.mxu0
        %v3277 = vadd.f32 %v3178, %v3276
        %v3278 = vpop.f32.mrf.mxu0
        %v3279 = vadd.f32 %v3178, %v3278
        %3280 = vdwg.mxu0
        %3281 = vmatprep.subr.mxu0 0.0
        %3282 = vmatpush1.msra.mxu0 0.0
        %3283 = vmatprep.subr.mxu0 0.0
        %3284 = vmatpush1.msra.mxu0 0.0
        %3285 = vmatprep.subr.mxu0 0.0
        %3286 = vmatpush1.msra.mxu0 0.0
        %3287 = vmatprep.subr.mxu0 0.0
        %3288 = vmatpush1.msra.mxu0 0.0
        %3289 = vmatprep.subr.mxu0 0.0
        %3290 = vmatpush1.msra.mxu0 0.0
        %3291 = vmatprep.subr.mxu0 0.0
        %3292 = vmatpush1.msra.mxu0 0.0
        %3293 = vmatprep.subr.mxu0 0.0
        %3294 = vmatpush1.msra.mxu0 0.0
        %3295 = vmatprep.subr.mxu0 0.0
        %3296 = vmatpush1.msra.mxu0 0.0
        %3297 = vmatprep.subr.mxu0 0.0
        %3298 = vmatpush1.msra.mxu0 0.0
        %3299 = vmatprep.subr.mxu0 0.0
        %3300 = vmatpush1.msra.mxu0 0.0
        %3301 = vmatprep.subr.mxu0 0.0
        %3302 = vmatpush1.msra.mxu0 0.0
        %3303 = vmatprep.subr.mxu0 0.0
        %3304 = vmatpush1.msra.mxu0 0.0
        %3305 = vmatprep.subr.mxu0 %v3151
        %3306 = vmatpush1.msra.mxu0 %v3150
        %3307 = vmatprep.subr.mxu0 %v3147
        %3308 = vmatpush1.msra.mxu0 %v3146
        %3309 = vmatprep.subr.mxu0 %v3143
        %3310 = vmatpush1.msra.mxu0 %v3142
        %3311 = vmatprep.subr.mxu0 %v3139
        %3312 = vmatpush1.msra.mxu0 %v3138
        %3313 = vmatprep.subr.mxu0 0.0
        %3314 = vmatpush2.msra.mxu0 0.0
        %3315 = vmatprep.subr.mxu0 0.0
        %3316 = vmatpush2.msra.mxu0 0.0
        %3317 = vmatprep.subr.mxu0 0.0
        %3318 = vmatpush2.msra.mxu0 0.0
        %3319 = vmatprep.subr.mxu0 0.0
        %3320 = vmatpush2.msra.mxu0 0.0
        %3321 = vmatprep.subr.mxu0 0.0
        %3322 = vmatpush2.msra.mxu0 0.0
        %3323 = vmatprep.subr.mxu0 0.0
        %3324 = vmatpush2.msra.mxu0 0.0
        %3325 = vmatprep.subr.mxu0 0.0
        %3326 = vmatpush2.msra.mxu0 0.0
        %3327 = vmatprep.subr.mxu0 0.0
        %3328 = vmatpush2.msra.mxu0 0.0
        %3329 = vmatprep.subr.mxu0 0.0
        %3330 = vmatpush2.msra.mxu0 0.0
        %3331 = vmatprep.subr.mxu0 0.0
        %3332 = vmatpush2.msra.mxu0 0.0
        %3333 = vmatprep.subr.mxu0 0.0
        %3334 = vmatpush2.msra.mxu0 0.0
        %3335 = vmatprep.subr.mxu0 0.0
        %3336 = vmatpush2.msra.mxu0 0.0
        %3337 = vmatprep.subr.mxu0 0.0
        %3338 = vmatpush2.msra.mxu0 0.0
        %3339 = vmatprep.subr.mxu0 0.0
        %3340 = vmatpush2.msra.mxu0 0.0
        %3341 = vmatprep.subr.mxu0 0.0
        %3342 = vmatpush2.msra.mxu0 0.0
        %3343 = vmatprep.subr.mxu0 0.0
        %3344 = vmatpush2.msra.mxu0 0.0
        %3345 = vmatprep.mubr.f32.mxu0 0.0
        %3346 = vmatmul.mubr.f32.gmra.mxu0 %v3181
        %v3347 = vpop.f32.mrf.mxu0
        %v3348 = vadd.f32 %v3163, %v3347
        %v3349 = vpop.f32.mrf.mxu0
        %v3350 = vadd.f32 %v3163, %v3349
        %3351 = vmatprep.mubr.f32.mxu0 0.0
        %3352 = vmatmul.mubr.f32.gmra.mxu0 %v3184
        %v3353 = vpop.f32.mrf.mxu0
        %v3354 = vadd.f32 %v3168, %v3353
        %v3355 = vpop.f32.mrf.mxu0
        %v3356 = vadd.f32 %v3168, %v3355
        %3357 = vmatprep.mubr.f32.mxu0 0.0
        %3358 = vmatmul.mubr.f32.gmra.mxu0 %v3187
        %v3359 = vpop.f32.mrf.mxu0
        %v3360 = vadd.f32 %v3173, %v3359
        %v3361 = vpop.f32.mrf.mxu0
        %v3362 = vadd.f32 %v3173, %v3361
        %3363 = vmatprep.mubr.f32.mxu0 0.0
        %3364 = vmatmul.mubr.f32.gmra.mxu0 %v3190
        %v3365 = vpop.f32.mrf.mxu0
        %v3366 = vadd.f32 %v3178, %v3365
        %v3367 = vpop.f32.mrf.mxu0
        %v3368 = vadd.f32 %v3178, %v3367
        %3369 = vdwg.mxu0
        %3370 = vst [vmem:[%s346] sm:$0xff] %v3259
        %3371 = vst [vmem:[%s346 + $0x8] sm:$0xff] %v3261
        %3372 = vst [vmem:[%s346 + $0x10] sm:$0xff] %v3348
        %3373 = vst [vmem:[%s346 + $0x18] sm:$0xff] %v3350
        %3374 = vst [vmem:[%s346 + $0x20] sm:$0xff] %v3265
        %3375 = vst [vmem:[%s346 + $0x28] sm:$0xff] %v3267
        %3376 = vst [vmem:[%s346 + $0x30] sm:$0xff] %v3354
        %3377 = vst [vmem:[%s346 + $0x38] sm:$0xff] %v3356
        %3378 = vst [vmem:[%s346 + $0x40] sm:$0xff] %v3271
        %3379 = vst [vmem:[%s346 + $0x48] sm:$0xff] %v3273
        %3380 = vst [vmem:[%s346 + $0x50] sm:$0xff] %v3360
        %3381 = vst [vmem:[%s346 + $0x58] sm:$0xff] %v3362
        %3382 = vst [vmem:[%s346 + $0x60] sm:$0xff] %v3277
        %3383 = vst [vmem:[%s346 + $0x68] sm:$0xff] %v3279
        %3384 = vst [vmem:[%s346 + $0x70] sm:$0xff] %v3366
        %3385 = vst [vmem:[%s346 + $0x78] sm:$0xff] %v3368
        %s3386 = sand.u32 %s238, 1
        %s3387 = sand.u32 %s238, 1
        %s3388 = smul.addr %s3387, 128
        %s3389 = scalar_lea.vmem [#allocation2], %s3388
        // Predicated region
        $region57: #{phase_mlp_forward.1} parent=55 // pred_check
          %p3390 = pneg %p248
        $region58: #{phase_mlp_forward.1} parent=55 // pred_check_branch
          %3392 = sbr.rel (%p3390) target = $region60
        $region59: #{phase_mlp_forward.1} parent=55 // pred_region
          %s3393 = smul.u32 4, %s25
          %s3394 = smul.addr %s24, 32
          %s3395 = sadd.s32 %s3393, %s3394
          %s3396 = smul.addr %s3395, 8
          %s3397 = scalar_lea.vmem %s9, %s3396
          // Predicated region
          $region61: #{phase_mlp_forward.1} parent=59 // pred_check
            _
          $region62: #{phase_mlp_forward.1} parent=59 // pred_check_branch
            %3399 = sbr.rel (0) target = $region64
          $region63: #{phase_mlp_forward.1} parent=59 // pred_region
            // Predicated region
            $region65: #{phase_mlp_forward.1} parent=63 // pred_check
              _
            $region66: #{phase_mlp_forward.1} parent=63 // pred_check_branch
              %3401 = sbr.rel (0) target = $region68
            $region67: #{phase_mlp_forward.1} parent=63 // pred_region
              loop: start=0, step=1, limit=1
              $region69: #{phase_mlp_forward.1} parent=67 // loop_pre_header
                _
              $region70: #{phase_mlp_forward.1} parent=67 // loop_header
                %s3403 = sphi 0, %s3407
                %p3404 = scmp.ge.s32.totalorder %s3403, 1
                %s3408 = sphi %s3389, %s3389
                %s3409 = sphi %s3397, %s3397
              $region71: #{phase_mlp_forward.1} parent=67 // loop_header_branch
                %3406 = sbr.rel (%p3404) target = $region75
              $region72: #{phase_mlp_forward.1} parent=67 // loop_body
                %v3410 = vld [vmem:[%s3408] sm:$0xff]
                %3411 = vst [vmem:[%s3409] sm:$0xff] %v3410
                %v3412 = vld [vmem:[%s3408 + $0x8] sm:$0xff]
                %3413 = vst [vmem:[%s3409 + $0x8] sm:$0xff] %v3412
                %v3414 = vld [vmem:[%s3408 + $0x10] sm:$0xff]
                %3415 = vst [vmem:[%s3409 + $0x10] sm:$0xff] %v3414
                %v3416 = vld [vmem:[%s3408 + $0x18] sm:$0xff]
                %3417 = vst [vmem:[%s3409 + $0x18] sm:$0xff] %v3416
                %v3418 = vld [vmem:[%s3408 + $0x20] sm:$0xff]
                %3419 = vst [vmem:[%s3409 + $0x40] sm:$0xff] %v3418
                %v3420 = vld [vmem:[%s3408 + $0x28] sm:$0xff]
                %3421 = vst [vmem:[%s3409 + $0x48] sm:$0xff] %v3420
                %v3422 = vld [vmem:[%s3408 + $0x30] sm:$0xff]
                %3423 = vst [vmem:[%s3409 + $0x50] sm:$0xff] %v3422
                %v3424 = vld [vmem:[%s3408 + $0x38] sm:$0xff]
                %3425 = vst [vmem:[%s3409 + $0x58] sm:$0xff] %v3424
                %v3426 = vld [vmem:[%s3408 + $0x40] sm:$0xff]
                %3427 = vst [vmem:[%s3409 + $0x80] sm:$0xff] %v3426
                %v3428 = vld [vmem:[%s3408 + $0x48] sm:$0xff]
                %3429 = vst [vmem:[%s3409 + $0x88] sm:$0xff] %v3428
                %v3430 = vld [vmem:[%s3408 + $0x50] sm:$0xff]
                %3431 = vst [vmem:[%s3409 + $0x90] sm:$0xff] %v3430
                %v3432 = vld [vmem:[%s3408 + $0x58] sm:$0xff]
                %3433 = vst [vmem:[%s3409 + $0x98] sm:$0xff] %v3432
                %v3434 = vld [vmem:[%s3408 + $0x60] sm:$0xff]
                %3435 = vst [vmem:[%s3409 + $0xc0] sm:$0xff] %v3434
                %v3436 = vld [vmem:[%s3408 + $0x68] sm:$0xff]
                %3437 = vst [vmem:[%s3409 + $0xc8] sm:$0xff] %v3436
                %v3438 = vld [vmem:[%s3408 + $0x70] sm:$0xff]
                %3439 = vst [vmem:[%s3409 + $0xd0] sm:$0xff] %v3438
                %v3440 = vld [vmem:[%s3408 + $0x78] sm:$0xff]
                %3441 = vst [vmem:[%s3409 + $0xd8] sm:$0xff] %v3440
              $region73: #{phase_mlp_forward.1} parent=67 // loop_footer
                %s3407 = sadd.s32 1, %s3403
              $region74: #{phase_mlp_forward.1} parent=67 // loop_footer_branch
                %3402 = sbr.rel target = $region70
              $region75: #{phase_mlp_forward.1} parent=67 // loop_exit
                _
            $region68: #{phase_mlp_forward.1} parent=63 // pred_fallthru
              _
            // Predicated region
            $region76: #{phase_mlp_forward.1} parent=63 // pred_check
              _
            $region77: #{phase_mlp_forward.1} parent=63 // pred_check_branch
              %3443 = sbr.rel target = $region79
            $region78: #{phase_mlp_forward.1} parent=63 // pred_region
              _
            $region79: #{phase_mlp_forward.1} parent=63 // pred_fallthru
              _
          $region64: #{phase_mlp_forward.1} parent=59 // pred_fallthru
            _
          %3444 = vnop
        $region60: #{phase_mlp_forward.1} parent=55 // pred_fallthru
          _
      $region56: #{phase_mlp_forward.1} parent=5 // pred_fallthru
        _
      %p3445 = scmp.le.s32.totalorder 2, %s15
      // Predicated region
      $region80: #{phase_mlp_forward.1} parent=5 // pred_check
        %p3446 = pneg %p3445
      $region81: #{phase_mlp_forward.1} parent=5 // pred_check_branch
        %3448 = sbr.rel (%p3446) target = $region83
      $region82: #{phase_mlp_forward.1} parent=5 // pred_region
        %s3449 = ssub.s32 %s15, 2
        // Predicated region
        $region84: #{phase_mlp_forward.1} parent=82 // pred_check
          %p3450 = pneg %p254
        $region85: #{phase_mlp_forward.1} parent=82 // pred_check_branch
          %3452 = sbr.rel (%p3450) target = $region87
        $region86: #{phase_mlp_forward.1} parent=82 // pred_region
          %s3453 = sand.u32 %s239, 1
          %s3454 = sand.u32 %s239, 1
          %s3455 = smul.addr %s3454, 128
          %s3456 = scalar_lea.vmem [#allocation2], %s3455
        $region87: #{phase_mlp_forward.1} parent=82 // pred_fallthru
          _
      $region83: #{phase_mlp_forward.1} parent=5 // pred_fallthru
        _
    $region6: #{phase_mlp_forward.1} parent=1 // loop_footer
      %s19 = sadd.s32 1, %s15
    $region7: #{phase_mlp_forward.1} parent=1 // loop_footer_branch
      %14 = sbr.rel target = $region3
    $region8: #{phase_mlp_forward.1} parent=1 // loop_exit
      _

</llo_original>
